<compile_context>
chip_gen: v7x
topology: tpu7x:2x2x1
jax: 0.10.0
libtpu: 0.0.40
codegen_flags: <defaults>
</compile_context>

<pallas_src>
import math
from functools import partial

import jax
import jax.numpy as jnp
from jax.experimental import pallas as pl
from jax.experimental.pallas import tpu as pltpu

HIDDEN = 100        # self.tree_hidden_dim
HP = 128            # lane-padded hidden dim used inside the kernel
NUM_LAYERS = 2      # self.lstm1_num_layers


def _gru_fused_cell(gi, h_prev, whh_ref, bhh, hp):
    """One fused GRU cell step.
    gi:  (B, 3*hp)  input projection (already includes bih), gate order [r,z,n]
    h_prev: (B, hp)
    whh_ref: VMEM ref (hp, 3*hp)  -- read at the dot site (per-use load)
    bhh: (1, 3*hp)
    """
    gh = jnp.dot(h_prev, whh_ref[...], preferred_element_type=jnp.float32) + bhh
    r = jax.nn.sigmoid(gi[:, 0 * hp:1 * hp] + gh[:, 0 * hp:1 * hp])
    z = jax.nn.sigmoid(gi[:, 1 * hp:2 * hp] + gh[:, 1 * hp:2 * hp])
    n = jnp.tanh(gi[:, 2 * hp:3 * hp] + r * gh[:, 2 * hp:3 * hp])
    return (1.0 - z) * n + z * h_prev


def gru_mean_kernel(x_ref,
                    wih0_ref, bih0_ref, whh0_ref, bhh0_ref,
                    wih1_ref, bih1_ref, whh1_ref, bhh1_ref,
                    out_ref):
    """x_ref: (T*B, D) time-major flattened input.
    wih0: (D, 3*Hp), whh*: (Hp, 3*Hp), biases: (1, 3*Hp). out_ref: (B, Hp)."""
    TB, _ = x_ref.shape
    hp = whh0_ref.shape[0]
    B = out_ref.shape[0]
    T = TB // B

    # Layer-0 input projection for all timesteps: one well-shaped MXU matmul
    # off the recurrent critical path.
    xp = (jnp.dot(x_ref[...], wih0_ref[...], preferred_element_type=jnp.float32)
          + bih0_ref[...])                                   # (T*B, 3*Hp)

    # Biases are tiny; hoist them. Big recurrent weights stay in VMEM refs.
    bhh0 = bhh0_ref[...]
    bih1 = bih1_ref[...]
    bhh1 = bhh1_ref[...]

    h0 = jnp.zeros((B, hp), jnp.float32)
    h1 = jnp.zeros((B, hp), jnp.float32)
    acc = jnp.zeros((B, hp), jnp.float32)

    # T is static and small (8): full unroll for cross-timestep scheduling.
    for t in range(T):
        gi0 = xp[t * B:(t + 1) * B, :]                       # static slice
        h0 = _gru_fused_cell(gi0, h0, whh0_ref, bhh0, hp)    # layer 0

        gi1 = (jnp.dot(h0, wih1_ref[...], preferred_element_type=jnp.float32)
               + bih1)
        h1 = _gru_fused_cell(gi1, h1, whh1_ref, bhh1, hp)    # layer 1

        acc = acc + h1

    out_ref[...] = acc * (1.0 / T)                           # mean over time


def init_gru_params(key, feature_d, hidden=HIDDEN, num_layers=NUM_LAYERS):
    """Deterministic init matching nn.GRU shapes, stored as
    (wih (3,H,D_in), whh (3,H,H), bih (3,H), bhh (3,H)) per layer."""
    params = []
    bound = 1.0 / math.sqrt(hidden)
    for layer in range(num_layers):
        in_sz = feature_d if layer == 0 else hidden
        key, k0, k1, k2, k3 = jax.random.split(key, 5)
        wih = jax.random.uniform(k0, (3, hidden, in_sz), jnp.float32, -bound, bound)
        whh = jax.random.uniform(k1, (3, hidden, hidden), jnp.float32, -bound, bound)
        bih = jax.random.uniform(k2, (3, hidden), jnp.float32, -bound, bound)
        bhh = jax.random.uniform(k3, (3, hidden), jnp.float32, -bound, bound)
        params.append((wih, whh, bih, bhh))
    return params


def pack_params(params, feature_d, hidden=HIDDEN, hp=HP):
    """One-time packing: fuse gates along the lane dim and zero-pad H->hp.
    Layer 0 input dim stays feature_d; layer 1 input dim is padded to hp.
    Zero padding keeps padded hidden lanes exactly 0 through the recurrence."""
    packed = []
    for layer, (wih, whh, bih, bhh) in enumerate(params):
        in_sz = feature_d if layer == 0 else hidden
        in_pad = feature_d if layer == 0 else hp
        wih_f = jnp.zeros((in_pad, 3 * hp), jnp.float32)
        whh_f = jnp.zeros((hp, 3 * hp), jnp.float32)
        bih_f = jnp.zeros((1, 3 * hp), jnp.float32)
        bhh_f = jnp.zeros((1, 3 * hp), jnp.float32)
        for g in range(3):
            wih_f = wih_f.at[:in_sz, g * hp:g * hp + hidden].set(wih[g].T)
            whh_f = whh_f.at[:hidden, g * hp:g * hp + hidden].set(whh[g].T)
            bih_f = bih_f.at[0, g * hp:g * hp + hidden].set(bih[g])
            bhh_f = bhh_f.at[0, g * hp:g * hp + hidden].set(bhh[g])
        packed.append((wih_f, bih_f, whh_f, bhh_f))
    return packed


@partial(jax.jit, static_argnums=(2, 3))
def gru_forward(x_flat, packed_params, max_tree_len, feature_d):
    """PyTorch-equivalent forward: x_flat (B, T*D) -> (B, HIDDEN)."""
    B = x_flat.shape[0]
    T = max_tree_len
    # Unflatten(1, (T, D)) then go time-major and flatten time*batch for the
    # one-shot layer-0 input projection inside the kernel.
    x = (x_flat.reshape(B, T, feature_d)
               .transpose(1, 0, 2)
               .reshape(T * B, feature_d))

    (wih0, bih0, whh0, bhh0), (wih1, bih1, whh1, bhh1) = packed_params
    args = (x, wih0, bih0, whh0, bhh0, wih1, bih1, whh1, bhh1)

    out_padded = pl.pallas_call(
        gru_mean_kernel,
        out_shape=jax.ShapeDtypeStruct((B, HP), jnp.float32),
        in_specs=[pl.BlockSpec(memory_space=pltpu.MemorySpace.VMEM)] * len(args),
        out_specs=pl.BlockSpec(memory_space=pltpu.MemorySpace.VMEM),
    )(*args)
    return out_padded[:, :HIDDEN]


def gru_forward_ref(x_flat, params, max_tree_len, feature_d):
    """Plain-JAX reference of the same forward pass (correctness check)."""
    B = x_flat.shape[0]
    x = x_flat.reshape(B, max_tree_len, feature_d)
    H = params[0][1].shape[1]

    def cell(x_t, h_prev, wih, whh, bih, bhh):
        gi = x_t @ wih.reshape(3 * H, -1).T + bih.reshape(-1)
        gh = h_prev @ whh.reshape(3 * H, -1).T + bhh.reshape(-1)
        i_r, i_z, i_n = gi[:, :H], gi[:, H:2 * H], gi[:, 2 * H:]
        h_r, h_z, h_n = gh[:, :H], gh[:, H:2 * H], gh[:, 2 * H:]
        r = jax.nn.sigmoid(i_r + h_r)
        z = jax.nn.sigmoid(i_z + h_z)
        n = jnp.tanh(i_n + r * h_n)
        return (1.0 - z) * n + z * h_prev

    h0 = jnp.zeros((B, H), jnp.float32)
    h1 = jnp.zeros((B, H), jnp.float32)
    outs = []
    for t in range(max_tree_len):
        h0 = cell(x[:, t, :], h0, *params[0])
        h1 = cell(h0, h1, *params[1])
        outs.append(h1)
    return jnp.mean(jnp.stack(outs, axis=1), axis=1)


if __name__ == "__main__":
    feature_d = 32
    max_tree_len = 8
    batch = 2

    key = jax.random.PRNGKey(0)
    kx, kp = jax.random.split(key)
    # Module input is the flattened (B, max_tree_len * feature_d) tensor.
    x = jax.random.normal(kx, (batch, max_tree_len * feature_d), dtype=jnp.float32)
    params = init_gru_params(kp, feature_d)
    packed = pack_params(params, feature_d)     # one-time weight packing

    out = gru_forward(x, packed, max_tree_len, feature_d)
    out = jax.block_until_ready(out)

    ref = gru_forward_ref(x, params, max_tree_len, feature_d)
    assert out.shape == (batch, HIDDEN)
    assert jnp.allclose(out, ref, atol=1e-5, rtol=1e-5), "mismatch vs reference"

    print("KERNEL_OK")
</pallas_src>

<mosaic_0001>
module attributes {stable_mosaic.version = 11 : i64} {
  func.func @gru_mean_kernel(%arg0: memref<16x32xf32, #tpu.memory_space<vmem>>, %arg1: memref<32x384xf32, #tpu.memory_space<vmem>>, %arg2: memref<1x384xf32, #tpu.memory_space<vmem>>, %arg3: memref<128x384xf32, #tpu.memory_space<vmem>>, %arg4: memref<1x384xf32, #tpu.memory_space<vmem>>, %arg5: memref<128x384xf32, #tpu.memory_space<vmem>>, %arg6: memref<1x384xf32, #tpu.memory_space<vmem>>, %arg7: memref<128x384xf32, #tpu.memory_space<vmem>>, %arg8: memref<1x384xf32, #tpu.memory_space<vmem>>, %arg9: memref<2x128xf32, #tpu.memory_space<vmem>>) attributes {dimension_semantics = [], scalar_prefetch = 0 : i64, scratch_operands = 0 : i64, tpu.core_type = #tpu.core_type<tc>} {
    %c0 = arith.constant 0 : index
    %c0_0 = arith.constant 0 : index
    %0 = vector.load %arg0[%c0, %c0_0] : memref<16x32xf32, #tpu.memory_space<vmem>>, vector<16x32xf32>
    %c0_1 = arith.constant 0 : index
    %c0_2 = arith.constant 0 : index
    %1 = vector.load %arg1[%c0_1, %c0_2] : memref<32x384xf32, #tpu.memory_space<vmem>>, vector<32x384xf32>
    %cst = arith.constant dense<0.000000e+00> : vector<16x384xf32>
    %2 = tpu.matmul %0, %1, %cst {dimension_numbers = #tpu.dot_dimension_numbers<[1], [0], [0], [1], [0, 0, 1, 1], [], []>} : vector<16x32xf32>, vector<32x384xf32>, vector<16x384xf32> -> vector<16x384xf32>
    %c0_3 = arith.constant 0 : index
    %c0_4 = arith.constant 0 : index
    %3 = vector.load %arg2[%c0_3, %c0_4] : memref<1x384xf32, #tpu.memory_space<vmem>>, vector<1x384xf32>
    %4 = vector.broadcast %3 : vector<1x384xf32> to vector<16x384xf32>
    %5 = arith.addf %2, %4 : vector<16x384xf32>
    %c0_5 = arith.constant 0 : index
    %c0_6 = arith.constant 0 : index
    %6 = vector.load %arg4[%c0_5, %c0_6] : memref<1x384xf32, #tpu.memory_space<vmem>>, vector<1x384xf32>
    %c0_7 = arith.constant 0 : index
    %c0_8 = arith.constant 0 : index
    %7 = vector.load %arg6[%c0_7, %c0_8] : memref<1x384xf32, #tpu.memory_space<vmem>>, vector<1x384xf32>
    %c0_9 = arith.constant 0 : index
    %c0_10 = arith.constant 0 : index
    %8 = vector.load %arg8[%c0_9, %c0_10] : memref<1x384xf32, #tpu.memory_space<vmem>>, vector<1x384xf32>
    %cst_11 = arith.constant 0.000000e+00 : f32
    %9 = vector.broadcast %cst_11 : f32 to vector<2x128xf32>
    %cst_12 = arith.constant 0.000000e+00 : f32
    %10 = vector.broadcast %cst_12 : f32 to vector<2x128xf32>
    %cst_13 = arith.constant 0.000000e+00 : f32
    %11 = vector.broadcast %cst_13 : f32 to vector<2x128xf32>
    %12 = vector.extract_strided_slice %5 {offsets = [0, 0], sizes = [2, 384], strides = [1, 1]} : vector<16x384xf32> to vector<2x384xf32>
    %c0_14 = arith.constant 0 : index
    %c0_15 = arith.constant 0 : index
    %13 = vector.load %arg3[%c0_14, %c0_15] : memref<128x384xf32, #tpu.memory_space<vmem>>, vector<128x384xf32>
    %cst_16 = arith.constant dense<0.000000e+00> : vector<2x384xf32>
    %14 = tpu.matmul %9, %13, %cst_16 {dimension_numbers = #tpu.dot_dimension_numbers<[1], [0], [0], [1], [0, 0, 1, 1], [], []>} : vector<2x128xf32>, vector<128x384xf32>, vector<2x384xf32> -> vector<2x384xf32>
    %15 = vector.broadcast %6 : vector<1x384xf32> to vector<2x384xf32>
    %16 = arith.addf %14, %15 : vector<2x384xf32>
    %17 = vector.extract_strided_slice %12 {offsets = [0, 0], sizes = [2, 128], strides = [1, 1]} : vector<2x384xf32> to vector<2x128xf32>
    %18 = vector.extract_strided_slice %16 {offsets = [0, 0], sizes = [2, 128], strides = [1, 1]} : vector<2x384xf32> to vector<2x128xf32>
    %19 = arith.addf %17, %18 : vector<2x128xf32>
    %20 = arith.negf %19 : vector<2x128xf32>
    %21 = math.exp %20 : vector<2x128xf32>
    %cst_17 = arith.constant 1.000000e+00 : f32
    %22 = vector.broadcast %cst_17 : f32 to vector<2x128xf32>
    %23 = arith.addf %22, %21 : vector<2x128xf32>
    %24 = arith.divf %22, %23 : vector<2x128xf32>
    %25 = vector.extract_strided_slice %12 {offsets = [0, 128], sizes = [2, 128], strides = [1, 1]} : vector<2x384xf32> to vector<2x128xf32>
    %26 = vector.extract_strided_slice %16 {offsets = [0, 128], sizes = [2, 128], strides = [1, 1]} : vector<2x384xf32> to vector<2x128xf32>
    %27 = arith.addf %25, %26 : vector<2x128xf32>
    %28 = arith.negf %27 : vector<2x128xf32>
    %29 = math.exp %28 : vector<2x128xf32>
    %cst_18 = arith.constant 1.000000e+00 : f32
    %30 = vector.broadcast %cst_18 : f32 to vector<2x128xf32>
    %31 = arith.addf %30, %29 : vector<2x128xf32>
    %32 = arith.divf %30, %31 : vector<2x128xf32>
    %33 = vector.extract_strided_slice %12 {offsets = [0, 256], sizes = [2, 128], strides = [1, 1]} : vector<2x384xf32> to vector<2x128xf32>
    %34 = vector.extract_strided_slice %16 {offsets = [0, 256], sizes = [2, 128], strides = [1, 1]} : vector<2x384xf32> to vector<2x128xf32>
    %35 = arith.mulf %24, %34 : vector<2x128xf32>
    %36 = arith.addf %33, %35 : vector<2x128xf32>
    %37 = math.tanh %36 : vector<2x128xf32>
    %cst_19 = arith.constant 1.000000e+00 : f32
    %38 = vector.broadcast %cst_19 : f32 to vector<2x128xf32>
    %39 = arith.subf %38, %32 : vector<2x128xf32>
    %40 = arith.mulf %39, %37 : vector<2x128xf32>
    %41 = arith.mulf %32, %9 : vector<2x128xf32>
    %42 = arith.addf %40, %41 : vector<2x128xf32>
    %c0_20 = arith.constant 0 : index
    %c0_21 = arith.constant 0 : index
    %43 = vector.load %arg5[%c0_20, %c0_21] : memref<128x384xf32, #tpu.memory_space<vmem>>, vector<128x384xf32>
    %cst_22 = arith.constant dense<0.000000e+00> : vector<2x384xf32>
    %44 = tpu.matmul %42, %43, %cst_22 {dimension_numbers = #tpu.dot_dimension_numbers<[1], [0], [0], [1], [0, 0, 1, 1], [], []>} : vector<2x128xf32>, vector<128x384xf32>, vector<2x384xf32> -> vector<2x384xf32>
    %45 = vector.broadcast %7 : vector<1x384xf32> to vector<2x384xf32>
    %46 = arith.addf %44, %45 : vector<2x384xf32>
    %c0_23 = arith.constant 0 : index
    %c0_24 = arith.constant 0 : index
    %47 = vector.load %arg7[%c0_23, %c0_24] : memref<128x384xf32, #tpu.memory_space<vmem>>, vector<128x384xf32>
    %cst_25 = arith.constant dense<0.000000e+00> : vector<2x384xf32>
    %48 = tpu.matmul %10, %47, %cst_25 {dimension_numbers = #tpu.dot_dimension_numbers<[1], [0], [0], [1], [0, 0, 1, 1], [], []>} : vector<2x128xf32>, vector<128x384xf32>, vector<2x384xf32> -> vector<2x384xf32>
    %49 = vector.broadcast %8 : vector<1x384xf32> to vector<2x384xf32>
    %50 = arith.addf %48, %49 : vector<2x384xf32>
    %51 = vector.extract_strided_slice %46 {offsets = [0, 0], sizes = [2, 128], strides = [1, 1]} : vector<2x384xf32> to vector<2x128xf32>
    %52 = vector.extract_strided_slice %50 {offsets = [0, 0], sizes = [2, 128], strides = [1, 1]} : vector<2x384xf32> to vector<2x128xf32>
    %53 = arith.addf %51, %52 : vector<2x128xf32>
    %54 = arith.negf %53 : vector<2x128xf32>
    %55 = math.exp %54 : vector<2x128xf32>
    %cst_26 = arith.constant 1.000000e+00 : f32
    %56 = vector.broadcast %cst_26 : f32 to vector<2x128xf32>
    %57 = arith.addf %56, %55 : vector<2x128xf32>
    %58 = arith.divf %56, %57 : vector<2x128xf32>
    %59 = vector.extract_strided_slice %46 {offsets = [0, 128], sizes = [2, 128], strides = [1, 1]} : vector<2x384xf32> to vector<2x128xf32>
    %60 = vector.extract_strided_slice %50 {offsets = [0, 128], sizes = [2, 128], strides = [1, 1]} : vector<2x384xf32> to vector<2x128xf32>
    %61 = arith.addf %59, %60 : vector<2x128xf32>
    %62 = arith.negf %61 : vector<2x128xf32>
    %63 = math.exp %62 : vector<2x128xf32>
    %cst_27 = arith.constant 1.000000e+00 : f32
    %64 = vector.broadcast %cst_27 : f32 to vector<2x128xf32>
    %65 = arith.addf %64, %63 : vector<2x128xf32>
    %66 = arith.divf %64, %65 : vector<2x128xf32>
    %67 = vector.extract_strided_slice %46 {offsets = [0, 256], sizes = [2, 128], strides = [1, 1]} : vector<2x384xf32> to vector<2x128xf32>
    %68 = vector.extract_strided_slice %50 {offsets = [0, 256], sizes = [2, 128], strides = [1, 1]} : vector<2x384xf32> to vector<2x128xf32>
    %69 = arith.mulf %58, %68 : vector<2x128xf32>
    %70 = arith.addf %67, %69 : vector<2x128xf32>
    %71 = math.tanh %70 : vector<2x128xf32>
    %cst_28 = arith.constant 1.000000e+00 : f32
    %72 = vector.broadcast %cst_28 : f32 to vector<2x128xf32>
    %73 = arith.subf %72, %66 : vector<2x128xf32>
    %74 = arith.mulf %73, %71 : vector<2x128xf32>
    %75 = arith.mulf %66, %10 : vector<2x128xf32>
    %76 = arith.addf %74, %75 : vector<2x128xf32>
    %77 = arith.addf %11, %76 : vector<2x128xf32>
    %78 = vector.extract_strided_slice %5 {offsets = [2, 0], sizes = [2, 384], strides = [1, 1]} : vector<16x384xf32> to vector<2x384xf32>
    %c0_29 = arith.constant 0 : index
    %c0_30 = arith.constant 0 : index
    %79 = vector.load %arg3[%c0_29, %c0_30] : memref<128x384xf32, #tpu.memory_space<vmem>>, vector<128x384xf32>
    %cst_31 = arith.constant dense<0.000000e+00> : vector<2x384xf32>
    %80 = tpu.matmul %42, %79, %cst_31 {dimension_numbers = #tpu.dot_dimension_numbers<[1], [0], [0], [1], [0, 0, 1, 1], [], []>} : vector<2x128xf32>, vector<128x384xf32>, vector<2x384xf32> -> vector<2x384xf32>
    %81 = vector.broadcast %6 : vector<1x384xf32> to vector<2x384xf32>
    %82 = arith.addf %80, %81 : vector<2x384xf32>
    %83 = vector.extract_strided_slice %78 {offsets = [0, 0], sizes = [2, 128], strides = [1, 1]} : vector<2x384xf32> to vector<2x128xf32>
    %84 = vector.extract_strided_slice %82 {offsets = [0, 0], sizes = [2, 128], strides = [1, 1]} : vector<2x384xf32> to vector<2x128xf32>
    %85 = arith.addf %83, %84 : vector<2x128xf32>
    %86 = arith.negf %85 : vector<2x128xf32>
    %87 = math.exp %86 : vector<2x128xf32>
    %cst_32 = arith.constant 1.000000e+00 : f32
    %88 = vector.broadcast %cst_32 : f32 to vector<2x128xf32>
    %89 = arith.addf %88, %87 : vector<2x128xf32>
    %90 = arith.divf %88, %89 : vector<2x128xf32>
    %91 = vector.extract_strided_slice %78 {offsets = [0, 128], sizes = [2, 128], strides = [1, 1]} : vector<2x384xf32> to vector<2x128xf32>
    %92 = vector.extract_strided_slice %82 {offsets = [0, 128], sizes = [2, 128], strides = [1, 1]} : vector<2x384xf32> to vector<2x128xf32>
    %93 = arith.addf %91, %92 : vector<2x128xf32>
    %94 = arith.negf %93 : vector<2x128xf32>
    %95 = math.exp %94 : vector<2x128xf32>
    %cst_33 = arith.constant 1.000000e+00 : f32
    %96 = vector.broadcast %cst_33 : f32 to vector<2x128xf32>
    %97 = arith.addf %96, %95 : vector<2x128xf32>
    %98 = arith.divf %96, %97 : vector<2x128xf32>
    %99 = vector.extract_strided_slice %78 {offsets = [0, 256], sizes = [2, 128], strides = [1, 1]} : vector<2x384xf32> to vector<2x128xf32>
    %100 = vector.extract_strided_slice %82 {offsets = [0, 256], sizes = [2, 128], strides = [1, 1]} : vector<2x384xf32> to vector<2x128xf32>
    %101 = arith.mulf %90, %100 : vector<2x128xf32>
    %102 = arith.addf %99, %101 : vector<2x128xf32>
    %103 = math.tanh %102 : vector<2x128xf32>
    %cst_34 = arith.constant 1.000000e+00 : f32
    %104 = vector.broadcast %cst_34 : f32 to vector<2x128xf32>
    %105 = arith.subf %104, %98 : vector<2x128xf32>
    %106 = arith.mulf %105, %103 : vector<2x128xf32>
    %107 = arith.mulf %98, %42 : vector<2x128xf32>
    %108 = arith.addf %106, %107 : vector<2x128xf32>
    %c0_35 = arith.constant 0 : index
    %c0_36 = arith.constant 0 : index
    %109 = vector.load %arg5[%c0_35, %c0_36] : memref<128x384xf32, #tpu.memory_space<vmem>>, vector<128x384xf32>
    %cst_37 = arith.constant dense<0.000000e+00> : vector<2x384xf32>
    %110 = tpu.matmul %108, %109, %cst_37 {dimension_numbers = #tpu.dot_dimension_numbers<[1], [0], [0], [1], [0, 0, 1, 1], [], []>} : vector<2x128xf32>, vector<128x384xf32>, vector<2x384xf32> -> vector<2x384xf32>
    %111 = vector.broadcast %7 : vector<1x384xf32> to vector<2x384xf32>
    %112 = arith.addf %110, %111 : vector<2x384xf32>
    %c0_38 = arith.constant 0 : index
    %c0_39 = arith.constant 0 : index
    %113 = vector.load %arg7[%c0_38, %c0_39] : memref<128x384xf32, #tpu.memory_space<vmem>>, vector<128x384xf32>
    %cst_40 = arith.constant dense<0.000000e+00> : vector<2x384xf32>
    %114 = tpu.matmul %76, %113, %cst_40 {dimension_numbers = #tpu.dot_dimension_numbers<[1], [0], [0], [1], [0, 0, 1, 1], [], []>} : vector<2x128xf32>, vector<128x384xf32>, vector<2x384xf32> -> vector<2x384xf32>
    %115 = vector.broadcast %8 : vector<1x384xf32> to vector<2x384xf32>
    %116 = arith.addf %114, %115 : vector<2x384xf32>
    %117 = vector.extract_strided_slice %112 {offsets = [0, 0], sizes = [2, 128], strides = [1, 1]} : vector<2x384xf32> to vector<2x128xf32>
    %118 = vector.extract_strided_slice %116 {offsets = [0, 0], sizes = [2, 128], strides = [1, 1]} : vector<2x384xf32> to vector<2x128xf32>
    %119 = arith.addf %117, %118 : vector<2x128xf32>
    %120 = arith.negf %119 : vector<2x128xf32>
    %121 = math.exp %120 : vector<2x128xf32>
    %cst_41 = arith.constant 1.000000e+00 : f32
    %122 = vector.broadcast %cst_41 : f32 to vector<2x128xf32>
    %123 = arith.addf %122, %121 : vector<2x128xf32>
    %124 = arith.divf %122, %123 : vector<2x128xf32>
    %125 = vector.extract_strided_slice %112 {offsets = [0, 128], sizes = [2, 128], strides = [1, 1]} : vector<2x384xf32> to vector<2x128xf32>
    %126 = vector.extract_strided_slice %116 {offsets = [0, 128], sizes = [2, 128], strides = [1, 1]} : vector<2x384xf32> to vector<2x128xf32>
    %127 = arith.addf %125, %126 : vector<2x128xf32>
    %128 = arith.negf %127 : vector<2x128xf32>
    %129 = math.exp %128 : vector<2x128xf32>
    %cst_42 = arith.constant 1.000000e+00 : f32
    %130 = vector.broadcast %cst_42 : f32 to vector<2x128xf32>
    %131 = arith.addf %130, %129 : vector<2x128xf32>
    %132 = arith.divf %130, %131 : vector<2x128xf32>
    %133 = vector.extract_strided_slice %112 {offsets = [0, 256], sizes = [2, 128], strides = [1, 1]} : vector<2x384xf32> to vector<2x128xf32>
    %134 = vector.extract_strided_slice %116 {offsets = [0, 256], sizes = [2, 128], strides = [1, 1]} : vector<2x384xf32> to vector<2x128xf32>
    %135 = arith.mulf %124, %134 : vector<2x128xf32>
    %136 = arith.addf %133, %135 : vector<2x128xf32>
    %137 = math.tanh %136 : vector<2x128xf32>
    %cst_43 = arith.constant 1.000000e+00 : f32
    %138 = vector.broadcast %cst_43 : f32 to vector<2x128xf32>
    %139 = arith.subf %138, %132 : vector<2x128xf32>
    %140 = arith.mulf %139, %137 : vector<2x128xf32>
    %141 = arith.mulf %132, %76 : vector<2x128xf32>
    %142 = arith.addf %140, %141 : vector<2x128xf32>
    %143 = arith.addf %77, %142 : vector<2x128xf32>
    %144 = vector.extract_strided_slice %5 {offsets = [4, 0], sizes = [2, 384], strides = [1, 1]} : vector<16x384xf32> to vector<2x384xf32>
    %c0_44 = arith.constant 0 : index
    %c0_45 = arith.constant 0 : index
    %145 = vector.load %arg3[%c0_44, %c0_45] : memref<128x384xf32, #tpu.memory_space<vmem>>, vector<128x384xf32>
    %cst_46 = arith.constant dense<0.000000e+00> : vector<2x384xf32>
    %146 = tpu.matmul %108, %145, %cst_46 {dimension_numbers = #tpu.dot_dimension_numbers<[1], [0], [0], [1], [0, 0, 1, 1], [], []>} : vector<2x128xf32>, vector<128x384xf32>, vector<2x384xf32> -> vector<2x384xf32>
    %147 = vector.broadcast %6 : vector<1x384xf32> to vector<2x384xf32>
    %148 = arith.addf %146, %147 : vector<2x384xf32>
    %149 = vector.extract_strided_slice %144 {offsets = [0, 0], sizes = [2, 128], strides = [1, 1]} : vector<2x384xf32> to vector<2x128xf32>
    %150 = vector.extract_strided_slice %148 {offsets = [0, 0], sizes = [2, 128], strides = [1, 1]} : vector<2x384xf32> to vector<2x128xf32>
    %151 = arith.addf %149, %150 : vector<2x128xf32>
    %152 = arith.negf %151 : vector<2x128xf32>
    %153 = math.exp %152 : vector<2x128xf32>
    %cst_47 = arith.constant 1.000000e+00 : f32
    %154 = vector.broadcast %cst_47 : f32 to vector<2x128xf32>
    %155 = arith.addf %154, %153 : vector<2x128xf32>
    %156 = arith.divf %154, %155 : vector<2x128xf32>
    %157 = vector.extract_strided_slice %144 {offsets = [0, 128], sizes = [2, 128], strides = [1, 1]} : vector<2x384xf32> to vector<2x128xf32>
    %158 = vector.extract_strided_slice %148 {offsets = [0, 128], sizes = [2, 128], strides = [1, 1]} : vector<2x384xf32> to vector<2x128xf32>
    %159 = arith.addf %157, %158 : vector<2x128xf32>
    %160 = arith.negf %159 : vector<2x128xf32>
    %161 = math.exp %160 : vector<2x128xf32>
    %cst_48 = arith.constant 1.000000e+00 : f32
    %162 = vector.broadcast %cst_48 : f32 to vector<2x128xf32>
    %163 = arith.addf %162, %161 : vector<2x128xf32>
    %164 = arith.divf %162, %163 : vector<2x128xf32>
    %165 = vector.extract_strided_slice %144 {offsets = [0, 256], sizes = [2, 128], strides = [1, 1]} : vector<2x384xf32> to vector<2x128xf32>
    %166 = vector.extract_strided_slice %148 {offsets = [0, 256], sizes = [2, 128], strides = [1, 1]} : vector<2x384xf32> to vector<2x128xf32>
    %167 = arith.mulf %156, %166 : vector<2x128xf32>
    %168 = arith.addf %165, %167 : vector<2x128xf32>
    %169 = math.tanh %168 : vector<2x128xf32>
    %cst_49 = arith.constant 1.000000e+00 : f32
    %170 = vector.broadcast %cst_49 : f32 to vector<2x128xf32>
    %171 = arith.subf %170, %164 : vector<2x128xf32>
    %172 = arith.mulf %171, %169 : vector<2x128xf32>
    %173 = arith.mulf %164, %108 : vector<2x128xf32>
    %174 = arith.addf %172, %173 : vector<2x128xf32>
    %c0_50 = arith.constant 0 : index
    %c0_51 = arith.constant 0 : index
    %175 = vector.load %arg5[%c0_50, %c0_51] : memref<128x384xf32, #tpu.memory_space<vmem>>, vector<128x384xf32>
    %cst_52 = arith.constant dense<0.000000e+00> : vector<2x384xf32>
    %176 = tpu.matmul %174, %175, %cst_52 {dimension_numbers = #tpu.dot_dimension_numbers<[1], [0], [0], [1], [0, 0, 1, 1], [], []>} : vector<2x128xf32>, vector<128x384xf32>, vector<2x384xf32> -> vector<2x384xf32>
    %177 = vector.broadcast %7 : vector<1x384xf32> to vector<2x384xf32>
    %178 = arith.addf %176, %177 : vector<2x384xf32>
    %c0_53 = arith.constant 0 : index
    %c0_54 = arith.constant 0 : index
    %179 = vector.load %arg7[%c0_53, %c0_54] : memref<128x384xf32, #tpu.memory_space<vmem>>, vector<128x384xf32>
    %cst_55 = arith.constant dense<0.000000e+00> : vector<2x384xf32>
    %180 = tpu.matmul %142, %179, %cst_55 {dimension_numbers = #tpu.dot_dimension_numbers<[1], [0], [0], [1], [0, 0, 1, 1], [], []>} : vector<2x128xf32>, vector<128x384xf32>, vector<2x384xf32> -> vector<2x384xf32>
    %181 = vector.broadcast %8 : vector<1x384xf32> to vector<2x384xf32>
    %182 = arith.addf %180, %181 : vector<2x384xf32>
    %183 = vector.extract_strided_slice %178 {offsets = [0, 0], sizes = [2, 128], strides = [1, 1]} : vector<2x384xf32> to vector<2x128xf32>
    %184 = vector.extract_strided_slice %182 {offsets = [0, 0], sizes = [2, 128], strides = [1, 1]} : vector<2x384xf32> to vector<2x128xf32>
    %185 = arith.addf %183, %184 : vector<2x128xf32>
    %186 = arith.negf %185 : vector<2x128xf32>
    %187 = math.exp %186 : vector<2x128xf32>
    %cst_56 = arith.constant 1.000000e+00 : f32
    %188 = vector.broadcast %cst_56 : f32 to vector<2x128xf32>
    %189 = arith.addf %188, %187 : vector<2x128xf32>
    %190 = arith.divf %188, %189 : vector<2x128xf32>
    %191 = vector.extract_strided_slice %178 {offsets = [0, 128], sizes = [2, 128], strides = [1, 1]} : vector<2x384xf32> to vector<2x128xf32>
    %192 = vector.extract_strided_slice %182 {offsets = [0, 128], sizes = [2, 128], strides = [1, 1]} : vector<2x384xf32> to vector<2x128xf32>
    %193 = arith.addf %191, %192 : vector<2x128xf32>
    %194 = arith.negf %193 : vector<2x128xf32>
    %195 = math.exp %194 : vector<2x128xf32>
    %cst_57 = arith.constant 1.000000e+00 : f32
    %196 = vector.broadcast %cst_57 : f32 to vector<2x128xf32>
    %197 = arith.addf %196, %195 : vector<2x128xf32>
    %198 = arith.divf %196, %197 : vector<2x128xf32>
    %199 = vector.extract_strided_slice %178 {offsets = [0, 256], sizes = [2, 128], strides = [1, 1]} : vector<2x384xf32> to vector<2x128xf32>
    %200 = vector.extract_strided_slice %182 {offsets = [0, 256], sizes = [2, 128], strides = [1, 1]} : vector<2x384xf32> to vector<2x128xf32>
    %201 = arith.mulf %190, %200 : vector<2x128xf32>
    %202 = arith.addf %199, %201 : vector<2x128xf32>
    %203 = math.tanh %202 : vector<2x128xf32>
    %cst_58 = arith.constant 1.000000e+00 : f32
    %204 = vector.broadcast %cst_58 : f32 to vector<2x128xf32>
    %205 = arith.subf %204, %198 : vector<2x128xf32>
    %206 = arith.mulf %205, %203 : vector<2x128xf32>
    %207 = arith.mulf %198, %142 : vector<2x128xf32>
    %208 = arith.addf %206, %207 : vector<2x128xf32>
    %209 = arith.addf %143, %208 : vector<2x128xf32>
    %210 = vector.extract_strided_slice %5 {offsets = [6, 0], sizes = [2, 384], strides = [1, 1]} : vector<16x384xf32> to vector<2x384xf32>
    %c0_59 = arith.constant 0 : index
    %c0_60 = arith.constant 0 : index
    %211 = vector.load %arg3[%c0_59, %c0_60] : memref<128x384xf32, #tpu.memory_space<vmem>>, vector<128x384xf32>
    %cst_61 = arith.constant dense<0.000000e+00> : vector<2x384xf32>
    %212 = tpu.matmul %174, %211, %cst_61 {dimension_numbers = #tpu.dot_dimension_numbers<[1], [0], [0], [1], [0, 0, 1, 1], [], []>} : vector<2x128xf32>, vector<128x384xf32>, vector<2x384xf32> -> vector<2x384xf32>
    %213 = vector.broadcast %6 : vector<1x384xf32> to vector<2x384xf32>
    %214 = arith.addf %212, %213 : vector<2x384xf32>
    %215 = vector.extract_strided_slice %210 {offsets = [0, 0], sizes = [2, 128], strides = [1, 1]} : vector<2x384xf32> to vector<2x128xf32>
    %216 = vector.extract_strided_slice %214 {offsets = [0, 0], sizes = [2, 128], strides = [1, 1]} : vector<2x384xf32> to vector<2x128xf32>
    %217 = arith.addf %215, %216 : vector<2x128xf32>
    %218 = arith.negf %217 : vector<2x128xf32>
    %219 = math.exp %218 : vector<2x128xf32>
    %cst_62 = arith.constant 1.000000e+00 : f32
    %220 = vector.broadcast %cst_62 : f32 to vector<2x128xf32>
    %221 = arith.addf %220, %219 : vector<2x128xf32>
    %222 = arith.divf %220, %221 : vector<2x128xf32>
    %223 = vector.extract_strided_slice %210 {offsets = [0, 128], sizes = [2, 128], strides = [1, 1]} : vector<2x384xf32> to vector<2x128xf32>
    %224 = vector.extract_strided_slice %214 {offsets = [0, 128], sizes = [2, 128], strides = [1, 1]} : vector<2x384xf32> to vector<2x128xf32>
    %225 = arith.addf %223, %224 : vector<2x128xf32>
    %226 = arith.negf %225 : vector<2x128xf32>
    %227 = math.exp %226 : vector<2x128xf32>
    %cst_63 = arith.constant 1.000000e+00 : f32
    %228 = vector.broadcast %cst_63 : f32 to vector<2x128xf32>
    %229 = arith.addf %228, %227 : vector<2x128xf32>
    %230 = arith.divf %228, %229 : vector<2x128xf32>
    %231 = vector.extract_strided_slice %210 {offsets = [0, 256], sizes = [2, 128], strides = [1, 1]} : vector<2x384xf32> to vector<2x128xf32>
    %232 = vector.extract_strided_slice %214 {offsets = [0, 256], sizes = [2, 128], strides = [1, 1]} : vector<2x384xf32> to vector<2x128xf32>
    %233 = arith.mulf %222, %232 : vector<2x128xf32>
    %234 = arith.addf %231, %233 : vector<2x128xf32>
    %235 = math.tanh %234 : vector<2x128xf32>
    %cst_64 = arith.constant 1.000000e+00 : f32
    %236 = vector.broadcast %cst_64 : f32 to vector<2x128xf32>
    %237 = arith.subf %236, %230 : vector<2x128xf32>
    %238 = arith.mulf %237, %235 : vector<2x128xf32>
    %239 = arith.mulf %230, %174 : vector<2x128xf32>
    %240 = arith.addf %238, %239 : vector<2x128xf32>
    %c0_65 = arith.constant 0 : index
    %c0_66 = arith.constant 0 : index
    %241 = vector.load %arg5[%c0_65, %c0_66] : memref<128x384xf32, #tpu.memory_space<vmem>>, vector<128x384xf32>
    %cst_67 = arith.constant dense<0.000000e+00> : vector<2x384xf32>
    %242 = tpu.matmul %240, %241, %cst_67 {dimension_numbers = #tpu.dot_dimension_numbers<[1], [0], [0], [1], [0, 0, 1, 1], [], []>} : vector<2x128xf32>, vector<128x384xf32>, vector<2x384xf32> -> vector<2x384xf32>
    %243 = vector.broadcast %7 : vector<1x384xf32> to vector<2x384xf32>
    %244 = arith.addf %242, %243 : vector<2x384xf32>
    %c0_68 = arith.constant 0 : index
    %c0_69 = arith.constant 0 : index
    %245 = vector.load %arg7[%c0_68, %c0_69] : memref<128x384xf32, #tpu.memory_space<vmem>>, vector<128x384xf32>
    %cst_70 = arith.constant dense<0.000000e+00> : vector<2x384xf32>
    %246 = tpu.matmul %208, %245, %cst_70 {dimension_numbers = #tpu.dot_dimension_numbers<[1], [0], [0], [1], [0, 0, 1, 1], [], []>} : vector<2x128xf32>, vector<128x384xf32>, vector<2x384xf32> -> vector<2x384xf32>
    %247 = vector.broadcast %8 : vector<1x384xf32> to vector<2x384xf32>
    %248 = arith.addf %246, %247 : vector<2x384xf32>
    %249 = vector.extract_strided_slice %244 {offsets = [0, 0], sizes = [2, 128], strides = [1, 1]} : vector<2x384xf32> to vector<2x128xf32>
    %250 = vector.extract_strided_slice %248 {offsets = [0, 0], sizes = [2, 128], strides = [1, 1]} : vector<2x384xf32> to vector<2x128xf32>
    %251 = arith.addf %249, %250 : vector<2x128xf32>
    %252 = arith.negf %251 : vector<2x128xf32>
    %253 = math.exp %252 : vector<2x128xf32>
    %cst_71 = arith.constant 1.000000e+00 : f32
    %254 = vector.broadcast %cst_71 : f32 to vector<2x128xf32>
    %255 = arith.addf %254, %253 : vector<2x128xf32>
    %256 = arith.divf %254, %255 : vector<2x128xf32>
    %257 = vector.extract_strided_slice %244 {offsets = [0, 128], sizes = [2, 128], strides = [1, 1]} : vector<2x384xf32> to vector<2x128xf32>
    %258 = vector.extract_strided_slice %248 {offsets = [0, 128], sizes = [2, 128], strides = [1, 1]} : vector<2x384xf32> to vector<2x128xf32>
    %259 = arith.addf %257, %258 : vector<2x128xf32>
    %260 = arith.negf %259 : vector<2x128xf32>
    %261 = math.exp %260 : vector<2x128xf32>
    %cst_72 = arith.constant 1.000000e+00 : f32
    %262 = vector.broadcast %cst_72 : f32 to vector<2x128xf32>
    %263 = arith.addf %262, %261 : vector<2x128xf32>
    %264 = arith.divf %262, %263 : vector<2x128xf32>
    %265 = vector.extract_strided_slice %244 {offsets = [0, 256], sizes = [2, 128], strides = [1, 1]} : vector<2x384xf32> to vector<2x128xf32>
    %266 = vector.extract_strided_slice %248 {offsets = [0, 256], sizes = [2, 128], strides = [1, 1]} : vector<2x384xf32> to vector<2x128xf32>
    %267 = arith.mulf %256, %266 : vector<2x128xf32>
    %268 = arith.addf %265, %267 : vector<2x128xf32>
    %269 = math.tanh %268 : vector<2x128xf32>
    %cst_73 = arith.constant 1.000000e+00 : f32
    %270 = vector.broadcast %cst_73 : f32 to vector<2x128xf32>
    %271 = arith.subf %270, %264 : vector<2x128xf32>
    %272 = arith.mulf %271, %269 : vector<2x128xf32>
    %273 = arith.mulf %264, %208 : vector<2x128xf32>
    %274 = arith.addf %272, %273 : vector<2x128xf32>
    %275 = arith.addf %209, %274 : vector<2x128xf32>
    %276 = vector.extract_strided_slice %5 {offsets = [8, 0], sizes = [2, 384], strides = [1, 1]} : vector<16x384xf32> to vector<2x384xf32>
    %c0_74 = arith.constant 0 : index
    %c0_75 = arith.constant 0 : index
    %277 = vector.load %arg3[%c0_74, %c0_75] : memref<128x384xf32, #tpu.memory_space<vmem>>, vector<128x384xf32>
    %cst_76 = arith.constant dense<0.000000e+00> : vector<2x384xf32>
    %278 = tpu.matmul %240, %277, %cst_76 {dimension_numbers = #tpu.dot_dimension_numbers<[1], [0], [0], [1], [0, 0, 1, 1], [], []>} : vector<2x128xf32>, vector<128x384xf32>, vector<2x384xf32> -> vector<2x384xf32>
    %279 = vector.broadcast %6 : vector<1x384xf32> to vector<2x384xf32>
    %280 = arith.addf %278, %279 : vector<2x384xf32>
    %281 = vector.extract_strided_slice %276 {offsets = [0, 0], sizes = [2, 128], strides = [1, 1]} : vector<2x384xf32> to vector<2x128xf32>
    %282 = vector.extract_strided_slice %280 {offsets = [0, 0], sizes = [2, 128], strides = [1, 1]} : vector<2x384xf32> to vector<2x128xf32>
    %283 = arith.addf %281, %282 : vector<2x128xf32>
    %284 = arith.negf %283 : vector<2x128xf32>
    %285 = math.exp %284 : vector<2x128xf32>
    %cst_77 = arith.constant 1.000000e+00 : f32
    %286 = vector.broadcast %cst_77 : f32 to vector<2x128xf32>
    %287 = arith.addf %286, %285 : vector<2x128xf32>
    %288 = arith.divf %286, %287 : vector<2x128xf32>
    %289 = vector.extract_strided_slice %276 {offsets = [0, 128], sizes = [2, 128], strides = [1, 1]} : vector<2x384xf32> to vector<2x128xf32>
    %290 = vector.extract_strided_slice %280 {offsets = [0, 128], sizes = [2, 128], strides = [1, 1]} : vector<2x384xf32> to vector<2x128xf32>
    %291 = arith.addf %289, %290 : vector<2x128xf32>
    %292 = arith.negf %291 : vector<2x128xf32>
    %293 = math.exp %292 : vector<2x128xf32>
    %cst_78 = arith.constant 1.000000e+00 : f32
    %294 = vector.broadcast %cst_78 : f32 to vector<2x128xf32>
    %295 = arith.addf %294, %293 : vector<2x128xf32>
    %296 = arith.divf %294, %295 : vector<2x128xf32>
    %297 = vector.extract_strided_slice %276 {offsets = [0, 256], sizes = [2, 128], strides = [1, 1]} : vector<2x384xf32> to vector<2x128xf32>
    %298 = vector.extract_strided_slice %280 {offsets = [0, 256], sizes = [2, 128], strides = [1, 1]} : vector<2x384xf32> to vector<2x128xf32>
    %299 = arith.mulf %288, %298 : vector<2x128xf32>
    %300 = arith.addf %297, %299 : vector<2x128xf32>
    %301 = math.tanh %300 : vector<2x128xf32>
    %cst_79 = arith.constant 1.000000e+00 : f32
    %302 = vector.broadcast %cst_79 : f32 to vector<2x128xf32>
    %303 = arith.subf %302, %296 : vector<2x128xf32>
    %304 = arith.mulf %303, %301 : vector<2x128xf32>
    %305 = arith.mulf %296, %240 : vector<2x128xf32>
    %306 = arith.addf %304, %305 : vector<2x128xf32>
    %c0_80 = arith.constant 0 : index
    %c0_81 = arith.constant 0 : index
    %307 = vector.load %arg5[%c0_80, %c0_81] : memref<128x384xf32, #tpu.memory_space<vmem>>, vector<128x384xf32>
    %cst_82 = arith.constant dense<0.000000e+00> : vector<2x384xf32>
    %308 = tpu.matmul %306, %307, %cst_82 {dimension_numbers = #tpu.dot_dimension_numbers<[1], [0], [0], [1], [0, 0, 1, 1], [], []>} : vector<2x128xf32>, vector<128x384xf32>, vector<2x384xf32> -> vector<2x384xf32>
    %309 = vector.broadcast %7 : vector<1x384xf32> to vector<2x384xf32>
    %310 = arith.addf %308, %309 : vector<2x384xf32>
    %c0_83 = arith.constant 0 : index
    %c0_84 = arith.constant 0 : index
    %311 = vector.load %arg7[%c0_83, %c0_84] : memref<128x384xf32, #tpu.memory_space<vmem>>, vector<128x384xf32>
    %cst_85 = arith.constant dense<0.000000e+00> : vector<2x384xf32>
    %312 = tpu.matmul %274, %311, %cst_85 {dimension_numbers = #tpu.dot_dimension_numbers<[1], [0], [0], [1], [0, 0, 1, 1], [], []>} : vector<2x128xf32>, vector<128x384xf32>, vector<2x384xf32> -> vector<2x384xf32>
    %313 = vector.broadcast %8 : vector<1x384xf32> to vector<2x384xf32>
    %314 = arith.addf %312, %313 : vector<2x384xf32>
    %315 = vector.extract_strided_slice %310 {offsets = [0, 0], sizes = [2, 128], strides = [1, 1]} : vector<2x384xf32> to vector<2x128xf32>
    %316 = vector.extract_strided_slice %314 {offsets = [0, 0], sizes = [2, 128], strides = [1, 1]} : vector<2x384xf32> to vector<2x128xf32>
    %317 = arith.addf %315, %316 : vector<2x128xf32>
    %318 = arith.negf %317 : vector<2x128xf32>
    %319 = math.exp %318 : vector<2x128xf32>
    %cst_86 = arith.constant 1.000000e+00 : f32
    %320 = vector.broadcast %cst_86 : f32 to vector<2x128xf32>
    %321 = arith.addf %320, %319 : vector<2x128xf32>
    %322 = arith.divf %320, %321 : vector<2x128xf32>
    %323 = vector.extract_strided_slice %310 {offsets = [0, 128], sizes = [2, 128], strides = [1, 1]} : vector<2x384xf32> to vector<2x128xf32>
    %324 = vector.extract_strided_slice %314 {offsets = [0, 128], sizes = [2, 128], strides = [1, 1]} : vector<2x384xf32> to vector<2x128xf32>
    %325 = arith.addf %323, %324 : vector<2x128xf32>
    %326 = arith.negf %325 : vector<2x128xf32>
    %327 = math.exp %326 : vector<2x128xf32>
    %cst_87 = arith.constant 1.000000e+00 : f32
    %328 = vector.broadcast %cst_87 : f32 to vector<2x128xf32>
    %329 = arith.addf %328, %327 : vector<2x128xf32>
    %330 = arith.divf %328, %329 : vector<2x128xf32>
    %331 = vector.extract_strided_slice %310 {offsets = [0, 256], sizes = [2, 128], strides = [1, 1]} : vector<2x384xf32> to vector<2x128xf32>
    %332 = vector.extract_strided_slice %314 {offsets = [0, 256], sizes = [2, 128], strides = [1, 1]} : vector<2x384xf32> to vector<2x128xf32>
    %333 = arith.mulf %322, %332 : vector<2x128xf32>
    %334 = arith.addf %331, %333 : vector<2x128xf32>
    %335 = math.tanh %334 : vector<2x128xf32>
    %cst_88 = arith.constant 1.000000e+00 : f32
    %336 = vector.broadcast %cst_88 : f32 to vector<2x128xf32>
    %337 = arith.subf %336, %330 : vector<2x128xf32>
    %338 = arith.mulf %337, %335 : vector<2x128xf32>
    %339 = arith.mulf %330, %274 : vector<2x128xf32>
    %340 = arith.addf %338, %339 : vector<2x128xf32>
    %341 = arith.addf %275, %340 : vector<2x128xf32>
    %342 = vector.extract_strided_slice %5 {offsets = [10, 0], sizes = [2, 384], strides = [1, 1]} : vector<16x384xf32> to vector<2x384xf32>
    %c0_89 = arith.constant 0 : index
    %c0_90 = arith.constant 0 : index
    %343 = vector.load %arg3[%c0_89, %c0_90] : memref<128x384xf32, #tpu.memory_space<vmem>>, vector<128x384xf32>
    %cst_91 = arith.constant dense<0.000000e+00> : vector<2x384xf32>
    %344 = tpu.matmul %306, %343, %cst_91 {dimension_numbers = #tpu.dot_dimension_numbers<[1], [0], [0], [1], [0, 0, 1, 1], [], []>} : vector<2x128xf32>, vector<128x384xf32>, vector<2x384xf32> -> vector<2x384xf32>
    %345 = vector.broadcast %6 : vector<1x384xf32> to vector<2x384xf32>
    %346 = arith.addf %344, %345 : vector<2x384xf32>
    %347 = vector.extract_strided_slice %342 {offsets = [0, 0], sizes = [2, 128], strides = [1, 1]} : vector<2x384xf32> to vector<2x128xf32>
    %348 = vector.extract_strided_slice %346 {offsets = [0, 0], sizes = [2, 128], strides = [1, 1]} : vector<2x384xf32> to vector<2x128xf32>
    %349 = arith.addf %347, %348 : vector<2x128xf32>
    %350 = arith.negf %349 : vector<2x128xf32>
    %351 = math.exp %350 : vector<2x128xf32>
    %cst_92 = arith.constant 1.000000e+00 : f32
    %352 = vector.broadcast %cst_92 : f32 to vector<2x128xf32>
    %353 = arith.addf %352, %351 : vector<2x128xf32>
    %354 = arith.divf %352, %353 : vector<2x128xf32>
    %355 = vector.extract_strided_slice %342 {offsets = [0, 128], sizes = [2, 128], strides = [1, 1]} : vector<2x384xf32> to vector<2x128xf32>
    %356 = vector.extract_strided_slice %346 {offsets = [0, 128], sizes = [2, 128], strides = [1, 1]} : vector<2x384xf32> to vector<2x128xf32>
    %357 = arith.addf %355, %356 : vector<2x128xf32>
    %358 = arith.negf %357 : vector<2x128xf32>
    %359 = math.exp %358 : vector<2x128xf32>
    %cst_93 = arith.constant 1.000000e+00 : f32
    %360 = vector.broadcast %cst_93 : f32 to vector<2x128xf32>
    %361 = arith.addf %360, %359 : vector<2x128xf32>
    %362 = arith.divf %360, %361 : vector<2x128xf32>
    %363 = vector.extract_strided_slice %342 {offsets = [0, 256], sizes = [2, 128], strides = [1, 1]} : vector<2x384xf32> to vector<2x128xf32>
    %364 = vector.extract_strided_slice %346 {offsets = [0, 256], sizes = [2, 128], strides = [1, 1]} : vector<2x384xf32> to vector<2x128xf32>
    %365 = arith.mulf %354, %364 : vector<2x128xf32>
    %366 = arith.addf %363, %365 : vector<2x128xf32>
    %367 = math.tanh %366 : vector<2x128xf32>
    %cst_94 = arith.constant 1.000000e+00 : f32
    %368 = vector.broadcast %cst_94 : f32 to vector<2x128xf32>
    %369 = arith.subf %368, %362 : vector<2x128xf32>
    %370 = arith.mulf %369, %367 : vector<2x128xf32>
    %371 = arith.mulf %362, %306 : vector<2x128xf32>
    %372 = arith.addf %370, %371 : vector<2x128xf32>
    %c0_95 = arith.constant 0 : index
    %c0_96 = arith.constant 0 : index
    %373 = vector.load %arg5[%c0_95, %c0_96] : memref<128x384xf32, #tpu.memory_space<vmem>>, vector<128x384xf32>
    %cst_97 = arith.constant dense<0.000000e+00> : vector<2x384xf32>
    %374 = tpu.matmul %372, %373, %cst_97 {dimension_numbers = #tpu.dot_dimension_numbers<[1], [0], [0], [1], [0, 0, 1, 1], [], []>} : vector<2x128xf32>, vector<128x384xf32>, vector<2x384xf32> -> vector<2x384xf32>
    %375 = vector.broadcast %7 : vector<1x384xf32> to vector<2x384xf32>
    %376 = arith.addf %374, %375 : vector<2x384xf32>
    %c0_98 = arith.constant 0 : index
    %c0_99 = arith.constant 0 : index
    %377 = vector.load %arg7[%c0_98, %c0_99] : memref<128x384xf32, #tpu.memory_space<vmem>>, vector<128x384xf32>
    %cst_100 = arith.constant dense<0.000000e+00> : vector<2x384xf32>
    %378 = tpu.matmul %340, %377, %cst_100 {dimension_numbers = #tpu.dot_dimension_numbers<[1], [0], [0], [1], [0, 0, 1, 1], [], []>} : vector<2x128xf32>, vector<128x384xf32>, vector<2x384xf32> -> vector<2x384xf32>
    %379 = vector.broadcast %8 : vector<1x384xf32> to vector<2x384xf32>
    %380 = arith.addf %378, %379 : vector<2x384xf32>
    %381 = vector.extract_strided_slice %376 {offsets = [0, 0], sizes = [2, 128], strides = [1, 1]} : vector<2x384xf32> to vector<2x128xf32>
    %382 = vector.extract_strided_slice %380 {offsets = [0, 0], sizes = [2, 128], strides = [1, 1]} : vector<2x384xf32> to vector<2x128xf32>
    %383 = arith.addf %381, %382 : vector<2x128xf32>
    %384 = arith.negf %383 : vector<2x128xf32>
    %385 = math.exp %384 : vector<2x128xf32>
    %cst_101 = arith.constant 1.000000e+00 : f32
    %386 = vector.broadcast %cst_101 : f32 to vector<2x128xf32>
    %387 = arith.addf %386, %385 : vector<2x128xf32>
    %388 = arith.divf %386, %387 : vector<2x128xf32>
    %389 = vector.extract_strided_slice %376 {offsets = [0, 128], sizes = [2, 128], strides = [1, 1]} : vector<2x384xf32> to vector<2x128xf32>
    %390 = vector.extract_strided_slice %380 {offsets = [0, 128], sizes = [2, 128], strides = [1, 1]} : vector<2x384xf32> to vector<2x128xf32>
    %391 = arith.addf %389, %390 : vector<2x128xf32>
    %392 = arith.negf %391 : vector<2x128xf32>
    %393 = math.exp %392 : vector<2x128xf32>
    %cst_102 = arith.constant 1.000000e+00 : f32
    %394 = vector.broadcast %cst_102 : f32 to vector<2x128xf32>
    %395 = arith.addf %394, %393 : vector<2x128xf32>
    %396 = arith.divf %394, %395 : vector<2x128xf32>
    %397 = vector.extract_strided_slice %376 {offsets = [0, 256], sizes = [2, 128], strides = [1, 1]} : vector<2x384xf32> to vector<2x128xf32>
    %398 = vector.extract_strided_slice %380 {offsets = [0, 256], sizes = [2, 128], strides = [1, 1]} : vector<2x384xf32> to vector<2x128xf32>
    %399 = arith.mulf %388, %398 : vector<2x128xf32>
    %400 = arith.addf %397, %399 : vector<2x128xf32>
    %401 = math.tanh %400 : vector<2x128xf32>
    %cst_103 = arith.constant 1.000000e+00 : f32
    %402 = vector.broadcast %cst_103 : f32 to vector<2x128xf32>
    %403 = arith.subf %402, %396 : vector<2x128xf32>
    %404 = arith.mulf %403, %401 : vector<2x128xf32>
    %405 = arith.mulf %396, %340 : vector<2x128xf32>
    %406 = arith.addf %404, %405 : vector<2x128xf32>
    %407 = arith.addf %341, %406 : vector<2x128xf32>
    %408 = vector.extract_strided_slice %5 {offsets = [12, 0], sizes = [2, 384], strides = [1, 1]} : vector<16x384xf32> to vector<2x384xf32>
    %c0_104 = arith.constant 0 : index
    %c0_105 = arith.constant 0 : index
    %409 = vector.load %arg3[%c0_104, %c0_105] : memref<128x384xf32, #tpu.memory_space<vmem>>, vector<128x384xf32>
    %cst_106 = arith.constant dense<0.000000e+00> : vector<2x384xf32>
    %410 = tpu.matmul %372, %409, %cst_106 {dimension_numbers = #tpu.dot_dimension_numbers<[1], [0], [0], [1], [0, 0, 1, 1], [], []>} : vector<2x128xf32>, vector<128x384xf32>, vector<2x384xf32> -> vector<2x384xf32>
    %411 = vector.broadcast %6 : vector<1x384xf32> to vector<2x384xf32>
    %412 = arith.addf %410, %411 : vector<2x384xf32>
    %413 = vector.extract_strided_slice %408 {offsets = [0, 0], sizes = [2, 128], strides = [1, 1]} : vector<2x384xf32> to vector<2x128xf32>
    %414 = vector.extract_strided_slice %412 {offsets = [0, 0], sizes = [2, 128], strides = [1, 1]} : vector<2x384xf32> to vector<2x128xf32>
    %415 = arith.addf %413, %414 : vector<2x128xf32>
    %416 = arith.negf %415 : vector<2x128xf32>
    %417 = math.exp %416 : vector<2x128xf32>
    %cst_107 = arith.constant 1.000000e+00 : f32
    %418 = vector.broadcast %cst_107 : f32 to vector<2x128xf32>
    %419 = arith.addf %418, %417 : vector<2x128xf32>
    %420 = arith.divf %418, %419 : vector<2x128xf32>
    %421 = vector.extract_strided_slice %408 {offsets = [0, 128], sizes = [2, 128], strides = [1, 1]} : vector<2x384xf32> to vector<2x128xf32>
    %422 = vector.extract_strided_slice %412 {offsets = [0, 128], sizes = [2, 128], strides = [1, 1]} : vector<2x384xf32> to vector<2x128xf32>
    %423 = arith.addf %421, %422 : vector<2x128xf32>
    %424 = arith.negf %423 : vector<2x128xf32>
    %425 = math.exp %424 : vector<2x128xf32>
    %cst_108 = arith.constant 1.000000e+00 : f32
    %426 = vector.broadcast %cst_108 : f32 to vector<2x128xf32>
    %427 = arith.addf %426, %425 : vector<2x128xf32>
    %428 = arith.divf %426, %427 : vector<2x128xf32>
    %429 = vector.extract_strided_slice %408 {offsets = [0, 256], sizes = [2, 128], strides = [1, 1]} : vector<2x384xf32> to vector<2x128xf32>
    %430 = vector.extract_strided_slice %412 {offsets = [0, 256], sizes = [2, 128], strides = [1, 1]} : vector<2x384xf32> to vector<2x128xf32>
    %431 = arith.mulf %420, %430 : vector<2x128xf32>
    %432 = arith.addf %429, %431 : vector<2x128xf32>
    %433 = math.tanh %432 : vector<2x128xf32>
    %cst_109 = arith.constant 1.000000e+00 : f32
    %434 = vector.broadcast %cst_109 : f32 to vector<2x128xf32>
    %435 = arith.subf %434, %428 : vector<2x128xf32>
    %436 = arith.mulf %435, %433 : vector<2x128xf32>
    %437 = arith.mulf %428, %372 : vector<2x128xf32>
    %438 = arith.addf %436, %437 : vector<2x128xf32>
    %c0_110 = arith.constant 0 : index
    %c0_111 = arith.constant 0 : index
    %439 = vector.load %arg5[%c0_110, %c0_111] : memref<128x384xf32, #tpu.memory_space<vmem>>, vector<128x384xf32>
    %cst_112 = arith.constant dense<0.000000e+00> : vector<2x384xf32>
    %440 = tpu.matmul %438, %439, %cst_112 {dimension_numbers = #tpu.dot_dimension_numbers<[1], [0], [0], [1], [0, 0, 1, 1], [], []>} : vector<2x128xf32>, vector<128x384xf32>, vector<2x384xf32> -> vector<2x384xf32>
    %441 = vector.broadcast %7 : vector<1x384xf32> to vector<2x384xf32>
    %442 = arith.addf %440, %441 : vector<2x384xf32>
    %c0_113 = arith.constant 0 : index
    %c0_114 = arith.constant 0 : index
    %443 = vector.load %arg7[%c0_113, %c0_114] : memref<128x384xf32, #tpu.memory_space<vmem>>, vector<128x384xf32>
    %cst_115 = arith.constant dense<0.000000e+00> : vector<2x384xf32>
    %444 = tpu.matmul %406, %443, %cst_115 {dimension_numbers = #tpu.dot_dimension_numbers<[1], [0], [0], [1], [0, 0, 1, 1], [], []>} : vector<2x128xf32>, vector<128x384xf32>, vector<2x384xf32> -> vector<2x384xf32>
    %445 = vector.broadcast %8 : vector<1x384xf32> to vector<2x384xf32>
    %446 = arith.addf %444, %445 : vector<2x384xf32>
    %447 = vector.extract_strided_slice %442 {offsets = [0, 0], sizes = [2, 128], strides = [1, 1]} : vector<2x384xf32> to vector<2x128xf32>
    %448 = vector.extract_strided_slice %446 {offsets = [0, 0], sizes = [2, 128], strides = [1, 1]} : vector<2x384xf32> to vector<2x128xf32>
    %449 = arith.addf %447, %448 : vector<2x128xf32>
    %450 = arith.negf %449 : vector<2x128xf32>
    %451 = math.exp %450 : vector<2x128xf32>
    %cst_116 = arith.constant 1.000000e+00 : f32
    %452 = vector.broadcast %cst_116 : f32 to vector<2x128xf32>
    %453 = arith.addf %452, %451 : vector<2x128xf32>
    %454 = arith.divf %452, %453 : vector<2x128xf32>
    %455 = vector.extract_strided_slice %442 {offsets = [0, 128], sizes = [2, 128], strides = [1, 1]} : vector<2x384xf32> to vector<2x128xf32>
    %456 = vector.extract_strided_slice %446 {offsets = [0, 128], sizes = [2, 128], strides = [1, 1]} : vector<2x384xf32> to vector<2x128xf32>
    %457 = arith.addf %455, %456 : vector<2x128xf32>
    %458 = arith.negf %457 : vector<2x128xf32>
    %459 = math.exp %458 : vector<2x128xf32>
    %cst_117 = arith.constant 1.000000e+00 : f32
    %460 = vector.broadcast %cst_117 : f32 to vector<2x128xf32>
    %461 = arith.addf %460, %459 : vector<2x128xf32>
    %462 = arith.divf %460, %461 : vector<2x128xf32>
    %463 = vector.extract_strided_slice %442 {offsets = [0, 256], sizes = [2, 128], strides = [1, 1]} : vector<2x384xf32> to vector<2x128xf32>
    %464 = vector.extract_strided_slice %446 {offsets = [0, 256], sizes = [2, 128], strides = [1, 1]} : vector<2x384xf32> to vector<2x128xf32>
    %465 = arith.mulf %454, %464 : vector<2x128xf32>
    %466 = arith.addf %463, %465 : vector<2x128xf32>
    %467 = math.tanh %466 : vector<2x128xf32>
    %cst_118 = arith.constant 1.000000e+00 : f32
    %468 = vector.broadcast %cst_118 : f32 to vector<2x128xf32>
    %469 = arith.subf %468, %462 : vector<2x128xf32>
    %470 = arith.mulf %469, %467 : vector<2x128xf32>
    %471 = arith.mulf %462, %406 : vector<2x128xf32>
    %472 = arith.addf %470, %471 : vector<2x128xf32>
    %473 = arith.addf %407, %472 : vector<2x128xf32>
    %474 = vector.extract_strided_slice %5 {offsets = [14, 0], sizes = [2, 384], strides = [1, 1]} : vector<16x384xf32> to vector<2x384xf32>
    %c0_119 = arith.constant 0 : index
    %c0_120 = arith.constant 0 : index
    %475 = vector.load %arg3[%c0_119, %c0_120] : memref<128x384xf32, #tpu.memory_space<vmem>>, vector<128x384xf32>
    %cst_121 = arith.constant dense<0.000000e+00> : vector<2x384xf32>
    %476 = tpu.matmul %438, %475, %cst_121 {dimension_numbers = #tpu.dot_dimension_numbers<[1], [0], [0], [1], [0, 0, 1, 1], [], []>} : vector<2x128xf32>, vector<128x384xf32>, vector<2x384xf32> -> vector<2x384xf32>
    %477 = vector.broadcast %6 : vector<1x384xf32> to vector<2x384xf32>
    %478 = arith.addf %476, %477 : vector<2x384xf32>
    %479 = vector.extract_strided_slice %474 {offsets = [0, 0], sizes = [2, 128], strides = [1, 1]} : vector<2x384xf32> to vector<2x128xf32>
    %480 = vector.extract_strided_slice %478 {offsets = [0, 0], sizes = [2, 128], strides = [1, 1]} : vector<2x384xf32> to vector<2x128xf32>
    %481 = arith.addf %479, %480 : vector<2x128xf32>
    %482 = arith.negf %481 : vector<2x128xf32>
    %483 = math.exp %482 : vector<2x128xf32>
    %cst_122 = arith.constant 1.000000e+00 : f32
    %484 = vector.broadcast %cst_122 : f32 to vector<2x128xf32>
    %485 = arith.addf %484, %483 : vector<2x128xf32>
    %486 = arith.divf %484, %485 : vector<2x128xf32>
    %487 = vector.extract_strided_slice %474 {offsets = [0, 128], sizes = [2, 128], strides = [1, 1]} : vector<2x384xf32> to vector<2x128xf32>
    %488 = vector.extract_strided_slice %478 {offsets = [0, 128], sizes = [2, 128], strides = [1, 1]} : vector<2x384xf32> to vector<2x128xf32>
    %489 = arith.addf %487, %488 : vector<2x128xf32>
    %490 = arith.negf %489 : vector<2x128xf32>
    %491 = math.exp %490 : vector<2x128xf32>
    %cst_123 = arith.constant 1.000000e+00 : f32
    %492 = vector.broadcast %cst_123 : f32 to vector<2x128xf32>
    %493 = arith.addf %492, %491 : vector<2x128xf32>
    %494 = arith.divf %492, %493 : vector<2x128xf32>
    %495 = vector.extract_strided_slice %474 {offsets = [0, 256], sizes = [2, 128], strides = [1, 1]} : vector<2x384xf32> to vector<2x128xf32>
    %496 = vector.extract_strided_slice %478 {offsets = [0, 256], sizes = [2, 128], strides = [1, 1]} : vector<2x384xf32> to vector<2x128xf32>
    %497 = arith.mulf %486, %496 : vector<2x128xf32>
    %498 = arith.addf %495, %497 : vector<2x128xf32>
    %499 = math.tanh %498 : vector<2x128xf32>
    %cst_124 = arith.constant 1.000000e+00 : f32
    %500 = vector.broadcast %cst_124 : f32 to vector<2x128xf32>
    %501 = arith.subf %500, %494 : vector<2x128xf32>
    %502 = arith.mulf %501, %499 : vector<2x128xf32>
    %503 = arith.mulf %494, %438 : vector<2x128xf32>
    %504 = arith.addf %502, %503 : vector<2x128xf32>
    %c0_125 = arith.constant 0 : index
    %c0_126 = arith.constant 0 : index
    %505 = vector.load %arg5[%c0_125, %c0_126] : memref<128x384xf32, #tpu.memory_space<vmem>>, vector<128x384xf32>
    %cst_127 = arith.constant dense<0.000000e+00> : vector<2x384xf32>
    %506 = tpu.matmul %504, %505, %cst_127 {dimension_numbers = #tpu.dot_dimension_numbers<[1], [0], [0], [1], [0, 0, 1, 1], [], []>} : vector<2x128xf32>, vector<128x384xf32>, vector<2x384xf32> -> vector<2x384xf32>
    %507 = vector.broadcast %7 : vector<1x384xf32> to vector<2x384xf32>
    %508 = arith.addf %506, %507 : vector<2x384xf32>
    %c0_128 = arith.constant 0 : index
    %c0_129 = arith.constant 0 : index
    %509 = vector.load %arg7[%c0_128, %c0_129] : memref<128x384xf32, #tpu.memory_space<vmem>>, vector<128x384xf32>
    %cst_130 = arith.constant dense<0.000000e+00> : vector<2x384xf32>
    %510 = tpu.matmul %472, %509, %cst_130 {dimension_numbers = #tpu.dot_dimension_numbers<[1], [0], [0], [1], [0, 0, 1, 1], [], []>} : vector<2x128xf32>, vector<128x384xf32>, vector<2x384xf32> -> vector<2x384xf32>
    %511 = vector.broadcast %8 : vector<1x384xf32> to vector<2x384xf32>
    %512 = arith.addf %510, %511 : vector<2x384xf32>
    %513 = vector.extract_strided_slice %508 {offsets = [0, 0], sizes = [2, 128], strides = [1, 1]} : vector<2x384xf32> to vector<2x128xf32>
    %514 = vector.extract_strided_slice %512 {offsets = [0, 0], sizes = [2, 128], strides = [1, 1]} : vector<2x384xf32> to vector<2x128xf32>
    %515 = arith.addf %513, %514 : vector<2x128xf32>
    %516 = arith.negf %515 : vector<2x128xf32>
    %517 = math.exp %516 : vector<2x128xf32>
    %cst_131 = arith.constant 1.000000e+00 : f32
    %518 = vector.broadcast %cst_131 : f32 to vector<2x128xf32>
    %519 = arith.addf %518, %517 : vector<2x128xf32>
    %520 = arith.divf %518, %519 : vector<2x128xf32>
    %521 = vector.extract_strided_slice %508 {offsets = [0, 128], sizes = [2, 128], strides = [1, 1]} : vector<2x384xf32> to vector<2x128xf32>
    %522 = vector.extract_strided_slice %512 {offsets = [0, 128], sizes = [2, 128], strides = [1, 1]} : vector<2x384xf32> to vector<2x128xf32>
    %523 = arith.addf %521, %522 : vector<2x128xf32>
    %524 = arith.negf %523 : vector<2x128xf32>
    %525 = math.exp %524 : vector<2x128xf32>
    %cst_132 = arith.constant 1.000000e+00 : f32
    %526 = vector.broadcast %cst_132 : f32 to vector<2x128xf32>
    %527 = arith.addf %526, %525 : vector<2x128xf32>
    %528 = arith.divf %526, %527 : vector<2x128xf32>
    %529 = vector.extract_strided_slice %508 {offsets = [0, 256], sizes = [2, 128], strides = [1, 1]} : vector<2x384xf32> to vector<2x128xf32>
    %530 = vector.extract_strided_slice %512 {offsets = [0, 256], sizes = [2, 128], strides = [1, 1]} : vector<2x384xf32> to vector<2x128xf32>
    %531 = arith.mulf %520, %530 : vector<2x128xf32>
    %532 = arith.addf %529, %531 : vector<2x128xf32>
    %533 = math.tanh %532 : vector<2x128xf32>
    %cst_133 = arith.constant 1.000000e+00 : f32
    %534 = vector.broadcast %cst_133 : f32 to vector<2x128xf32>
    %535 = arith.subf %534, %528 : vector<2x128xf32>
    %536 = arith.mulf %535, %533 : vector<2x128xf32>
    %537 = arith.mulf %528, %472 : vector<2x128xf32>
    %538 = arith.addf %536, %537 : vector<2x128xf32>
    %539 = arith.addf %473, %538 : vector<2x128xf32>
    %cst_134 = arith.constant 1.250000e-01 : f32
    %540 = vector.broadcast %cst_134 : f32 to vector<2x128xf32>
    %541 = arith.mulf %539, %540 : vector<2x128xf32>
    %c0_135 = arith.constant 0 : index
    %c0_136 = arith.constant 0 : index
    %542 = vector.load %arg9[%c0_135, %c0_136] : memref<2x128xf32, #tpu.memory_space<vmem>>, vector<2x128xf32>
    tpu.vector_store %arg9[%c0_135, %c0_136], %541 {strides = array<i32>} : memref<2x128xf32, #tpu.memory_space<vmem>>, vector<2x128xf32>,
    return
  }
}

</mosaic_0001>

<llo_original>
// kernel: gru_forward.1
$region0: #{gru_forward.1}
  #allocation0 [shape = 'u32[]', space=smem, size = 0x4, offset = 0x4, fixed_abs, tag = 'smem constant byte address 0x4 - core index']
  #allocation1 [shape = 'u32[144,128]{1,0:T(1,128)}', space=vmem, size = 0x12000, scoped, tag = 'internal scratch']
  %s0 = inlined_call_operand.vmem [shape: f32[16,32], index: 0, kind: input, shape index: {}]
  %s1 = inlined_call_operand.hbm [shape: f32[32,384], index: 1, kind: input, shape index: {}]
  %s2 = inlined_call_operand.vmem [shape: f32[1,384], index: 2, kind: input, shape index: {}]
  %s3 = inlined_call_operand.hbm [shape: f32[128,384], index: 3, kind: input, shape index: {}]
  %s4 = inlined_call_operand.vmem [shape: f32[1,384], index: 4, kind: input, shape index: {}]
  %s5 = inlined_call_operand.hbm [shape: f32[128,384], index: 5, kind: input, shape index: {}]
  %s6 = inlined_call_operand.vmem [shape: f32[1,384], index: 6, kind: input, shape index: {}]
  %s7 = inlined_call_operand.hbm [shape: f32[128,384], index: 7, kind: input, shape index: {}]
  %s8 = inlined_call_operand.vmem [shape: f32[1,384], index: 8, kind: input, shape index: {}]
  %s9 = inlined_call_operand.hbm [shape: f32[2,128], index: 9, kind: output, shape index: {}]
  %s10 = sld [smem:[#allocation0]]
  $region62: #{gru_forward.1} parent=0
    _
  %s12 = ssub.s32 1, %s10
  %s13 = scalar_select 0, %s12, %s10
  $region1: #{gru_forward.1} parent=0
    #allocation2 [shape = 'u8[49152]{0}', space=vmem, size = 0xc000, scoped, tag = 'input window, operand 1, single buffered']
    #allocation3 [shape = 's32[1]{0}', space=sflag, size = 0x4, scoped, tag = 'scoped memory for gru_forward.1']
    #allocation4 [shape = 's32[1]{0}', space=sflag, size = 0x4, scoped, tag = 'scoped memory for gru_forward.1']
    #allocation5 [shape = 'u8[196608]{0}', space=vmem, size = 0x30000, scoped, tag = 'input window, operand 3, single buffered']
    #allocation6 [shape = 's32[1]{0}', space=sflag, size = 0x4, scoped, tag = 'scoped memory for gru_forward.1']
    #allocation7 [shape = 'u8[196608]{0}', space=vmem, size = 0x30000, scoped, tag = 'input window, operand 5, single buffered']
    #allocation8 [shape = 'u8[196608]{0}', space=vmem, size = 0x30000, scoped, tag = 'input window, operand 7, single buffered']
    #allocation9 [shape = 's32[1]{0}', space=sflag, size = 0x4, scoped, tag = 'scoped memory for gru_forward.1']
    #allocation10 [shape = 'u8[1024]{0}', space=vmem, size = 0x400, scoped, tag = 'output window, operand 0, single buffered']
    %14 = vsyncpa [#allocation3], 0
    %15 = vsyncpa [#allocation6], 0
    %16 = vsyncpa [#allocation9], 0
    %17 = vsyncpa [#allocation4], 0
    // Predicated region
    $region2: #{gru_forward.1} parent=1 // pred_check
      _
    $region3: #{gru_forward.1} parent=1 // pred_check_branch
      %19 = sbr.rel (0) target = $region5
    $region4: #{gru_forward.1} parent=1 // pred_region
      _
    $region5: #{gru_forward.1} parent=1 // pred_fallthru
      _
    // Predicated region
    $region6: #{gru_forward.1} parent=1 // pred_check
      _
    $region7: #{gru_forward.1} parent=1 // pred_check_branch
      %21 = sbr.rel (0) target = $region9
    $region8: #{gru_forward.1} parent=1 // pred_region
      %s23 = ssub.s32 1536, 1536
      %24 = vsyncadd [#allocation3], %s23
      %s25 = sshll.u32 [#allocation2], 4
      %s26 = int_to_ptr.vmem [resolvable:$true] %s25
      %31 = dma.hbm_to_vmem [thread:$0]  %s1, 1536, %s26, [#allocation3], 384, 384, 24
    $region9: #{gru_forward.1} parent=1 // pred_fallthru
      _
    // Predicated region
    $region10: #{gru_forward.1} parent=1 // pred_check
      _
    $region11: #{gru_forward.1} parent=1 // pred_check_branch
      %33 = sbr.rel (0) target = $region13
    $region12: #{gru_forward.1} parent=1 // pred_region
      _
    $region13: #{gru_forward.1} parent=1 // pred_fallthru
      _
    // Predicated region
    $region14: #{gru_forward.1} parent=1 // pred_check
      _
    $region15: #{gru_forward.1} parent=1 // pred_check_branch
      %35 = sbr.rel (0) target = $region17
    $region16: #{gru_forward.1} parent=1 // pred_region
      %s37 = ssub.s32 6144, 6144
      %38 = vsyncadd [#allocation6], %s37
      %s39 = sshll.u32 [#allocation5], 4
      %s40 = int_to_ptr.vmem [resolvable:$true] %s39
      %45 = dma.hbm_to_vmem [thread:$0]  %s3, 6144, %s40, [#allocation6], 384, 384, 24
    $region17: #{gru_forward.1} parent=1 // pred_fallthru
      _
    // Predicated region
    $region18: #{gru_forward.1} parent=1 // pred_check
      _
    $region19: #{gru_forward.1} parent=1 // pred_check_branch
      %47 = sbr.rel (0) target = $region21
    $region20: #{gru_forward.1} parent=1 // pred_region
      _
    $region21: #{gru_forward.1} parent=1 // pred_fallthru
      _
    // Predicated region
    $region22: #{gru_forward.1} parent=1 // pred_check
      _
    $region23: #{gru_forward.1} parent=1 // pred_check_branch
      %49 = sbr.rel (0) target = $region25
    $region24: #{gru_forward.1} parent=1 // pred_region
      %s51 = ssub.s32 6144, 6144
      %52 = vsyncadd [#allocation6], %s51
      %s53 = sshll.u32 [#allocation7], 4
      %s54 = int_to_ptr.vmem [resolvable:$true] %s53
      %59 = dma.hbm_to_vmem [thread:$0]  %s5, 6144, %s54, [#allocation6], 384, 384, 24
    $region25: #{gru_forward.1} parent=1 // pred_fallthru
      _
    // Predicated region
    $region26: #{gru_forward.1} parent=1 // pred_check
      _
    $region27: #{gru_forward.1} parent=1 // pred_check_branch
      %61 = sbr.rel (0) target = $region29
    $region28: #{gru_forward.1} parent=1 // pred_region
      _
    $region29: #{gru_forward.1} parent=1 // pred_fallthru
      _
    // Predicated region
    $region30: #{gru_forward.1} parent=1 // pred_check
      _
    $region31: #{gru_forward.1} parent=1 // pred_check_branch
      %63 = sbr.rel (0) target = $region33
    $region32: #{gru_forward.1} parent=1 // pred_region
      %s65 = ssub.s32 6144, 6144
      %66 = vsyncadd [#allocation9], %s65
      %s67 = sshll.u32 [#allocation8], 4
      %s68 = int_to_ptr.vmem [resolvable:$true] %s67
      %73 = dma.hbm_to_vmem [thread:$0]  %s7, 6144, %s68, [#allocation9], 384, 384, 24
    $region33: #{gru_forward.1} parent=1 // pred_fallthru
      _
    // Predicated region
    $region34: #{gru_forward.1} parent=1 // pred_check
      _
    $region35: #{gru_forward.1} parent=1 // pred_check_branch
      %75 = sbr.rel (0) target = $region37
    $region36: #{gru_forward.1} parent=1 // pred_region
      _
    $region37: #{gru_forward.1} parent=1 // pred_fallthru
      _
    // Predicated region
    $region38: #{gru_forward.1} parent=1 // pred_check
      _
    $region39: #{gru_forward.1} parent=1 // pred_check_branch
      %77 = sbr.rel (0) target = $region41
    $region40: #{gru_forward.1} parent=1 // pred_region
      %78 = dma.done [#allocation3], 1536
    $region41: #{gru_forward.1} parent=1 // pred_fallthru
      _
    // Predicated region
    $region42: #{gru_forward.1} parent=1 // pred_check
      _
    $region43: #{gru_forward.1} parent=1 // pred_check_branch
      %80 = sbr.rel (0) target = $region45
    $region44: #{gru_forward.1} parent=1 // pred_region
      %81 = dma.done [#allocation6], 6144
    $region45: #{gru_forward.1} parent=1 // pred_fallthru
      _
    // Predicated region
    $region46: #{gru_forward.1} parent=1 // pred_check
      _
    $region47: #{gru_forward.1} parent=1 // pred_check_branch
      %83 = sbr.rel (0) target = $region49
    $region48: #{gru_forward.1} parent=1 // pred_region
      %84 = dma.done [#allocation6], 6144
    $region49: #{gru_forward.1} parent=1 // pred_fallthru
      _
    // Predicated region
    $region50: #{gru_forward.1} parent=1 // pred_check
      _
    $region51: #{gru_forward.1} parent=1 // pred_check_branch
      %86 = sbr.rel (0) target = $region53
    $region52: #{gru_forward.1} parent=1 // pred_region
      %87 = dma.done [#allocation9], 6144
    $region53: #{gru_forward.1} parent=1 // pred_fallthru
      _
    %v88 = vld [vmem:[%s0] sm:$0xff]
    %v89 = vld [vmem:[%s0 + $0x8] sm:$0xff]
    %v90 = vld [vmem:[#allocation2] sm:$0xff]
    %v91 = vld [vmem:[#allocation2 + $0x8] sm:$0xff]
    %v92 = vld [vmem:[#allocation2 + $0x10] sm:$0xff]
    %v93 = vld [vmem:[#allocation2 + $0x18] sm:$0xff]
    %v94 = vld [vmem:[#allocation2 + $0x20] sm:$0xff]
    %v95 = vld [vmem:[#allocation2 + $0x28] sm:$0xff]
    %v96 = vld [vmem:[#allocation2 + $0x30] sm:$0xff]
    %v97 = vld [vmem:[#allocation2 + $0x38] sm:$0xff]
    %v98 = vld [vmem:[#allocation2 + $0x40] sm:$0xff]
    %v99 = vld [vmem:[#allocation2 + $0x48] sm:$0xff]
    %v100 = vld [vmem:[#allocation2 + $0x50] sm:$0xff]
    %v101 = vld [vmem:[#allocation2 + $0x58] sm:$0xff]
    %v102 = vld [vmem:[%s2] sm:$0x7]
    %v104 = vlaneseq
    %v105 = vshrl.u32 %v104, 7
    %v106 = vsub.s32 0, %v105
    %v107 = vrot.slane %v102, %v106
    %v108 = vlaneseq
    %v109 = vshrl.u32 %v108, 7
    %v110 = vsub.s32 1, %v109
    %v111 = vrot.slane %v102, %v110
    %v112 = vlaneseq
    %v113 = vshrl.u32 %v112, 7
    %v114 = vsub.s32 2, %v113
    %v115 = vrot.slane %v102, %v114
    %vm119 = vcmask 261120
    %v121 = vsel %vm119, %v88, 0
    %v124 = vsel %vm119, %v89, 0
    %126 = vmatprep.subr.mxu0 %v91
    %127 = vmatpush1.msra.mxu0 %v90
    %128 = vmatprep.subr.mxu0 %v94
    %129 = vmatpush1.msra.mxu0 %v93
    %130 = vmatprep.subr.mxu0 %v97
    %131 = vmatpush1.msra.mxu0 %v96
    %132 = vmatprep.subr.mxu0 %v100
    %133 = vmatpush1.msra.mxu0 %v99
    %134 = vmatprep.subr.mxu0 0.0
    %135 = vmatpush1.msra.mxu0 0.0
    %136 = vmatprep.subr.mxu0 0.0
    %137 = vmatpush1.msra.mxu0 0.0
    %138 = vmatprep.subr.mxu0 0.0
    %139 = vmatpush1.msra.mxu0 0.0
    %140 = vmatprep.subr.mxu0 0.0
    %141 = vmatpush1.msra.mxu0 0.0
    %142 = vmatprep.subr.mxu0 0.0
    %143 = vmatpush1.msra.mxu0 0.0
    %144 = vmatprep.subr.mxu0 0.0
    %145 = vmatpush1.msra.mxu0 0.0
    %146 = vmatprep.subr.mxu0 0.0
    %147 = vmatpush1.msra.mxu0 0.0
    %148 = vmatprep.subr.mxu0 0.0
    %149 = vmatpush1.msra.mxu0 0.0
    %150 = vmatprep.subr.mxu0 0.0
    %151 = vmatpush1.msra.mxu0 0.0
    %152 = vmatprep.subr.mxu0 0.0
    %153 = vmatpush1.msra.mxu0 0.0
    %154 = vmatprep.subr.mxu0 0.0
    %155 = vmatpush1.msra.mxu0 0.0
    %156 = vmatprep.subr.mxu0 0.0
    %157 = vmatpush1.msra.mxu0 0.0
    %158 = vmatprep.subr.mxu0 0.0
    %159 = vmatpush1.msra.mxu0 0.0
    %160 = vmatprep.subr.mxu0 0.0
    %161 = vmatpush1.msra.mxu0 0.0
    %162 = vmatprep.subr.mxu0 0.0
    %163 = vmatpush1.msra.mxu0 0.0
    %164 = vmatprep.subr.mxu0 0.0
    %165 = vmatpush1.msra.mxu0 0.0
    %166 = vmatprep.subr.mxu0 0.0
    %167 = vmatpush1.msra.mxu0 0.0
    %168 = vmatprep.subr.mxu0 0.0
    %169 = vmatpush1.msra.mxu0 0.0
    %170 = vmatprep.subr.mxu0 0.0
    %171 = vmatpush1.msra.mxu0 0.0
    %172 = vmatprep.subr.mxu0 0.0
    %173 = vmatpush1.msra.mxu0 0.0
    %174 = vmatprep.subr.mxu0 0.0
    %175 = vmatpush1.msra.mxu0 0.0
    %176 = vmatprep.subr.mxu0 0.0
    %177 = vmatpush1.msra.mxu0 0.0
    %178 = vmatprep.subr.mxu0 0.0
    %179 = vmatpush1.msra.mxu0 0.0
    %180 = vmatprep.subr.mxu0 0.0
    %181 = vmatpush1.msra.mxu0 0.0
    %182 = vmatprep.subr.mxu0 0.0
    %183 = vmatpush1.msra.mxu0 0.0
    %184 = vmatprep.subr.mxu0 0.0
    %185 = vmatpush1.msra.mxu0 0.0
    %186 = vmatprep.subr.mxu0 0.0
    %187 = vmatpush1.msra.mxu0 0.0
    %188 = vmatprep.subr.mxu0 0.0
    %189 = vmatpush1.msra.mxu0 0.0
    %190 = vmatprep.mubr.f32.mxu0 0.0
    %191 = vmatmul.mubr.f32.gmra.mrb[0].mxu0 %v121
    %v192 = vpop.f32.mrb[0].mxu0
    %v193 = vadd.f32 %v107, %v192
    %v194 = vpop.f32.mrb[0].mxu0
    %v195 = vadd.f32 %v111, %v194
    %196 = vmatprep.mubr.f32.mxu0 0.0
    %197 = vmatmul.mubr.f32.gmra.mrb[0].mxu0 %v124
    %v198 = vpop.f32.mrb[0].mxu0
    %v199 = vadd.f32 %v107, %v198
    %v200 = vpop.f32.mrb[0].mxu0
    %v201 = vadd.f32 %v111, %v200
    %202 = vdwg.mxu0
    %203 = vmatprep.subr.mxu0 0.0
    %204 = vmatpush1.msra.mxu0 %v92
    %205 = vmatprep.subr.mxu0 0.0
    %206 = vmatpush1.msra.mxu0 %v95
    %207 = vmatprep.subr.mxu0 0.0
    %208 = vmatpush1.msra.mxu0 %v98
    %209 = vmatprep.subr.mxu0 0.0
    %210 = vmatpush1.msra.mxu0 %v101
    %211 = vmatprep.subr.mxu0 0.0
    %212 = vmatpush1.msra.mxu0 0.0
    %213 = vmatprep.subr.mxu0 0.0
    %214 = vmatpush1.msra.mxu0 0.0
    %215 = vmatprep.subr.mxu0 0.0
    %216 = vmatpush1.msra.mxu0 0.0
    %217 = vmatprep.subr.mxu0 0.0
    %218 = vmatpush1.msra.mxu0 0.0
    %219 = vmatprep.subr.mxu0 0.0
    %220 = vmatpush1.msra.mxu0 0.0
    %221 = vmatprep.subr.mxu0 0.0
    %222 = vmatpush1.msra.mxu0 0.0
    %223 = vmatprep.subr.mxu0 0.0
    %224 = vmatpush1.msra.mxu0 0.0
    %225 = vmatprep.subr.mxu0 0.0
    %226 = vmatpush1.msra.mxu0 0.0
    %227 = vmatprep.subr.mxu0 0.0
    %228 = vmatpush1.msra.mxu0 0.0
    %229 = vmatprep.subr.mxu0 0.0
    %230 = vmatpush1.msra.mxu0 0.0
    %231 = vmatprep.subr.mxu0 0.0
    %232 = vmatpush1.msra.mxu0 0.0
    %233 = vmatprep.subr.mxu0 0.0
    %234 = vmatpush1.msra.mxu0 0.0
    %235 = vmatprep.subr.mxu0 0.0
    %236 = vmatpush1.msra.mxu0 0.0
    %237 = vmatprep.subr.mxu0 0.0
    %238 = vmatpush1.msra.mxu0 0.0
    %239 = vmatprep.subr.mxu0 0.0
    %240 = vmatpush1.msra.mxu0 0.0
    %241 = vmatprep.subr.mxu0 0.0
    %242 = vmatpush1.msra.mxu0 0.0
    %243 = vmatprep.subr.mxu0 0.0
    %244 = vmatpush1.msra.mxu0 0.0
    %245 = vmatprep.subr.mxu0 0.0
    %246 = vmatpush1.msra.mxu0 0.0
    %247 = vmatprep.subr.mxu0 0.0
    %248 = vmatpush1.msra.mxu0 0.0
    %249 = vmatprep.subr.mxu0 0.0
    %250 = vmatpush1.msra.mxu0 0.0
    %251 = vmatprep.subr.mxu0 0.0
    %252 = vmatpush1.msra.mxu0 0.0
    %253 = vmatprep.subr.mxu0 0.0
    %254 = vmatpush1.msra.mxu0 0.0
    %255 = vmatprep.subr.mxu0 0.0
    %256 = vmatpush1.msra.mxu0 0.0
    %257 = vmatprep.subr.mxu0 0.0
    %258 = vmatpush1.msra.mxu0 0.0
    %259 = vmatprep.subr.mxu0 0.0
    %260 = vmatpush1.msra.mxu0 0.0
    %261 = vmatprep.subr.mxu0 0.0
    %262 = vmatpush1.msra.mxu0 0.0
    %263 = vmatprep.subr.mxu0 0.0
    %264 = vmatpush1.msra.mxu0 0.0
    %265 = vmatprep.subr.mxu0 0.0
    %266 = vmatpush1.msra.mxu0 0.0
    %267 = vmatprep.mubr.f32.mxu0 0.0
    %268 = vmatmul.mubr.f32.gmra.mrb[0].mxu0 %v121
    %v269 = vpop.f32.mrb[0].mxu0
    %v270 = vadd.f32 %v115, %v269
    %v271 = vpop.f32.mrb[0].mxu0
    %272 = vmatprep.mubr.f32.mxu0 0.0
    %273 = vmatmul.mubr.f32.gmra.mrb[0].mxu0 %v124
    %v274 = vpop.f32.mrb[0].mxu0
    %v275 = vadd.f32 %v115, %v274
    %v276 = vpop.f32.mrb[0].mxu0
    %277 = vdwg.mxu0
    %v278 = vld [vmem:[%s4] sm:$0x7]
    %v279 = vld [vmem:[%s6] sm:$0x7]
    %v280 = vld [vmem:[%s8] sm:$0x7]
    %v281 = vld [vmem:[#allocation5] sm:$0xff]
    %v282 = vld [vmem:[#allocation5 + $0x8] sm:$0xff]
    %v283 = vld [vmem:[#allocation5 + $0x10] sm:$0xff]
    %v284 = vld [vmem:[#allocation5 + $0x18] sm:$0xff]
    %v285 = vld [vmem:[#allocation5 + $0x20] sm:$0xff]
    %v286 = vld [vmem:[#allocation5 + $0x28] sm:$0xff]
    %v287 = vld [vmem:[#allocation5 + $0x30] sm:$0xff]
    %v288 = vld [vmem:[#allocation5 + $0x38] sm:$0xff]
    %v289 = vld [vmem:[#allocation5 + $0x40] sm:$0xff]
    %v290 = vld [vmem:[#allocation5 + $0x48] sm:$0xff]
    %v291 = vld [vmem:[#allocation5 + $0x50] sm:$0xff]
    %v292 = vld [vmem:[#allocation5 + $0x58] sm:$0xff]
    %v293 = vld [vmem:[#allocation5 + $0x60] sm:$0xff]
    %v294 = vld [vmem:[#allocation5 + $0x68] sm:$0xff]
    %v295 = vld [vmem:[#allocation5 + $0x70] sm:$0xff]
    %v296 = vld [vmem:[#allocation5 + $0x78] sm:$0xff]
    %v297 = vld [vmem:[#allocation5 + $0x80] sm:$0xff]
    %v298 = vld [vmem:[#allocation5 + $0x88] sm:$0xff]
    %v299 = vld [vmem:[#allocation5 + $0x90] sm:$0xff]
    %v300 = vld [vmem:[#allocation5 + $0x98] sm:$0xff]
    %v301 = vld [vmem:[#allocation5 + $0xa0] sm:$0xff]
    %v302 = vld [vmem:[#allocation5 + $0xa8] sm:$0xff]
    %v303 = vld [vmem:[#allocation5 + $0xb0] sm:$0xff]
    %v304 = vld [vmem:[#allocation5 + $0xb8] sm:$0xff]
    %v305 = vld [vmem:[#allocation5 + $0xc0] sm:$0xff]
    %v306 = vld [vmem:[#allocation5 + $0xc8] sm:$0xff]
    %v307 = vld [vmem:[#allocation5 + $0xd0] sm:$0xff]
    %v308 = vld [vmem:[#allocation5 + $0xd8] sm:$0xff]
    %v309 = vld [vmem:[#allocation5 + $0xe0] sm:$0xff]
    %v310 = vld [vmem:[#allocation5 + $0xe8] sm:$0xff]
    %v311 = vld [vmem:[#allocation5 + $0xf0] sm:$0xff]
    %v312 = vld [vmem:[#allocation5 + $0xf8] sm:$0xff]
    %v313 = vld [vmem:[#allocation5 + $0x100] sm:$0xff]
    %v314 = vld [vmem:[#allocation5 + $0x108] sm:$0xff]
    %v315 = vld [vmem:[#allocation5 + $0x110] sm:$0xff]
    %v316 = vld [vmem:[#allocation5 + $0x118] sm:$0xff]
    %v317 = vld [vmem:[#allocation5 + $0x120] sm:$0xff]
    %v318 = vld [vmem:[#allocation5 + $0x128] sm:$0xff]
    %v319 = vld [vmem:[#allocation5 + $0x130] sm:$0xff]
    %v320 = vld [vmem:[#allocation5 + $0x138] sm:$0xff]
    %v321 = vld [vmem:[#allocation5 + $0x140] sm:$0xff]
    %v322 = vld [vmem:[#allocation5 + $0x148] sm:$0xff]
    %v323 = vld [vmem:[#allocation5 + $0x150] sm:$0xff]
    %v324 = vld [vmem:[#allocation5 + $0x158] sm:$0xff]
    %v325 = vld [vmem:[#allocation5 + $0x160] sm:$0xff]
    %v326 = vld [vmem:[#allocation5 + $0x168] sm:$0xff]
    %v327 = vld [vmem:[#allocation5 + $0x170] sm:$0xff]
    %v328 = vld [vmem:[#allocation5 + $0x178] sm:$0xff]
    %v330 = vlaneseq
    %v331 = vshrl.u32 %v330, 7
    %v332 = vsub.s32 0, %v331
    %v333 = vrot.slane %v278, %v332
    %v334 = vlaneseq
    %v335 = vshrl.u32 %v334, 7
    %v336 = vsub.s32 1, %v335
    %v337 = vrot.slane %v278, %v336
    %v338 = vlaneseq
    %v339 = vshrl.u32 %v338, 7
    %v340 = vsub.s32 2, %v339
    %v341 = vrot.slane %v278, %v340
    %345 = vmatprep.subr.mxu0 %v282
    %346 = vmatpush1.msra.mxu0 %v281
    %347 = vmatprep.subr.mxu0 %v285
    %348 = vmatpush1.msra.mxu0 %v284
    %349 = vmatprep.subr.mxu0 %v288
    %350 = vmatpush1.msra.mxu0 %v287
    %351 = vmatprep.subr.mxu0 %v291
    %352 = vmatpush1.msra.mxu0 %v290
    %353 = vmatprep.subr.mxu0 %v294
    %354 = vmatpush1.msra.mxu0 %v293
    %355 = vmatprep.subr.mxu0 %v297
    %356 = vmatpush1.msra.mxu0 %v296
    %357 = vmatprep.subr.mxu0 %v300
    %358 = vmatpush1.msra.mxu0 %v299
    %359 = vmatprep.subr.mxu0 %v303
    %360 = vmatpush1.msra.mxu0 %v302
    %361 = vmatprep.subr.mxu0 %v306
    %362 = vmatpush1.msra.mxu0 %v305
    %363 = vmatprep.subr.mxu0 %v309
    %364 = vmatpush1.msra.mxu0 %v308
    %365 = vmatprep.subr.mxu0 %v312
    %366 = vmatpush1.msra.mxu0 %v311
    %367 = vmatprep.subr.mxu0 %v315
    %368 = vmatpush1.msra.mxu0 %v314
    %369 = vmatprep.subr.mxu0 %v318
    %370 = vmatpush1.msra.mxu0 %v317
    %371 = vmatprep.subr.mxu0 %v321
    %372 = vmatpush1.msra.mxu0 %v320
    %373 = vmatprep.subr.mxu0 %v324
    %374 = vmatpush1.msra.mxu0 %v323
    %375 = vmatprep.subr.mxu0 %v327
    %376 = vmatpush1.msra.mxu0 %v326
    %377 = vmatprep.subr.mxu0 0.0
    %378 = vmatpush1.msra.mxu0 0.0
    %379 = vmatprep.subr.mxu0 0.0
    %380 = vmatpush1.msra.mxu0 0.0
    %381 = vmatprep.subr.mxu0 0.0
    %382 = vmatpush1.msra.mxu0 0.0
    %383 = vmatprep.subr.mxu0 0.0
    %384 = vmatpush1.msra.mxu0 0.0
    %385 = vmatprep.subr.mxu0 0.0
    %386 = vmatpush1.msra.mxu0 0.0
    %387 = vmatprep.subr.mxu0 0.0
    %388 = vmatpush1.msra.mxu0 0.0
    %389 = vmatprep.subr.mxu0 0.0
    %390 = vmatpush1.msra.mxu0 0.0
    %391 = vmatprep.subr.mxu0 0.0
    %392 = vmatpush1.msra.mxu0 0.0
    %393 = vmatprep.subr.mxu0 0.0
    %394 = vmatpush1.msra.mxu0 0.0
    %395 = vmatprep.subr.mxu0 0.0
    %396 = vmatpush1.msra.mxu0 0.0
    %397 = vmatprep.subr.mxu0 0.0
    %398 = vmatpush1.msra.mxu0 0.0
    %399 = vmatprep.subr.mxu0 0.0
    %400 = vmatpush1.msra.mxu0 0.0
    %401 = vmatprep.subr.mxu0 0.0
    %402 = vmatpush1.msra.mxu0 0.0
    %403 = vmatprep.subr.mxu0 0.0
    %404 = vmatpush1.msra.mxu0 0.0
    %405 = vmatprep.subr.mxu0 0.0
    %406 = vmatpush1.msra.mxu0 0.0
    %407 = vmatprep.subr.mxu0 0.0
    %408 = vmatpush1.msra.mxu0 0.0
    %409 = vmatprep.mubr.f32.mxu0 0.0
    %410 = vmatmul.mubr.f32.gmra.mrb[0].mxu0 0.0
    %v411 = vpop.f32.mrb[0].mxu0
    %v412 = vadd.f32 %v333, %v411
    %v413 = vpop.f32.mrb[0].mxu0
    %v414 = vadd.f32 %v337, %v413
    %415 = vdwg.mxu0
    %416 = vmatprep.subr.mxu0 0.0
    %417 = vmatpush1.msra.mxu0 %v283
    %418 = vmatprep.subr.mxu0 0.0
    %419 = vmatpush1.msra.mxu0 %v286
    %420 = vmatprep.subr.mxu0 0.0
    %421 = vmatpush1.msra.mxu0 %v289
    %422 = vmatprep.subr.mxu0 0.0
    %423 = vmatpush1.msra.mxu0 %v292
    %424 = vmatprep.subr.mxu0 0.0
    %425 = vmatpush1.msra.mxu0 %v295
    %426 = vmatprep.subr.mxu0 0.0
    %427 = vmatpush1.msra.mxu0 %v298
    %428 = vmatprep.subr.mxu0 0.0
    %429 = vmatpush1.msra.mxu0 %v301
    %430 = vmatprep.subr.mxu0 0.0
    %431 = vmatpush1.msra.mxu0 %v304
    %432 = vmatprep.subr.mxu0 0.0
    %433 = vmatpush1.msra.mxu0 %v307
    %434 = vmatprep.subr.mxu0 0.0
    %435 = vmatpush1.msra.mxu0 %v310
    %436 = vmatprep.subr.mxu0 0.0
    %437 = vmatpush1.msra.mxu0 %v313
    %438 = vmatprep.subr.mxu0 0.0
    %439 = vmatpush1.msra.mxu0 %v316
    %440 = vmatprep.subr.mxu0 0.0
    %441 = vmatpush1.msra.mxu0 %v319
    %442 = vmatprep.subr.mxu0 0.0
    %443 = vmatpush1.msra.mxu0 %v322
    %444 = vmatprep.subr.mxu0 0.0
    %445 = vmatpush1.msra.mxu0 %v325
    %446 = vmatprep.subr.mxu0 0.0
    %447 = vmatpush1.msra.mxu0 %v328
    %448 = vmatprep.subr.mxu0 0.0
    %449 = vmatpush1.msra.mxu0 0.0
    %450 = vmatprep.subr.mxu0 0.0
    %451 = vmatpush1.msra.mxu0 0.0
    %452 = vmatprep.subr.mxu0 0.0
    %453 = vmatpush1.msra.mxu0 0.0
    %454 = vmatprep.subr.mxu0 0.0
    %455 = vmatpush1.msra.mxu0 0.0
    %456 = vmatprep.subr.mxu0 0.0
    %457 = vmatpush1.msra.mxu0 0.0
    %458 = vmatprep.subr.mxu0 0.0
    %459 = vmatpush1.msra.mxu0 0.0
    %460 = vmatprep.subr.mxu0 0.0
    %461 = vmatpush1.msra.mxu0 0.0
    %462 = vmatprep.subr.mxu0 0.0
    %463 = vmatpush1.msra.mxu0 0.0
    %464 = vmatprep.subr.mxu0 0.0
    %465 = vmatpush1.msra.mxu0 0.0
    %466 = vmatprep.subr.mxu0 0.0
    %467 = vmatpush1.msra.mxu0 0.0
    %468 = vmatprep.subr.mxu0 0.0
    %469 = vmatpush1.msra.mxu0 0.0
    %470 = vmatprep.subr.mxu0 0.0
    %471 = vmatpush1.msra.mxu0 0.0
    %472 = vmatprep.subr.mxu0 0.0
    %473 = vmatpush1.msra.mxu0 0.0
    %474 = vmatprep.subr.mxu0 0.0
    %475 = vmatpush1.msra.mxu0 0.0
    %476 = vmatprep.subr.mxu0 0.0
    %477 = vmatpush1.msra.mxu0 0.0
    %478 = vmatprep.subr.mxu0 0.0
    %479 = vmatpush1.msra.mxu0 0.0
    %480 = vmatprep.mubr.f32.mxu0 0.0
    %481 = vmatmul.mubr.f32.gmra.mrb[0].mxu0 0.0
    %v482 = vpop.f32.mrb[0].mxu0
    %v483 = vadd.f32 %v341, %v482
    %v484 = vpop.f32.mrb[0].mxu0
    %485 = vdwg.mxu0
    %v486 = vadd.f32 %v193, %v412
    %v487 = vxor.u32 %v486, 2147483648
    %v488 = vmul.f32 %v487, 1.442695
    %v489 = vpow.pop %v488
    %v490 = vadd.f32 %v489, 1.0
    %v491 = vrcp.pop %v490
    %v492 = vmul.f32 1.0, %v491
    %v493 = vadd.f32 %v195, %v414
    %v494 = vxor.u32 %v493, 2147483648
    %v495 = vmul.f32 %v494, 1.442695
    %v496 = vpow.pop %v495
    %v497 = vadd.f32 %v496, 1.0
    %v498 = vrcp.pop %v497
    %v499 = vmul.f32 1.0, %v498
    %v500 = vmul.f32 %v492, %v483
    %v501 = vadd.f32 %v270, %v500
    %v502 = vtanh.pop %v501
    %v503 = vsub.f32 1.0, %v499
    %v504 = vmul.f32 %v503, %v502
    %v505 = vmul.f32 %v499, 0.0
    %v506 = vadd.f32 %v504, %v505
    %v507 = vld [vmem:[#allocation7] sm:$0xff]
    %v508 = vld [vmem:[#allocation7 + $0x8] sm:$0xff]
    %v509 = vld [vmem:[#allocation7 + $0x10] sm:$0xff]
    %v510 = vld [vmem:[#allocation7 + $0x18] sm:$0xff]
    %v511 = vld [vmem:[#allocation7 + $0x20] sm:$0xff]
    %v512 = vld [vmem:[#allocation7 + $0x28] sm:$0xff]
    %v513 = vld [vmem:[#allocation7 + $0x30] sm:$0xff]
    %v514 = vld [vmem:[#allocation7 + $0x38] sm:$0xff]
    %v515 = vld [vmem:[#allocation7 + $0x40] sm:$0xff]
    %v516 = vld [vmem:[#allocation7 + $0x48] sm:$0xff]
    %v517 = vld [vmem:[#allocation7 + $0x50] sm:$0xff]
    %v518 = vld [vmem:[#allocation7 + $0x58] sm:$0xff]
    %v519 = vld [vmem:[#allocation7 + $0x60] sm:$0xff]
    %v520 = vld [vmem:[#allocation7 + $0x68] sm:$0xff]
    %v521 = vld [vmem:[#allocation7 + $0x70] sm:$0xff]
    %v522 = vld [vmem:[#allocation7 + $0x78] sm:$0xff]
    %v523 = vld [vmem:[#allocation7 + $0x80] sm:$0xff]
    %v524 = vld [vmem:[#allocation7 + $0x88] sm:$0xff]
    %v525 = vld [vmem:[#allocation7 + $0x90] sm:$0xff]
    %v526 = vld [vmem:[#allocation7 + $0x98] sm:$0xff]
    %v527 = vld [vmem:[#allocation7 + $0xa0] sm:$0xff]
    %v528 = vld [vmem:[#allocation7 + $0xa8] sm:$0xff]
    %v529 = vld [vmem:[#allocation7 + $0xb0] sm:$0xff]
    %v530 = vld [vmem:[#allocation7 + $0xb8] sm:$0xff]
    %v531 = vld [vmem:[#allocation7 + $0xc0] sm:$0xff]
    %v532 = vld [vmem:[#allocation7 + $0xc8] sm:$0xff]
    %v533 = vld [vmem:[#allocation7 + $0xd0] sm:$0xff]
    %v534 = vld [vmem:[#allocation7 + $0xd8] sm:$0xff]
    %v535 = vld [vmem:[#allocation7 + $0xe0] sm:$0xff]
    %v536 = vld [vmem:[#allocation7 + $0xe8] sm:$0xff]
    %v537 = vld [vmem:[#allocation7 + $0xf0] sm:$0xff]
    %v538 = vld [vmem:[#allocation7 + $0xf8] sm:$0xff]
    %v539 = vld [vmem:[#allocation7 + $0x100] sm:$0xff]
    %v540 = vld [vmem:[#allocation7 + $0x108] sm:$0xff]
    %v541 = vld [vmem:[#allocation7 + $0x110] sm:$0xff]
    %v542 = vld [vmem:[#allocation7 + $0x118] sm:$0xff]
    %v543 = vld [vmem:[#allocation7 + $0x120] sm:$0xff]
    %v544 = vld [vmem:[#allocation7 + $0x128] sm:$0xff]
    %v545 = vld [vmem:[#allocation7 + $0x130] sm:$0xff]
    %v546 = vld [vmem:[#allocation7 + $0x138] sm:$0xff]
    %v547 = vld [vmem:[#allocation7 + $0x140] sm:$0xff]
    %v548 = vld [vmem:[#allocation7 + $0x148] sm:$0xff]
    %v549 = vld [vmem:[#allocation7 + $0x150] sm:$0xff]
    %v550 = vld [vmem:[#allocation7 + $0x158] sm:$0xff]
    %v551 = vld [vmem:[#allocation7 + $0x160] sm:$0xff]
    %v552 = vld [vmem:[#allocation7 + $0x168] sm:$0xff]
    %v553 = vld [vmem:[#allocation7 + $0x170] sm:$0xff]
    %v554 = vld [vmem:[#allocation7 + $0x178] sm:$0xff]
    %v556 = vlaneseq
    %v557 = vshrl.u32 %v556, 7
    %v558 = vsub.s32 0, %v557
    %v559 = vrot.slane %v279, %v558
    %v560 = vlaneseq
    %v561 = vshrl.u32 %v560, 7
    %v562 = vsub.s32 1, %v561
    %v563 = vrot.slane %v279, %v562
    %v564 = vlaneseq
    %v565 = vshrl.u32 %v564, 7
    %v566 = vsub.s32 2, %v565
    %v567 = vrot.slane %v279, %v566
    %571 = vmatprep.subr.mxu0 %v508
    %572 = vmatpush1.msra.mxu0 %v507
    %573 = vmatprep.subr.mxu0 %v511
    %574 = vmatpush1.msra.mxu0 %v510
    %575 = vmatprep.subr.mxu0 %v514
    %576 = vmatpush1.msra.mxu0 %v513
    %577 = vmatprep.subr.mxu0 %v517
    %578 = vmatpush1.msra.mxu0 %v516
    %579 = vmatprep.subr.mxu0 %v520
    %580 = vmatpush1.msra.mxu0 %v519
    %581 = vmatprep.subr.mxu0 %v523
    %582 = vmatpush1.msra.mxu0 %v522
    %583 = vmatprep.subr.mxu0 %v526
    %584 = vmatpush1.msra.mxu0 %v525
    %585 = vmatprep.subr.mxu0 %v529
    %586 = vmatpush1.msra.mxu0 %v528
    %587 = vmatprep.subr.mxu0 %v532
    %588 = vmatpush1.msra.mxu0 %v531
    %589 = vmatprep.subr.mxu0 %v535
    %590 = vmatpush1.msra.mxu0 %v534
    %591 = vmatprep.subr.mxu0 %v538
    %592 = vmatpush1.msra.mxu0 %v537
    %593 = vmatprep.subr.mxu0 %v541
    %594 = vmatpush1.msra.mxu0 %v540
    %595 = vmatprep.subr.mxu0 %v544
    %596 = vmatpush1.msra.mxu0 %v543
    %597 = vmatprep.subr.mxu0 %v547
    %598 = vmatpush1.msra.mxu0 %v546
    %599 = vmatprep.subr.mxu0 %v550
    %600 = vmatpush1.msra.mxu0 %v549
    %601 = vmatprep.subr.mxu0 %v553
    %602 = vmatpush1.msra.mxu0 %v552
    %603 = vmatprep.subr.mxu0 0.0
    %604 = vmatpush1.msra.mxu0 0.0
    %605 = vmatprep.subr.mxu0 0.0
    %606 = vmatpush1.msra.mxu0 0.0
    %607 = vmatprep.subr.mxu0 0.0
    %608 = vmatpush1.msra.mxu0 0.0
    %609 = vmatprep.subr.mxu0 0.0
    %610 = vmatpush1.msra.mxu0 0.0
    %611 = vmatprep.subr.mxu0 0.0
    %612 = vmatpush1.msra.mxu0 0.0
    %613 = vmatprep.subr.mxu0 0.0
    %614 = vmatpush1.msra.mxu0 0.0
    %615 = vmatprep.subr.mxu0 0.0
    %616 = vmatpush1.msra.mxu0 0.0
    %617 = vmatprep.subr.mxu0 0.0
    %618 = vmatpush1.msra.mxu0 0.0
    %619 = vmatprep.subr.mxu0 0.0
    %620 = vmatpush1.msra.mxu0 0.0
    %621 = vmatprep.subr.mxu0 0.0
    %622 = vmatpush1.msra.mxu0 0.0
    %623 = vmatprep.subr.mxu0 0.0
    %624 = vmatpush1.msra.mxu0 0.0
    %625 = vmatprep.subr.mxu0 0.0
    %626 = vmatpush1.msra.mxu0 0.0
    %627 = vmatprep.subr.mxu0 0.0
    %628 = vmatpush1.msra.mxu0 0.0
    %629 = vmatprep.subr.mxu0 0.0
    %630 = vmatpush1.msra.mxu0 0.0
    %631 = vmatprep.subr.mxu0 0.0
    %632 = vmatpush1.msra.mxu0 0.0
    %633 = vmatprep.subr.mxu0 0.0
    %634 = vmatpush1.msra.mxu0 0.0
    %635 = vmatprep.mubr.f32.mxu0 0.0
    %636 = vmatmul.mubr.f32.gmra.mrb[0].mxu0 %v506
    %v637 = vpop.f32.mrb[0].mxu0
    %v638 = vadd.f32 %v559, %v637
    %v639 = vpop.f32.mrb[0].mxu0
    %v640 = vadd.f32 %v563, %v639
    %641 = vdwg.mxu0
    %642 = vmatprep.subr.mxu0 0.0
    %643 = vmatpush1.msra.mxu0 %v509
    %644 = vmatprep.subr.mxu0 0.0
    %645 = vmatpush1.msra.mxu0 %v512
    %646 = vmatprep.subr.mxu0 0.0
    %647 = vmatpush1.msra.mxu0 %v515
    %648 = vmatprep.subr.mxu0 0.0
    %649 = vmatpush1.msra.mxu0 %v518
    %650 = vmatprep.subr.mxu0 0.0
    %651 = vmatpush1.msra.mxu0 %v521
    %652 = vmatprep.subr.mxu0 0.0
    %653 = vmatpush1.msra.mxu0 %v524
    %654 = vmatprep.subr.mxu0 0.0
    %655 = vmatpush1.msra.mxu0 %v527
    %656 = vmatprep.subr.mxu0 0.0
    %657 = vmatpush1.msra.mxu0 %v530
    %658 = vmatprep.subr.mxu0 0.0
    %659 = vmatpush1.msra.mxu0 %v533
    %660 = vmatprep.subr.mxu0 0.0
    %661 = vmatpush1.msra.mxu0 %v536
    %662 = vmatprep.subr.mxu0 0.0
    %663 = vmatpush1.msra.mxu0 %v539
    %664 = vmatprep.subr.mxu0 0.0
    %665 = vmatpush1.msra.mxu0 %v542
    %666 = vmatprep.subr.mxu0 0.0
    %667 = vmatpush1.msra.mxu0 %v545
    %668 = vmatprep.subr.mxu0 0.0
    %669 = vmatpush1.msra.mxu0 %v548
    %670 = vmatprep.subr.mxu0 0.0
    %671 = vmatpush1.msra.mxu0 %v551
    %672 = vmatprep.subr.mxu0 0.0
    %673 = vmatpush1.msra.mxu0 %v554
    %674 = vmatprep.subr.mxu0 0.0
    %675 = vmatpush1.msra.mxu0 0.0
    %676 = vmatprep.subr.mxu0 0.0
    %677 = vmatpush1.msra.mxu0 0.0
    %678 = vmatprep.subr.mxu0 0.0
    %679 = vmatpush1.msra.mxu0 0.0
    %680 = vmatprep.subr.mxu0 0.0
    %681 = vmatpush1.msra.mxu0 0.0
    %682 = vmatprep.subr.mxu0 0.0
    %683 = vmatpush1.msra.mxu0 0.0
    %684 = vmatprep.subr.mxu0 0.0
    %685 = vmatpush1.msra.mxu0 0.0
    %686 = vmatprep.subr.mxu0 0.0
    %687 = vmatpush1.msra.mxu0 0.0
    %688 = vmatprep.subr.mxu0 0.0
    %689 = vmatpush1.msra.mxu0 0.0
    %690 = vmatprep.subr.mxu0 0.0
    %691 = vmatpush1.msra.mxu0 0.0
    %692 = vmatprep.subr.mxu0 0.0
    %693 = vmatpush1.msra.mxu0 0.0
    %694 = vmatprep.subr.mxu0 0.0
    %695 = vmatpush1.msra.mxu0 0.0
    %696 = vmatprep.subr.mxu0 0.0
    %697 = vmatpush1.msra.mxu0 0.0
    %698 = vmatprep.subr.mxu0 0.0
    %699 = vmatpush1.msra.mxu0 0.0
    %700 = vmatprep.subr.mxu0 0.0
    %701 = vmatpush1.msra.mxu0 0.0
    %702 = vmatprep.subr.mxu0 0.0
    %703 = vmatpush1.msra.mxu0 0.0
    %704 = vmatprep.subr.mxu0 0.0
    %705 = vmatpush1.msra.mxu0 0.0
    %706 = vmatprep.mubr.f32.mxu0 0.0
    %707 = vmatmul.mubr.f32.gmra.mrb[0].mxu0 %v506
    %v708 = vpop.f32.mrb[0].mxu0
    %v709 = vadd.f32 %v567, %v708
    %v710 = vpop.f32.mrb[0].mxu0
    %711 = vdwg.mxu0
    %v712 = vld [vmem:[#allocation8] sm:$0xff]
    %v713 = vld [vmem:[#allocation8 + $0x8] sm:$0xff]
    %v714 = vld [vmem:[#allocation8 + $0x10] sm:$0xff]
    %v715 = vld [vmem:[#allocation8 + $0x18] sm:$0xff]
    %v716 = vld [vmem:[#allocation8 + $0x20] sm:$0xff]
    %v717 = vld [vmem:[#allocation8 + $0x28] sm:$0xff]
    %v718 = vld [vmem:[#allocation8 + $0x30] sm:$0xff]
    %v719 = vld [vmem:[#allocation8 + $0x38] sm:$0xff]
    %v720 = vld [vmem:[#allocation8 + $0x40] sm:$0xff]
    %v721 = vld [vmem:[#allocation8 + $0x48] sm:$0xff]
    %v722 = vld [vmem:[#allocation8 + $0x50] sm:$0xff]
    %v723 = vld [vmem:[#allocation8 + $0x58] sm:$0xff]
    %v724 = vld [vmem:[#allocation8 + $0x60] sm:$0xff]
    %v725 = vld [vmem:[#allocation8 + $0x68] sm:$0xff]
    %v726 = vld [vmem:[#allocation8 + $0x70] sm:$0xff]
    %v727 = vld [vmem:[#allocation8 + $0x78] sm:$0xff]
    %v728 = vld [vmem:[#allocation8 + $0x80] sm:$0xff]
    %v729 = vld [vmem:[#allocation8 + $0x88] sm:$0xff]
    %v730 = vld [vmem:[#allocation8 + $0x90] sm:$0xff]
    %v731 = vld [vmem:[#allocation8 + $0x98] sm:$0xff]
    %v732 = vld [vmem:[#allocation8 + $0xa0] sm:$0xff]
    %v733 = vld [vmem:[#allocation8 + $0xa8] sm:$0xff]
    %v734 = vld [vmem:[#allocation8 + $0xb0] sm:$0xff]
    %v735 = vld [vmem:[#allocation8 + $0xb8] sm:$0xff]
    %v736 = vld [vmem:[#allocation8 + $0xc0] sm:$0xff]
    %v737 = vld [vmem:[#allocation8 + $0xc8] sm:$0xff]
    %v738 = vld [vmem:[#allocation8 + $0xd0] sm:$0xff]
    %v739 = vld [vmem:[#allocation8 + $0xd8] sm:$0xff]
    %v740 = vld [vmem:[#allocation8 + $0xe0] sm:$0xff]
    %v741 = vld [vmem:[#allocation8 + $0xe8] sm:$0xff]
    %v742 = vld [vmem:[#allocation8 + $0xf0] sm:$0xff]
    %v743 = vld [vmem:[#allocation8 + $0xf8] sm:$0xff]
    %v744 = vld [vmem:[#allocation8 + $0x100] sm:$0xff]
    %v745 = vld [vmem:[#allocation8 + $0x108] sm:$0xff]
    %v746 = vld [vmem:[#allocation8 + $0x110] sm:$0xff]
    %v747 = vld [vmem:[#allocation8 + $0x118] sm:$0xff]
    %v748 = vld [vmem:[#allocation8 + $0x120] sm:$0xff]
    %v749 = vld [vmem:[#allocation8 + $0x128] sm:$0xff]
    %v750 = vld [vmem:[#allocation8 + $0x130] sm:$0xff]
    %v751 = vld [vmem:[#allocation8 + $0x138] sm:$0xff]
    %v752 = vld [vmem:[#allocation8 + $0x140] sm:$0xff]
    %v753 = vld [vmem:[#allocation8 + $0x148] sm:$0xff]
    %v754 = vld [vmem:[#allocation8 + $0x150] sm:$0xff]
    %v755 = vld [vmem:[#allocation8 + $0x158] sm:$0xff]
    %v756 = vld [vmem:[#allocation8 + $0x160] sm:$0xff]
    %v757 = vld [vmem:[#allocation8 + $0x168] sm:$0xff]
    %v758 = vld [vmem:[#allocation8 + $0x170] sm:$0xff]
    %v759 = vld [vmem:[#allocation8 + $0x178] sm:$0xff]
    %v761 = vlaneseq
    %v762 = vshrl.u32 %v761, 7
    %v763 = vsub.s32 0, %v762
    %v764 = vrot.slane %v280, %v763
    %v765 = vlaneseq
    %v766 = vshrl.u32 %v765, 7
    %v767 = vsub.s32 1, %v766
    %v768 = vrot.slane %v280, %v767
    %v769 = vlaneseq
    %v770 = vshrl.u32 %v769, 7
    %v771 = vsub.s32 2, %v770
    %v772 = vrot.slane %v280, %v771
    %776 = vmatprep.subr.mxu0 %v713
    %777 = vmatpush1.msra.mxu0 %v712
    %778 = vmatprep.subr.mxu0 %v716
    %779 = vmatpush1.msra.mxu0 %v715
    %780 = vmatprep.subr.mxu0 %v719
    %781 = vmatpush1.msra.mxu0 %v718
    %782 = vmatprep.subr.mxu0 %v722
    %783 = vmatpush1.msra.mxu0 %v721
    %784 = vmatprep.subr.mxu0 %v725
    %785 = vmatpush1.msra.mxu0 %v724
    %786 = vmatprep.subr.mxu0 %v728
    %787 = vmatpush1.msra.mxu0 %v727
    %788 = vmatprep.subr.mxu0 %v731
    %789 = vmatpush1.msra.mxu0 %v730
    %790 = vmatprep.subr.mxu0 %v734
    %791 = vmatpush1.msra.mxu0 %v733
    %792 = vmatprep.subr.mxu0 %v737
    %793 = vmatpush1.msra.mxu0 %v736
    %794 = vmatprep.subr.mxu0 %v740
    %795 = vmatpush1.msra.mxu0 %v739
    %796 = vmatprep.subr.mxu0 %v743
    %797 = vmatpush1.msra.mxu0 %v742
    %798 = vmatprep.subr.mxu0 %v746
    %799 = vmatpush1.msra.mxu0 %v745
    %800 = vmatprep.subr.mxu0 %v749
    %801 = vmatpush1.msra.mxu0 %v748
    %802 = vmatprep.subr.mxu0 %v752
    %803 = vmatpush1.msra.mxu0 %v751
    %804 = vmatprep.subr.mxu0 %v755
    %805 = vmatpush1.msra.mxu0 %v754
    %806 = vmatprep.subr.mxu0 %v758
    %807 = vmatpush1.msra.mxu0 %v757
    %808 = vmatprep.subr.mxu0 0.0
    %809 = vmatpush1.msra.mxu0 0.0
    %810 = vmatprep.subr.mxu0 0.0
    %811 = vmatpush1.msra.mxu0 0.0
    %812 = vmatprep.subr.mxu0 0.0
    %813 = vmatpush1.msra.mxu0 0.0
    %814 = vmatprep.subr.mxu0 0.0
    %815 = vmatpush1.msra.mxu0 0.0
    %816 = vmatprep.subr.mxu0 0.0
    %817 = vmatpush1.msra.mxu0 0.0
    %818 = vmatprep.subr.mxu0 0.0
    %819 = vmatpush1.msra.mxu0 0.0
    %820 = vmatprep.subr.mxu0 0.0
    %821 = vmatpush1.msra.mxu0 0.0
    %822 = vmatprep.subr.mxu0 0.0
    %823 = vmatpush1.msra.mxu0 0.0
    %824 = vmatprep.subr.mxu0 0.0
    %825 = vmatpush1.msra.mxu0 0.0
    %826 = vmatprep.subr.mxu0 0.0
    %827 = vmatpush1.msra.mxu0 0.0
    %828 = vmatprep.subr.mxu0 0.0
    %829 = vmatpush1.msra.mxu0 0.0
    %830 = vmatprep.subr.mxu0 0.0
    %831 = vmatpush1.msra.mxu0 0.0
    %832 = vmatprep.subr.mxu0 0.0
    %833 = vmatpush1.msra.mxu0 0.0
    %834 = vmatprep.subr.mxu0 0.0
    %835 = vmatpush1.msra.mxu0 0.0
    %836 = vmatprep.subr.mxu0 0.0
    %837 = vmatpush1.msra.mxu0 0.0
    %838 = vmatprep.subr.mxu0 0.0
    %839 = vmatpush1.msra.mxu0 0.0
    %840 = vmatprep.mubr.f32.mxu0 0.0
    %841 = vmatmul.mubr.f32.gmra.mrb[0].mxu0 0.0
    %v842 = vpop.f32.mrb[0].mxu0
    %v843 = vadd.f32 %v764, %v842
    %v844 = vpop.f32.mrb[0].mxu0
    %v845 = vadd.f32 %v768, %v844
    %846 = vdwg.mxu0
    %847 = vmatprep.subr.mxu0 0.0
    %848 = vmatpush1.msra.mxu0 %v714
    %849 = vmatprep.subr.mxu0 0.0
    %850 = vmatpush1.msra.mxu0 %v717
    %851 = vmatprep.subr.mxu0 0.0
    %852 = vmatpush1.msra.mxu0 %v720
    %853 = vmatprep.subr.mxu0 0.0
    %854 = vmatpush1.msra.mxu0 %v723
    %855 = vmatprep.subr.mxu0 0.0
    %856 = vmatpush1.msra.mxu0 %v726
    %857 = vmatprep.subr.mxu0 0.0
    %858 = vmatpush1.msra.mxu0 %v729
    %859 = vmatprep.subr.mxu0 0.0
    %860 = vmatpush1.msra.mxu0 %v732
    %861 = vmatprep.subr.mxu0 0.0
    %862 = vmatpush1.msra.mxu0 %v735
    %863 = vmatprep.subr.mxu0 0.0
    %864 = vmatpush1.msra.mxu0 %v738
    %865 = vmatprep.subr.mxu0 0.0
    %866 = vmatpush1.msra.mxu0 %v741
    %867 = vmatprep.subr.mxu0 0.0
    %868 = vmatpush1.msra.mxu0 %v744
    %869 = vmatprep.subr.mxu0 0.0
    %870 = vmatpush1.msra.mxu0 %v747
    %871 = vmatprep.subr.mxu0 0.0
    %872 = vmatpush1.msra.mxu0 %v750
    %873 = vmatprep.subr.mxu0 0.0
    %874 = vmatpush1.msra.mxu0 %v753
    %875 = vmatprep.subr.mxu0 0.0
    %876 = vmatpush1.msra.mxu0 %v756
    %877 = vmatprep.subr.mxu0 0.0
    %878 = vmatpush1.msra.mxu0 %v759
    %879 = vmatprep.subr.mxu0 0.0
    %880 = vmatpush1.msra.mxu0 0.0
    %881 = vmatprep.subr.mxu0 0.0
    %882 = vmatpush1.msra.mxu0 0.0
    %883 = vmatprep.subr.mxu0 0.0
    %884 = vmatpush1.msra.mxu0 0.0
    %885 = vmatprep.subr.mxu0 0.0
    %886 = vmatpush1.msra.mxu0 0.0
    %887 = vmatprep.subr.mxu0 0.0
    %888 = vmatpush1.msra.mxu0 0.0
    %889 = vmatprep.subr.mxu0 0.0
    %890 = vmatpush1.msra.mxu0 0.0
    %891 = vmatprep.subr.mxu0 0.0
    %892 = vmatpush1.msra.mxu0 0.0
    %893 = vmatprep.subr.mxu0 0.0
    %894 = vmatpush1.msra.mxu0 0.0
    %895 = vmatprep.subr.mxu0 0.0
    %896 = vmatpush1.msra.mxu0 0.0
    %897 = vmatprep.subr.mxu0 0.0
    %898 = vmatpush1.msra.mxu0 0.0
    %899 = vmatprep.subr.mxu0 0.0
    %900 = vmatpush1.msra.mxu0 0.0
    %901 = vmatprep.subr.mxu0 0.0
    %902 = vmatpush1.msra.mxu0 0.0
    %903 = vmatprep.subr.mxu0 0.0
    %904 = vmatpush1.msra.mxu0 0.0
    %905 = vmatprep.subr.mxu0 0.0
    %906 = vmatpush1.msra.mxu0 0.0
    %907 = vmatprep.subr.mxu0 0.0
    %908 = vmatpush1.msra.mxu0 0.0
    %909 = vmatprep.subr.mxu0 0.0
    %910 = vmatpush1.msra.mxu0 0.0
    %911 = vmatprep.mubr.f32.mxu0 0.0
    %912 = vmatmul.mubr.f32.gmra.mrb[0].mxu0 0.0
    %v913 = vpop.f32.mrb[0].mxu0
    %v914 = vadd.f32 %v772, %v913
    %v915 = vpop.f32.mrb[0].mxu0
    %916 = vdwg.mxu0
    %v917 = vadd.f32 %v638, %v843
    %v918 = vxor.u32 %v917, 2147483648
    %v919 = vmul.f32 %v918, 1.442695
    %v920 = vpow.pop %v919
    %v921 = vadd.f32 %v920, 1.0
    %v922 = vrcp.pop %v921
    %v923 = vmul.f32 1.0, %v922
    %v924 = vadd.f32 %v640, %v845
    %v925 = vxor.u32 %v924, 2147483648
    %v926 = vmul.f32 %v925, 1.442695
    %v927 = vpow.pop %v926
    %v928 = vadd.f32 %v927, 1.0
    %v929 = vrcp.pop %v928
    %v930 = vmul.f32 1.0, %v929
    %v931 = vmul.f32 %v923, %v914
    %v932 = vadd.f32 %v709, %v931
    %v933 = vtanh.pop %v932
    %v934 = vsub.f32 1.0, %v930
    %v935 = vmul.f32 %v934, %v933
    %v936 = vmul.f32 %v930, 0.0
    %v937 = vadd.f32 %v935, %v936
    %v938 = vadd.f32 %v937, 0.0
    %939 = vmatprep.subr.mxu0 %v282
    %940 = vmatpush1.msra.mxu0 %v281
    %941 = vmatprep.subr.mxu0 %v285
    %942 = vmatpush1.msra.mxu0 %v284
    %943 = vmatprep.subr.mxu0 %v288
    %944 = vmatpush1.msra.mxu0 %v287
    %945 = vmatprep.subr.mxu0 %v291
    %946 = vmatpush1.msra.mxu0 %v290
    %947 = vmatprep.subr.mxu0 %v294
    %948 = vmatpush1.msra.mxu0 %v293
    %949 = vmatprep.subr.mxu0 %v297
    %950 = vmatpush1.msra.mxu0 %v296
    %951 = vmatprep.subr.mxu0 %v300
    %952 = vmatpush1.msra.mxu0 %v299
    %953 = vmatprep.subr.mxu0 %v303
    %954 = vmatpush1.msra.mxu0 %v302
    %955 = vmatprep.subr.mxu0 %v306
    %956 = vmatpush1.msra.mxu0 %v305
    %957 = vmatprep.subr.mxu0 %v309
    %958 = vmatpush1.msra.mxu0 %v308
    %959 = vmatprep.subr.mxu0 %v312
    %960 = vmatpush1.msra.mxu0 %v311
    %961 = vmatprep.subr.mxu0 %v315
    %962 = vmatpush1.msra.mxu0 %v314
    %963 = vmatprep.subr.mxu0 %v318
    %964 = vmatpush1.msra.mxu0 %v317
    %965 = vmatprep.subr.mxu0 %v321
    %966 = vmatpush1.msra.mxu0 %v320
    %967 = vmatprep.subr.mxu0 %v324
    %968 = vmatpush1.msra.mxu0 %v323
    %969 = vmatprep.subr.mxu0 %v327
    %970 = vmatpush1.msra.mxu0 %v326
    %971 = vmatprep.subr.mxu0 0.0
    %972 = vmatpush1.msra.mxu0 0.0
    %973 = vmatprep.subr.mxu0 0.0
    %974 = vmatpush1.msra.mxu0 0.0
    %975 = vmatprep.subr.mxu0 0.0
    %976 = vmatpush1.msra.mxu0 0.0
    %977 = vmatprep.subr.mxu0 0.0
    %978 = vmatpush1.msra.mxu0 0.0
    %979 = vmatprep.subr.mxu0 0.0
    %980 = vmatpush1.msra.mxu0 0.0
    %981 = vmatprep.subr.mxu0 0.0
    %982 = vmatpush1.msra.mxu0 0.0
    %983 = vmatprep.subr.mxu0 0.0
    %984 = vmatpush1.msra.mxu0 0.0
    %985 = vmatprep.subr.mxu0 0.0
    %986 = vmatpush1.msra.mxu0 0.0
    %987 = vmatprep.subr.mxu0 0.0
    %988 = vmatpush1.msra.mxu0 0.0
    %989 = vmatprep.subr.mxu0 0.0
    %990 = vmatpush1.msra.mxu0 0.0
    %991 = vmatprep.subr.mxu0 0.0
    %992 = vmatpush1.msra.mxu0 0.0
    %993 = vmatprep.subr.mxu0 0.0
    %994 = vmatpush1.msra.mxu0 0.0
    %995 = vmatprep.subr.mxu0 0.0
    %996 = vmatpush1.msra.mxu0 0.0
    %997 = vmatprep.subr.mxu0 0.0
    %998 = vmatpush1.msra.mxu0 0.0
    %999 = vmatprep.subr.mxu0 0.0
    %1000 = vmatpush1.msra.mxu0 0.0
    %1001 = vmatprep.subr.mxu0 0.0
    %1002 = vmatpush1.msra.mxu0 0.0
    %1003 = vmatprep.mubr.f32.mxu0 0.0
    %1004 = vmatmul.mubr.f32.gmra.mrb[0].mxu0 %v506
    %v1005 = vpop.f32.mrb[0].mxu0
    %v1006 = vadd.f32 %v333, %v1005
    %v1007 = vpop.f32.mrb[0].mxu0
    %v1008 = vadd.f32 %v337, %v1007
    %1009 = vdwg.mxu0
    %1010 = vmatprep.subr.mxu0 0.0
    %1011 = vmatpush1.msra.mxu0 %v283
    %1012 = vmatprep.subr.mxu0 0.0
    %1013 = vmatpush1.msra.mxu0 %v286
    %1014 = vmatprep.subr.mxu0 0.0
    %1015 = vmatpush1.msra.mxu0 %v289
    %1016 = vmatprep.subr.mxu0 0.0
    %1017 = vmatpush1.msra.mxu0 %v292
    %1018 = vmatprep.subr.mxu0 0.0
    %1019 = vmatpush1.msra.mxu0 %v295
    %1020 = vmatprep.subr.mxu0 0.0
    %1021 = vmatpush1.msra.mxu0 %v298
    %1022 = vmatprep.subr.mxu0 0.0
    %1023 = vmatpush1.msra.mxu0 %v301
    %1024 = vmatprep.subr.mxu0 0.0
    %1025 = vmatpush1.msra.mxu0 %v304
    %1026 = vmatprep.subr.mxu0 0.0
    %1027 = vmatpush1.msra.mxu0 %v307
    %1028 = vmatprep.subr.mxu0 0.0
    %1029 = vmatpush1.msra.mxu0 %v310
    %1030 = vmatprep.subr.mxu0 0.0
    %1031 = vmatpush1.msra.mxu0 %v313
    %1032 = vmatprep.subr.mxu0 0.0
    %1033 = vmatpush1.msra.mxu0 %v316
    %1034 = vmatprep.subr.mxu0 0.0
    %1035 = vmatpush1.msra.mxu0 %v319
    %1036 = vmatprep.subr.mxu0 0.0
    %1037 = vmatpush1.msra.mxu0 %v322
    %1038 = vmatprep.subr.mxu0 0.0
    %1039 = vmatpush1.msra.mxu0 %v325
    %1040 = vmatprep.subr.mxu0 0.0
    %1041 = vmatpush1.msra.mxu0 %v328
    %1042 = vmatprep.subr.mxu0 0.0
    %1043 = vmatpush1.msra.mxu0 0.0
    %1044 = vmatprep.subr.mxu0 0.0
    %1045 = vmatpush1.msra.mxu0 0.0
    %1046 = vmatprep.subr.mxu0 0.0
    %1047 = vmatpush1.msra.mxu0 0.0
    %1048 = vmatprep.subr.mxu0 0.0
    %1049 = vmatpush1.msra.mxu0 0.0
    %1050 = vmatprep.subr.mxu0 0.0
    %1051 = vmatpush1.msra.mxu0 0.0
    %1052 = vmatprep.subr.mxu0 0.0
    %1053 = vmatpush1.msra.mxu0 0.0
    %1054 = vmatprep.subr.mxu0 0.0
    %1055 = vmatpush1.msra.mxu0 0.0
    %1056 = vmatprep.subr.mxu0 0.0
    %1057 = vmatpush1.msra.mxu0 0.0
    %1058 = vmatprep.subr.mxu0 0.0
    %1059 = vmatpush1.msra.mxu0 0.0
    %1060 = vmatprep.subr.mxu0 0.0
    %1061 = vmatpush1.msra.mxu0 0.0
    %1062 = vmatprep.subr.mxu0 0.0
    %1063 = vmatpush1.msra.mxu0 0.0
    %1064 = vmatprep.subr.mxu0 0.0
    %1065 = vmatpush1.msra.mxu0 0.0
    %1066 = vmatprep.subr.mxu0 0.0
    %1067 = vmatpush1.msra.mxu0 0.0
    %1068 = vmatprep.subr.mxu0 0.0
    %1069 = vmatpush1.msra.mxu0 0.0
    %1070 = vmatprep.subr.mxu0 0.0
    %1071 = vmatpush1.msra.mxu0 0.0
    %1072 = vmatprep.subr.mxu0 0.0
    %1073 = vmatpush1.msra.mxu0 0.0
    %1074 = vmatprep.mubr.f32.mxu0 0.0
    %1075 = vmatmul.mubr.f32.gmra.mrb[0].mxu0 %v506
    %v1076 = vpop.f32.mrb[0].mxu0
    %v1077 = vadd.f32 %v341, %v1076
    %v1078 = vpop.f32.mrb[0].mxu0
    %1079 = vdwg.mxu0
    %v1081 = vrot.slane %v1006, 6
    %v1083 = vadd.f32 %v193, %v1081
    %v1084 = vxor.u32 %v1083, 2147483648
    %v1085 = vmul.f32 %v1084, 1.442695
    %v1086 = vpow.pop %v1085
    %v1087 = vadd.f32 %v1086, 1.0
    %v1088 = vrcp.pop %v1087
    %v1089 = vmul.f32 1.0, %v1088
    %v1091 = vrot.slane %v1008, 6
    %v1093 = vadd.f32 %v195, %v1091
    %v1094 = vxor.u32 %v1093, 2147483648
    %v1095 = vmul.f32 %v1094, 1.442695
    %v1096 = vpow.pop %v1095
    %v1097 = vadd.f32 %v1096, 1.0
    %v1098 = vrcp.pop %v1097
    %v1099 = vmul.f32 1.0, %v1098
    %v1101 = vrot.slane %v1077, 6
    %v1103 = vmul.f32 %v1089, %v1101
    %v1104 = vadd.f32 %v270, %v1103
    %v1105 = vtanh.pop %v1104
    %v1106 = vsub.f32 1.0, %v1099
    %v1107 = vmul.f32 %v1106, %v1105
    %v1109 = vrot.slane %v506, 6
    %v1111 = vmul.f32 %v1099, %v1109
    %v1112 = vadd.f32 %v1107, %v1111
    %v1114 = vrot.slane %v1112, 2
    %1116 = vmatprep.subr.mxu0 %v508
    %1117 = vmatpush1.msra.mxu0 %v507
    %1118 = vmatprep.subr.mxu0 %v511
    %1119 = vmatpush1.msra.mxu0 %v510
    %1120 = vmatprep.subr.mxu0 %v514
    %1121 = vmatpush1.msra.mxu0 %v513
    %1122 = vmatprep.subr.mxu0 %v517
    %1123 = vmatpush1.msra.mxu0 %v516
    %1124 = vmatprep.subr.mxu0 %v520
    %1125 = vmatpush1.msra.mxu0 %v519
    %1126 = vmatprep.subr.mxu0 %v523
    %1127 = vmatpush1.msra.mxu0 %v522
    %1128 = vmatprep.subr.mxu0 %v526
    %1129 = vmatpush1.msra.mxu0 %v525
    %1130 = vmatprep.subr.mxu0 %v529
    %1131 = vmatpush1.msra.mxu0 %v528
    %1132 = vmatprep.subr.mxu0 %v532
    %1133 = vmatpush1.msra.mxu0 %v531
    %1134 = vmatprep.subr.mxu0 %v535
    %1135 = vmatpush1.msra.mxu0 %v534
    %1136 = vmatprep.subr.mxu0 %v538
    %1137 = vmatpush1.msra.mxu0 %v537
    %1138 = vmatprep.subr.mxu0 %v541
    %1139 = vmatpush1.msra.mxu0 %v540
    %1140 = vmatprep.subr.mxu0 %v544
    %1141 = vmatpush1.msra.mxu0 %v543
    %1142 = vmatprep.subr.mxu0 %v547
    %1143 = vmatpush1.msra.mxu0 %v546
    %1144 = vmatprep.subr.mxu0 %v550
    %1145 = vmatpush1.msra.mxu0 %v549
    %1146 = vmatprep.subr.mxu0 %v553
    %1147 = vmatpush1.msra.mxu0 %v552
    %1148 = vmatprep.subr.mxu0 0.0
    %1149 = vmatpush1.msra.mxu0 0.0
    %1150 = vmatprep.subr.mxu0 0.0
    %1151 = vmatpush1.msra.mxu0 0.0
    %1152 = vmatprep.subr.mxu0 0.0
    %1153 = vmatpush1.msra.mxu0 0.0
    %1154 = vmatprep.subr.mxu0 0.0
    %1155 = vmatpush1.msra.mxu0 0.0
    %1156 = vmatprep.subr.mxu0 0.0
    %1157 = vmatpush1.msra.mxu0 0.0
    %1158 = vmatprep.subr.mxu0 0.0
    %1159 = vmatpush1.msra.mxu0 0.0
    %1160 = vmatprep.subr.mxu0 0.0
    %1161 = vmatpush1.msra.mxu0 0.0
    %1162 = vmatprep.subr.mxu0 0.0
    %1163 = vmatpush1.msra.mxu0 0.0
    %1164 = vmatprep.subr.mxu0 0.0
    %1165 = vmatpush1.msra.mxu0 0.0
    %1166 = vmatprep.subr.mxu0 0.0
    %1167 = vmatpush1.msra.mxu0 0.0
    %1168 = vmatprep.subr.mxu0 0.0
    %1169 = vmatpush1.msra.mxu0 0.0
    %1170 = vmatprep.subr.mxu0 0.0
    %1171 = vmatpush1.msra.mxu0 0.0
    %1172 = vmatprep.subr.mxu0 0.0
    %1173 = vmatpush1.msra.mxu0 0.0
    %1174 = vmatprep.subr.mxu0 0.0
    %1175 = vmatpush1.msra.mxu0 0.0
    %1176 = vmatprep.subr.mxu0 0.0
    %1177 = vmatpush1.msra.mxu0 0.0
    %1178 = vmatprep.subr.mxu0 0.0
    %1179 = vmatpush1.msra.mxu0 0.0
    %1180 = vmatprep.mubr.f32.mxu0 0.0
    %1181 = vmatmul.mubr.f32.gmra.mrb[0].mxu0 %v1114
    %v1182 = vpop.f32.mrb[0].mxu0
    %v1183 = vadd.f32 %v559, %v1182
    %v1184 = vpop.f32.mrb[0].mxu0
    %v1185 = vadd.f32 %v563, %v1184
    %1186 = vdwg.mxu0
    %1187 = vmatprep.subr.mxu0 0.0
    %1188 = vmatpush1.msra.mxu0 %v509
    %1189 = vmatprep.subr.mxu0 0.0
    %1190 = vmatpush1.msra.mxu0 %v512
    %1191 = vmatprep.subr.mxu0 0.0
    %1192 = vmatpush1.msra.mxu0 %v515
    %1193 = vmatprep.subr.mxu0 0.0
    %1194 = vmatpush1.msra.mxu0 %v518
    %1195 = vmatprep.subr.mxu0 0.0
    %1196 = vmatpush1.msra.mxu0 %v521
    %1197 = vmatprep.subr.mxu0 0.0
    %1198 = vmatpush1.msra.mxu0 %v524
    %1199 = vmatprep.subr.mxu0 0.0
    %1200 = vmatpush1.msra.mxu0 %v527
    %1201 = vmatprep.subr.mxu0 0.0
    %1202 = vmatpush1.msra.mxu0 %v530
    %1203 = vmatprep.subr.mxu0 0.0
    %1204 = vmatpush1.msra.mxu0 %v533
    %1205 = vmatprep.subr.mxu0 0.0
    %1206 = vmatpush1.msra.mxu0 %v536
    %1207 = vmatprep.subr.mxu0 0.0
    %1208 = vmatpush1.msra.mxu0 %v539
    %1209 = vmatprep.subr.mxu0 0.0
    %1210 = vmatpush1.msra.mxu0 %v542
    %1211 = vmatprep.subr.mxu0 0.0
    %1212 = vmatpush1.msra.mxu0 %v545
    %1213 = vmatprep.subr.mxu0 0.0
    %1214 = vmatpush1.msra.mxu0 %v548
    %1215 = vmatprep.subr.mxu0 0.0
    %1216 = vmatpush1.msra.mxu0 %v551
    %1217 = vmatprep.subr.mxu0 0.0
    %1218 = vmatpush1.msra.mxu0 %v554
    %1219 = vmatprep.subr.mxu0 0.0
    %1220 = vmatpush1.msra.mxu0 0.0
    %1221 = vmatprep.subr.mxu0 0.0
    %1222 = vmatpush1.msra.mxu0 0.0
    %1223 = vmatprep.subr.mxu0 0.0
    %1224 = vmatpush1.msra.mxu0 0.0
    %1225 = vmatprep.subr.mxu0 0.0
    %1226 = vmatpush1.msra.mxu0 0.0
    %1227 = vmatprep.subr.mxu0 0.0
    %1228 = vmatpush1.msra.mxu0 0.0
    %1229 = vmatprep.subr.mxu0 0.0
    %1230 = vmatpush1.msra.mxu0 0.0
    %1231 = vmatprep.subr.mxu0 0.0
    %1232 = vmatpush1.msra.mxu0 0.0
    %1233 = vmatprep.subr.mxu0 0.0
    %1234 = vmatpush1.msra.mxu0 0.0
    %1235 = vmatprep.subr.mxu0 0.0
    %1236 = vmatpush1.msra.mxu0 0.0
    %1237 = vmatprep.subr.mxu0 0.0
    %1238 = vmatpush1.msra.mxu0 0.0
    %1239 = vmatprep.subr.mxu0 0.0
    %1240 = vmatpush1.msra.mxu0 0.0
    %1241 = vmatprep.subr.mxu0 0.0
    %1242 = vmatpush1.msra.mxu0 0.0
    %1243 = vmatprep.subr.mxu0 0.0
    %1244 = vmatpush1.msra.mxu0 0.0
    %1245 = vmatprep.subr.mxu0 0.0
    %1246 = vmatpush1.msra.mxu0 0.0
    %1247 = vmatprep.subr.mxu0 0.0
    %1248 = vmatpush1.msra.mxu0 0.0
    %1249 = vmatprep.subr.mxu0 0.0
    %1250 = vmatpush1.msra.mxu0 0.0
    %1251 = vmatprep.mubr.f32.mxu0 0.0
    %1252 = vmatmul.mubr.f32.gmra.mrb[0].mxu0 %v1114
    %v1253 = vpop.f32.mrb[0].mxu0
    %v1254 = vadd.f32 %v567, %v1253
    %v1255 = vpop.f32.mrb[0].mxu0
    %1256 = vdwg.mxu0
    %1257 = vmatprep.subr.mxu0 %v713
    %1258 = vmatpush1.msra.mxu0 %v712
    %1259 = vmatprep.subr.mxu0 %v716
    %1260 = vmatpush1.msra.mxu0 %v715
    %1261 = vmatprep.subr.mxu0 %v719
    %1262 = vmatpush1.msra.mxu0 %v718
    %1263 = vmatprep.subr.mxu0 %v722
    %1264 = vmatpush1.msra.mxu0 %v721
    %1265 = vmatprep.subr.mxu0 %v725
    %1266 = vmatpush1.msra.mxu0 %v724
    %1267 = vmatprep.subr.mxu0 %v728
    %1268 = vmatpush1.msra.mxu0 %v727
    %1269 = vmatprep.subr.mxu0 %v731
    %1270 = vmatpush1.msra.mxu0 %v730
    %1271 = vmatprep.subr.mxu0 %v734
    %1272 = vmatpush1.msra.mxu0 %v733
    %1273 = vmatprep.subr.mxu0 %v737
    %1274 = vmatpush1.msra.mxu0 %v736
    %1275 = vmatprep.subr.mxu0 %v740
    %1276 = vmatpush1.msra.mxu0 %v739
    %1277 = vmatprep.subr.mxu0 %v743
    %1278 = vmatpush1.msra.mxu0 %v742
    %1279 = vmatprep.subr.mxu0 %v746
    %1280 = vmatpush1.msra.mxu0 %v745
    %1281 = vmatprep.subr.mxu0 %v749
    %1282 = vmatpush1.msra.mxu0 %v748
    %1283 = vmatprep.subr.mxu0 %v752
    %1284 = vmatpush1.msra.mxu0 %v751
    %1285 = vmatprep.subr.mxu0 %v755
    %1286 = vmatpush1.msra.mxu0 %v754
    %1287 = vmatprep.subr.mxu0 %v758
    %1288 = vmatpush1.msra.mxu0 %v757
    %1289 = vmatprep.subr.mxu0 0.0
    %1290 = vmatpush1.msra.mxu0 0.0
    %1291 = vmatprep.subr.mxu0 0.0
    %1292 = vmatpush1.msra.mxu0 0.0
    %1293 = vmatprep.subr.mxu0 0.0
    %1294 = vmatpush1.msra.mxu0 0.0
    %1295 = vmatprep.subr.mxu0 0.0
    %1296 = vmatpush1.msra.mxu0 0.0
    %1297 = vmatprep.subr.mxu0 0.0
    %1298 = vmatpush1.msra.mxu0 0.0
    %1299 = vmatprep.subr.mxu0 0.0
    %1300 = vmatpush1.msra.mxu0 0.0
    %1301 = vmatprep.subr.mxu0 0.0
    %1302 = vmatpush1.msra.mxu0 0.0
    %1303 = vmatprep.subr.mxu0 0.0
    %1304 = vmatpush1.msra.mxu0 0.0
    %1305 = vmatprep.subr.mxu0 0.0
    %1306 = vmatpush1.msra.mxu0 0.0
    %1307 = vmatprep.subr.mxu0 0.0
    %1308 = vmatpush1.msra.mxu0 0.0
    %1309 = vmatprep.subr.mxu0 0.0
    %1310 = vmatpush1.msra.mxu0 0.0
    %1311 = vmatprep.subr.mxu0 0.0
    %1312 = vmatpush1.msra.mxu0 0.0
    %1313 = vmatprep.subr.mxu0 0.0
    %1314 = vmatpush1.msra.mxu0 0.0
    %1315 = vmatprep.subr.mxu0 0.0
    %1316 = vmatpush1.msra.mxu0 0.0
    %1317 = vmatprep.subr.mxu0 0.0
    %1318 = vmatpush1.msra.mxu0 0.0
    %1319 = vmatprep.subr.mxu0 0.0
    %1320 = vmatpush1.msra.mxu0 0.0
    %1321 = vmatprep.mubr.f32.mxu0 0.0
    %1322 = vmatmul.mubr.f32.gmra.mrb[0].mxu0 %v937
    %v1323 = vpop.f32.mrb[0].mxu0
    %v1324 = vadd.f32 %v764, %v1323
    %v1325 = vpop.f32.mrb[0].mxu0
    %v1326 = vadd.f32 %v768, %v1325
    %1327 = vdwg.mxu0
    %1328 = vmatprep.subr.mxu0 0.0
    %1329 = vmatpush1.msra.mxu0 %v714
    %1330 = vmatprep.subr.mxu0 0.0
    %1331 = vmatpush1.msra.mxu0 %v717
    %1332 = vmatprep.subr.mxu0 0.0
    %1333 = vmatpush1.msra.mxu0 %v720
    %1334 = vmatprep.subr.mxu0 0.0
    %1335 = vmatpush1.msra.mxu0 %v723
    %1336 = vmatprep.subr.mxu0 0.0
    %1337 = vmatpush1.msra.mxu0 %v726
    %1338 = vmatprep.subr.mxu0 0.0
    %1339 = vmatpush1.msra.mxu0 %v729
    %1340 = vmatprep.subr.mxu0 0.0
    %1341 = vmatpush1.msra.mxu0 %v732
    %1342 = vmatprep.subr.mxu0 0.0
    %1343 = vmatpush1.msra.mxu0 %v735
    %1344 = vmatprep.subr.mxu0 0.0
    %1345 = vmatpush1.msra.mxu0 %v738
    %1346 = vmatprep.subr.mxu0 0.0
    %1347 = vmatpush1.msra.mxu0 %v741
    %1348 = vmatprep.subr.mxu0 0.0
    %1349 = vmatpush1.msra.mxu0 %v744
    %1350 = vmatprep.subr.mxu0 0.0
    %1351 = vmatpush1.msra.mxu0 %v747
    %1352 = vmatprep.subr.mxu0 0.0
    %1353 = vmatpush1.msra.mxu0 %v750
    %1354 = vmatprep.subr.mxu0 0.0
    %1355 = vmatpush1.msra.mxu0 %v753
    %1356 = vmatprep.subr.mxu0 0.0
    %1357 = vmatpush1.msra.mxu0 %v756
    %1358 = vmatprep.subr.mxu0 0.0
    %1359 = vmatpush1.msra.mxu0 %v759
    %1360 = vmatprep.subr.mxu0 0.0
    %1361 = vmatpush1.msra.mxu0 0.0
    %1362 = vmatprep.subr.mxu0 0.0
    %1363 = vmatpush1.msra.mxu0 0.0
    %1364 = vmatprep.subr.mxu0 0.0
    %1365 = vmatpush1.msra.mxu0 0.0
    %1366 = vmatprep.subr.mxu0 0.0
    %1367 = vmatpush1.msra.mxu0 0.0
    %1368 = vmatprep.subr.mxu0 0.0
    %1369 = vmatpush1.msra.mxu0 0.0
    %1370 = vmatprep.subr.mxu0 0.0
    %1371 = vmatpush1.msra.mxu0 0.0
    %1372 = vmatprep.subr.mxu0 0.0
    %1373 = vmatpush1.msra.mxu0 0.0
    %1374 = vmatprep.subr.mxu0 0.0
    %1375 = vmatpush1.msra.mxu0 0.0
    %1376 = vmatprep.subr.mxu0 0.0
    %1377 = vmatpush1.msra.mxu0 0.0
    %1378 = vmatprep.subr.mxu0 0.0
    %1379 = vmatpush1.msra.mxu0 0.0
    %1380 = vmatprep.subr.mxu0 0.0
    %1381 = vmatpush1.msra.mxu0 0.0
    %1382 = vmatprep.subr.mxu0 0.0
    %1383 = vmatpush1.msra.mxu0 0.0
    %1384 = vmatprep.subr.mxu0 0.0
    %1385 = vmatpush1.msra.mxu0 0.0
    %1386 = vmatprep.subr.mxu0 0.0
    %1387 = vmatpush1.msra.mxu0 0.0
    %1388 = vmatprep.subr.mxu0 0.0
    %1389 = vmatpush1.msra.mxu0 0.0
    %1390 = vmatprep.subr.mxu0 0.0
    %1391 = vmatpush1.msra.mxu0 0.0
    %1392 = vmatprep.mubr.f32.mxu0 0.0
    %1393 = vmatmul.mubr.f32.gmra.mrb[0].mxu0 %v937
    %v1394 = vpop.f32.mrb[0].mxu0
    %v1395 = vadd.f32 %v772, %v1394
    %v1396 = vpop.f32.mrb[0].mxu0
    %1397 = vdwg.mxu0
    %v1398 = vadd.f32 %v1183, %v1324
    %v1399 = vxor.u32 %v1398, 2147483648
    %v1400 = vmul.f32 %v1399, 1.442695
    %v1401 = vpow.pop %v1400
    %v1402 = vadd.f32 %v1401, 1.0
    %v1403 = vrcp.pop %v1402
    %v1404 = vmul.f32 1.0, %v1403
    %v1405 = vadd.f32 %v1185, %v1326
    %v1406 = vxor.u32 %v1405, 2147483648
    %v1407 = vmul.f32 %v1406, 1.442695
    %v1408 = vpow.pop %v1407
    %v1409 = vadd.f32 %v1408, 1.0
    %v1410 = vrcp.pop %v1409
    %v1411 = vmul.f32 1.0, %v1410
    %v1412 = vmul.f32 %v1404, %v1395
    %v1413 = vadd.f32 %v1254, %v1412
    %v1414 = vtanh.pop %v1413
    %v1415 = vsub.f32 1.0, %v1411
    %v1416 = vmul.f32 %v1415, %v1414
    %v1417 = vmul.f32 %v1411, %v937
    %v1418 = vadd.f32 %v1416, %v1417
    %v1419 = vadd.f32 %v938, %v1418
    %1420 = vmatprep.subr.mxu0 %v282
    %1421 = vmatpush1.msra.mxu0 %v281
    %1422 = vmatprep.subr.mxu0 %v285
    %1423 = vmatpush1.msra.mxu0 %v284
    %1424 = vmatprep.subr.mxu0 %v288
    %1425 = vmatpush1.msra.mxu0 %v287
    %1426 = vmatprep.subr.mxu0 %v291
    %1427 = vmatpush1.msra.mxu0 %v290
    %1428 = vmatprep.subr.mxu0 %v294
    %1429 = vmatpush1.msra.mxu0 %v293
    %1430 = vmatprep.subr.mxu0 %v297
    %1431 = vmatpush1.msra.mxu0 %v296
    %1432 = vmatprep.subr.mxu0 %v300
    %1433 = vmatpush1.msra.mxu0 %v299
    %1434 = vmatprep.subr.mxu0 %v303
    %1435 = vmatpush1.msra.mxu0 %v302
    %1436 = vmatprep.subr.mxu0 %v306
    %1437 = vmatpush1.msra.mxu0 %v305
    %1438 = vmatprep.subr.mxu0 %v309
    %1439 = vmatpush1.msra.mxu0 %v308
    %1440 = vmatprep.subr.mxu0 %v312
    %1441 = vmatpush1.msra.mxu0 %v311
    %1442 = vmatprep.subr.mxu0 %v315
    %1443 = vmatpush1.msra.mxu0 %v314
    %1444 = vmatprep.subr.mxu0 %v318
    %1445 = vmatpush1.msra.mxu0 %v317
    %1446 = vmatprep.subr.mxu0 %v321
    %1447 = vmatpush1.msra.mxu0 %v320
    %1448 = vmatprep.subr.mxu0 %v324
    %1449 = vmatpush1.msra.mxu0 %v323
    %1450 = vmatprep.subr.mxu0 %v327
    %1451 = vmatpush1.msra.mxu0 %v326
    %1452 = vmatprep.subr.mxu0 0.0
    %1453 = vmatpush1.msra.mxu0 0.0
    %1454 = vmatprep.subr.mxu0 0.0
    %1455 = vmatpush1.msra.mxu0 0.0
    %1456 = vmatprep.subr.mxu0 0.0
    %1457 = vmatpush1.msra.mxu0 0.0
    %1458 = vmatprep.subr.mxu0 0.0
    %1459 = vmatpush1.msra.mxu0 0.0
    %1460 = vmatprep.subr.mxu0 0.0
    %1461 = vmatpush1.msra.mxu0 0.0
    %1462 = vmatprep.subr.mxu0 0.0
    %1463 = vmatpush1.msra.mxu0 0.0
    %1464 = vmatprep.subr.mxu0 0.0
    %1465 = vmatpush1.msra.mxu0 0.0
    %1466 = vmatprep.subr.mxu0 0.0
    %1467 = vmatpush1.msra.mxu0 0.0
    %1468 = vmatprep.subr.mxu0 0.0
    %1469 = vmatpush1.msra.mxu0 0.0
    %1470 = vmatprep.subr.mxu0 0.0
    %1471 = vmatpush1.msra.mxu0 0.0
    %1472 = vmatprep.subr.mxu0 0.0
    %1473 = vmatpush1.msra.mxu0 0.0
    %1474 = vmatprep.subr.mxu0 0.0
    %1475 = vmatpush1.msra.mxu0 0.0
    %1476 = vmatprep.subr.mxu0 0.0
    %1477 = vmatpush1.msra.mxu0 0.0
    %1478 = vmatprep.subr.mxu0 0.0
    %1479 = vmatpush1.msra.mxu0 0.0
    %1480 = vmatprep.subr.mxu0 0.0
    %1481 = vmatpush1.msra.mxu0 0.0
    %1482 = vmatprep.subr.mxu0 0.0
    %1483 = vmatpush1.msra.mxu0 0.0
    %1484 = vmatprep.mubr.f32.mxu0 0.0
    %1485 = vmatmul.mubr.f32.gmra.mrb[0].mxu0 %v1114
    %v1486 = vpop.f32.mrb[0].mxu0
    %v1487 = vadd.f32 %v333, %v1486
    %v1488 = vpop.f32.mrb[0].mxu0
    %v1489 = vadd.f32 %v337, %v1488
    %1490 = vdwg.mxu0
    %1491 = vmatprep.subr.mxu0 0.0
    %1492 = vmatpush1.msra.mxu0 %v283
    %1493 = vmatprep.subr.mxu0 0.0
    %1494 = vmatpush1.msra.mxu0 %v286
    %1495 = vmatprep.subr.mxu0 0.0
    %1496 = vmatpush1.msra.mxu0 %v289
    %1497 = vmatprep.subr.mxu0 0.0
    %1498 = vmatpush1.msra.mxu0 %v292
    %1499 = vmatprep.subr.mxu0 0.0
    %1500 = vmatpush1.msra.mxu0 %v295
    %1501 = vmatprep.subr.mxu0 0.0
    %1502 = vmatpush1.msra.mxu0 %v298
    %1503 = vmatprep.subr.mxu0 0.0
    %1504 = vmatpush1.msra.mxu0 %v301
    %1505 = vmatprep.subr.mxu0 0.0
    %1506 = vmatpush1.msra.mxu0 %v304
    %1507 = vmatprep.subr.mxu0 0.0
    %1508 = vmatpush1.msra.mxu0 %v307
    %1509 = vmatprep.subr.mxu0 0.0
    %1510 = vmatpush1.msra.mxu0 %v310
    %1511 = vmatprep.subr.mxu0 0.0
    %1512 = vmatpush1.msra.mxu0 %v313
    %1513 = vmatprep.subr.mxu0 0.0
    %1514 = vmatpush1.msra.mxu0 %v316
    %1515 = vmatprep.subr.mxu0 0.0
    %1516 = vmatpush1.msra.mxu0 %v319
    %1517 = vmatprep.subr.mxu0 0.0
    %1518 = vmatpush1.msra.mxu0 %v322
    %1519 = vmatprep.subr.mxu0 0.0
    %1520 = vmatpush1.msra.mxu0 %v325
    %1521 = vmatprep.subr.mxu0 0.0
    %1522 = vmatpush1.msra.mxu0 %v328
    %1523 = vmatprep.subr.mxu0 0.0
    %1524 = vmatpush1.msra.mxu0 0.0
    %1525 = vmatprep.subr.mxu0 0.0
    %1526 = vmatpush1.msra.mxu0 0.0
    %1527 = vmatprep.subr.mxu0 0.0
    %1528 = vmatpush1.msra.mxu0 0.0
    %1529 = vmatprep.subr.mxu0 0.0
    %1530 = vmatpush1.msra.mxu0 0.0
    %1531 = vmatprep.subr.mxu0 0.0
    %1532 = vmatpush1.msra.mxu0 0.0
    %1533 = vmatprep.subr.mxu0 0.0
    %1534 = vmatpush1.msra.mxu0 0.0
    %1535 = vmatprep.subr.mxu0 0.0
    %1536 = vmatpush1.msra.mxu0 0.0
    %1537 = vmatprep.subr.mxu0 0.0
    %1538 = vmatpush1.msra.mxu0 0.0
    %1539 = vmatprep.subr.mxu0 0.0
    %1540 = vmatpush1.msra.mxu0 0.0
    %1541 = vmatprep.subr.mxu0 0.0
    %1542 = vmatpush1.msra.mxu0 0.0
    %1543 = vmatprep.subr.mxu0 0.0
    %1544 = vmatpush1.msra.mxu0 0.0
    %1545 = vmatprep.subr.mxu0 0.0
    %1546 = vmatpush1.msra.mxu0 0.0
    %1547 = vmatprep.subr.mxu0 0.0
    %1548 = vmatpush1.msra.mxu0 0.0
    %1549 = vmatprep.subr.mxu0 0.0
    %1550 = vmatpush1.msra.mxu0 0.0
    %1551 = vmatprep.subr.mxu0 0.0
    %1552 = vmatpush1.msra.mxu0 0.0
    %1553 = vmatprep.subr.mxu0 0.0
    %1554 = vmatpush1.msra.mxu0 0.0
    %1555 = vmatprep.mubr.f32.mxu0 0.0
    %1556 = vmatmul.mubr.f32.gmra.mrb[0].mxu0 %v1114
    %v1557 = vpop.f32.mrb[0].mxu0
    %v1558 = vadd.f32 %v341, %v1557
    %v1559 = vpop.f32.mrb[0].mxu0
    %1560 = vdwg.mxu0
    %v1562 = vrot.slane %v1487, 4
    %v1564 = vadd.f32 %v193, %v1562
    %v1565 = vxor.u32 %v1564, 2147483648
    %v1566 = vmul.f32 %v1565, 1.442695
    %v1567 = vpow.pop %v1566
    %v1568 = vadd.f32 %v1567, 1.0
    %v1569 = vrcp.pop %v1568
    %v1570 = vmul.f32 1.0, %v1569
    %v1572 = vrot.slane %v1489, 4
    %v1574 = vadd.f32 %v195, %v1572
    %v1575 = vxor.u32 %v1574, 2147483648
    %v1576 = vmul.f32 %v1575, 1.442695
    %v1577 = vpow.pop %v1576
    %v1578 = vadd.f32 %v1577, 1.0
    %v1579 = vrcp.pop %v1578
    %v1580 = vmul.f32 1.0, %v1579
    %v1582 = vrot.slane %v1558, 4
    %v1584 = vmul.f32 %v1570, %v1582
    %v1585 = vadd.f32 %v270, %v1584
    %v1586 = vtanh.pop %v1585
    %v1587 = vsub.f32 1.0, %v1580
    %v1588 = vmul.f32 %v1587, %v1586
    %v1589 = vrot.slane %v1112, 6
    %v1591 = vmul.f32 %v1580, %v1589
    %v1592 = vadd.f32 %v1588, %v1591
    %v1594 = vrot.slane %v1592, 4
    %1596 = vmatprep.subr.mxu0 %v508
    %1597 = vmatpush1.msra.mxu0 %v507
    %1598 = vmatprep.subr.mxu0 %v511
    %1599 = vmatpush1.msra.mxu0 %v510
    %1600 = vmatprep.subr.mxu0 %v514
    %1601 = vmatpush1.msra.mxu0 %v513
    %1602 = vmatprep.subr.mxu0 %v517
    %1603 = vmatpush1.msra.mxu0 %v516
    %1604 = vmatprep.subr.mxu0 %v520
    %1605 = vmatpush1.msra.mxu0 %v519
    %1606 = vmatprep.subr.mxu0 %v523
    %1607 = vmatpush1.msra.mxu0 %v522
    %1608 = vmatprep.subr.mxu0 %v526
    %1609 = vmatpush1.msra.mxu0 %v525
    %1610 = vmatprep.subr.mxu0 %v529
    %1611 = vmatpush1.msra.mxu0 %v528
    %1612 = vmatprep.subr.mxu0 %v532
    %1613 = vmatpush1.msra.mxu0 %v531
    %1614 = vmatprep.subr.mxu0 %v535
    %1615 = vmatpush1.msra.mxu0 %v534
    %1616 = vmatprep.subr.mxu0 %v538
    %1617 = vmatpush1.msra.mxu0 %v537
    %1618 = vmatprep.subr.mxu0 %v541
    %1619 = vmatpush1.msra.mxu0 %v540
    %1620 = vmatprep.subr.mxu0 %v544
    %1621 = vmatpush1.msra.mxu0 %v543
    %1622 = vmatprep.subr.mxu0 %v547
    %1623 = vmatpush1.msra.mxu0 %v546
    %1624 = vmatprep.subr.mxu0 %v550
    %1625 = vmatpush1.msra.mxu0 %v549
    %1626 = vmatprep.subr.mxu0 %v553
    %1627 = vmatpush1.msra.mxu0 %v552
    %1628 = vmatprep.subr.mxu0 0.0
    %1629 = vmatpush1.msra.mxu0 0.0
    %1630 = vmatprep.subr.mxu0 0.0
    %1631 = vmatpush1.msra.mxu0 0.0
    %1632 = vmatprep.subr.mxu0 0.0
    %1633 = vmatpush1.msra.mxu0 0.0
    %1634 = vmatprep.subr.mxu0 0.0
    %1635 = vmatpush1.msra.mxu0 0.0
    %1636 = vmatprep.subr.mxu0 0.0
    %1637 = vmatpush1.msra.mxu0 0.0
    %1638 = vmatprep.subr.mxu0 0.0
    %1639 = vmatpush1.msra.mxu0 0.0
    %1640 = vmatprep.subr.mxu0 0.0
    %1641 = vmatpush1.msra.mxu0 0.0
    %1642 = vmatprep.subr.mxu0 0.0
    %1643 = vmatpush1.msra.mxu0 0.0
    %1644 = vmatprep.subr.mxu0 0.0
    %1645 = vmatpush1.msra.mxu0 0.0
    %1646 = vmatprep.subr.mxu0 0.0
    %1647 = vmatpush1.msra.mxu0 0.0
    %1648 = vmatprep.subr.mxu0 0.0
    %1649 = vmatpush1.msra.mxu0 0.0
    %1650 = vmatprep.subr.mxu0 0.0
    %1651 = vmatpush1.msra.mxu0 0.0
    %1652 = vmatprep.subr.mxu0 0.0
    %1653 = vmatpush1.msra.mxu0 0.0
    %1654 = vmatprep.subr.mxu0 0.0
    %1655 = vmatpush1.msra.mxu0 0.0
    %1656 = vmatprep.subr.mxu0 0.0
    %1657 = vmatpush1.msra.mxu0 0.0
    %1658 = vmatprep.subr.mxu0 0.0
    %1659 = vmatpush1.msra.mxu0 0.0
    %1660 = vmatprep.mubr.f32.mxu0 0.0
    %1661 = vmatmul.mubr.f32.gmra.mrb[0].mxu0 %v1594
    %v1662 = vpop.f32.mrb[0].mxu0
    %v1663 = vadd.f32 %v559, %v1662
    %v1664 = vpop.f32.mrb[0].mxu0
    %v1665 = vadd.f32 %v563, %v1664
    %1666 = vdwg.mxu0
    %1667 = vmatprep.subr.mxu0 0.0
    %1668 = vmatpush1.msra.mxu0 %v509
    %1669 = vmatprep.subr.mxu0 0.0
    %1670 = vmatpush1.msra.mxu0 %v512
    %1671 = vmatprep.subr.mxu0 0.0
    %1672 = vmatpush1.msra.mxu0 %v515
    %1673 = vmatprep.subr.mxu0 0.0
    %1674 = vmatpush1.msra.mxu0 %v518
    %1675 = vmatprep.subr.mxu0 0.0
    %1676 = vmatpush1.msra.mxu0 %v521
    %1677 = vmatprep.subr.mxu0 0.0
    %1678 = vmatpush1.msra.mxu0 %v524
    %1679 = vmatprep.subr.mxu0 0.0
    %1680 = vmatpush1.msra.mxu0 %v527
    %1681 = vmatprep.subr.mxu0 0.0
    %1682 = vmatpush1.msra.mxu0 %v530
    %1683 = vmatprep.subr.mxu0 0.0
    %1684 = vmatpush1.msra.mxu0 %v533
    %1685 = vmatprep.subr.mxu0 0.0
    %1686 = vmatpush1.msra.mxu0 %v536
    %1687 = vmatprep.subr.mxu0 0.0
    %1688 = vmatpush1.msra.mxu0 %v539
    %1689 = vmatprep.subr.mxu0 0.0
    %1690 = vmatpush1.msra.mxu0 %v542
    %1691 = vmatprep.subr.mxu0 0.0
    %1692 = vmatpush1.msra.mxu0 %v545
    %1693 = vmatprep.subr.mxu0 0.0
    %1694 = vmatpush1.msra.mxu0 %v548
    %1695 = vmatprep.subr.mxu0 0.0
    %1696 = vmatpush1.msra.mxu0 %v551
    %1697 = vmatprep.subr.mxu0 0.0
    %1698 = vmatpush1.msra.mxu0 %v554
    %1699 = vmatprep.subr.mxu0 0.0
    %1700 = vmatpush1.msra.mxu0 0.0
    %1701 = vmatprep.subr.mxu0 0.0
    %1702 = vmatpush1.msra.mxu0 0.0
    %1703 = vmatprep.subr.mxu0 0.0
    %1704 = vmatpush1.msra.mxu0 0.0
    %1705 = vmatprep.subr.mxu0 0.0
    %1706 = vmatpush1.msra.mxu0 0.0
    %1707 = vmatprep.subr.mxu0 0.0
    %1708 = vmatpush1.msra.mxu0 0.0
    %1709 = vmatprep.subr.mxu0 0.0
    %1710 = vmatpush1.msra.mxu0 0.0
    %1711 = vmatprep.subr.mxu0 0.0
    %1712 = vmatpush1.msra.mxu0 0.0
    %1713 = vmatprep.subr.mxu0 0.0
    %1714 = vmatpush1.msra.mxu0 0.0
    %1715 = vmatprep.subr.mxu0 0.0
    %1716 = vmatpush1.msra.mxu0 0.0
    %1717 = vmatprep.subr.mxu0 0.0
    %1718 = vmatpush1.msra.mxu0 0.0
    %1719 = vmatprep.subr.mxu0 0.0
    %1720 = vmatpush1.msra.mxu0 0.0
    %1721 = vmatprep.subr.mxu0 0.0
    %1722 = vmatpush1.msra.mxu0 0.0
    %1723 = vmatprep.subr.mxu0 0.0
    %1724 = vmatpush1.msra.mxu0 0.0
    %1725 = vmatprep.subr.mxu0 0.0
    %1726 = vmatpush1.msra.mxu0 0.0
    %1727 = vmatprep.subr.mxu0 0.0
    %1728 = vmatpush1.msra.mxu0 0.0
    %1729 = vmatprep.subr.mxu0 0.0
    %1730 = vmatpush1.msra.mxu0 0.0
    %1731 = vmatprep.mubr.f32.mxu0 0.0
    %1732 = vmatmul.mubr.f32.gmra.mrb[0].mxu0 %v1594
    %v1733 = vpop.f32.mrb[0].mxu0
    %v1734 = vadd.f32 %v567, %v1733
    %v1735 = vpop.f32.mrb[0].mxu0
    %1736 = vdwg.mxu0
    %1737 = vmatprep.subr.mxu0 %v713
    %1738 = vmatpush1.msra.mxu0 %v712
    %1739 = vmatprep.subr.mxu0 %v716
    %1740 = vmatpush1.msra.mxu0 %v715
    %1741 = vmatprep.subr.mxu0 %v719
    %1742 = vmatpush1.msra.mxu0 %v718
    %1743 = vmatprep.subr.mxu0 %v722
    %1744 = vmatpush1.msra.mxu0 %v721
    %1745 = vmatprep.subr.mxu0 %v725
    %1746 = vmatpush1.msra.mxu0 %v724
    %1747 = vmatprep.subr.mxu0 %v728
    %1748 = vmatpush1.msra.mxu0 %v727
    %1749 = vmatprep.subr.mxu0 %v731
    %1750 = vmatpush1.msra.mxu0 %v730
    %1751 = vmatprep.subr.mxu0 %v734
    %1752 = vmatpush1.msra.mxu0 %v733
    %1753 = vmatprep.subr.mxu0 %v737
    %1754 = vmatpush1.msra.mxu0 %v736
    %1755 = vmatprep.subr.mxu0 %v740
    %1756 = vmatpush1.msra.mxu0 %v739
    %1757 = vmatprep.subr.mxu0 %v743
    %1758 = vmatpush1.msra.mxu0 %v742
    %1759 = vmatprep.subr.mxu0 %v746
    %1760 = vmatpush1.msra.mxu0 %v745
    %1761 = vmatprep.subr.mxu0 %v749
    %1762 = vmatpush1.msra.mxu0 %v748
    %1763 = vmatprep.subr.mxu0 %v752
    %1764 = vmatpush1.msra.mxu0 %v751
    %1765 = vmatprep.subr.mxu0 %v755
    %1766 = vmatpush1.msra.mxu0 %v754
    %1767 = vmatprep.subr.mxu0 %v758
    %1768 = vmatpush1.msra.mxu0 %v757
    %1769 = vmatprep.subr.mxu0 0.0
    %1770 = vmatpush1.msra.mxu0 0.0
    %1771 = vmatprep.subr.mxu0 0.0
    %1772 = vmatpush1.msra.mxu0 0.0
    %1773 = vmatprep.subr.mxu0 0.0
    %1774 = vmatpush1.msra.mxu0 0.0
    %1775 = vmatprep.subr.mxu0 0.0
    %1776 = vmatpush1.msra.mxu0 0.0
    %1777 = vmatprep.subr.mxu0 0.0
    %1778 = vmatpush1.msra.mxu0 0.0
    %1779 = vmatprep.subr.mxu0 0.0
    %1780 = vmatpush1.msra.mxu0 0.0
    %1781 = vmatprep.subr.mxu0 0.0
    %1782 = vmatpush1.msra.mxu0 0.0
    %1783 = vmatprep.subr.mxu0 0.0
    %1784 = vmatpush1.msra.mxu0 0.0
    %1785 = vmatprep.subr.mxu0 0.0
    %1786 = vmatpush1.msra.mxu0 0.0
    %1787 = vmatprep.subr.mxu0 0.0
    %1788 = vmatpush1.msra.mxu0 0.0
    %1789 = vmatprep.subr.mxu0 0.0
    %1790 = vmatpush1.msra.mxu0 0.0
    %1791 = vmatprep.subr.mxu0 0.0
    %1792 = vmatpush1.msra.mxu0 0.0
    %1793 = vmatprep.subr.mxu0 0.0
    %1794 = vmatpush1.msra.mxu0 0.0
    %1795 = vmatprep.subr.mxu0 0.0
    %1796 = vmatpush1.msra.mxu0 0.0
    %1797 = vmatprep.subr.mxu0 0.0
    %1798 = vmatpush1.msra.mxu0 0.0
    %1799 = vmatprep.subr.mxu0 0.0
    %1800 = vmatpush1.msra.mxu0 0.0
    %1801 = vmatprep.mubr.f32.mxu0 0.0
    %1802 = vmatmul.mubr.f32.gmra.mrb[0].mxu0 %v1418
    %v1803 = vpop.f32.mrb[0].mxu0
    %v1804 = vadd.f32 %v764, %v1803
    %v1805 = vpop.f32.mrb[0].mxu0
    %v1806 = vadd.f32 %v768, %v1805
    %1807 = vdwg.mxu0
    %1808 = vmatprep.subr.mxu0 0.0
    %1809 = vmatpush1.msra.mxu0 %v714
    %1810 = vmatprep.subr.mxu0 0.0
    %1811 = vmatpush1.msra.mxu0 %v717
    %1812 = vmatprep.subr.mxu0 0.0
    %1813 = vmatpush1.msra.mxu0 %v720
    %1814 = vmatprep.subr.mxu0 0.0
    %1815 = vmatpush1.msra.mxu0 %v723
    %1816 = vmatprep.subr.mxu0 0.0
    %1817 = vmatpush1.msra.mxu0 %v726
    %1818 = vmatprep.subr.mxu0 0.0
    %1819 = vmatpush1.msra.mxu0 %v729
    %1820 = vmatprep.subr.mxu0 0.0
    %1821 = vmatpush1.msra.mxu0 %v732
    %1822 = vmatprep.subr.mxu0 0.0
    %1823 = vmatpush1.msra.mxu0 %v735
    %1824 = vmatprep.subr.mxu0 0.0
    %1825 = vmatpush1.msra.mxu0 %v738
    %1826 = vmatprep.subr.mxu0 0.0
    %1827 = vmatpush1.msra.mxu0 %v741
    %1828 = vmatprep.subr.mxu0 0.0
    %1829 = vmatpush1.msra.mxu0 %v744
    %1830 = vmatprep.subr.mxu0 0.0
    %1831 = vmatpush1.msra.mxu0 %v747
    %1832 = vmatprep.subr.mxu0 0.0
    %1833 = vmatpush1.msra.mxu0 %v750
    %1834 = vmatprep.subr.mxu0 0.0
    %1835 = vmatpush1.msra.mxu0 %v753
    %1836 = vmatprep.subr.mxu0 0.0
    %1837 = vmatpush1.msra.mxu0 %v756
    %1838 = vmatprep.subr.mxu0 0.0
    %1839 = vmatpush1.msra.mxu0 %v759
    %1840 = vmatprep.subr.mxu0 0.0
    %1841 = vmatpush1.msra.mxu0 0.0
    %1842 = vmatprep.subr.mxu0 0.0
    %1843 = vmatpush1.msra.mxu0 0.0
    %1844 = vmatprep.subr.mxu0 0.0
    %1845 = vmatpush1.msra.mxu0 0.0
    %1846 = vmatprep.subr.mxu0 0.0
    %1847 = vmatpush1.msra.mxu0 0.0
    %1848 = vmatprep.subr.mxu0 0.0
    %1849 = vmatpush1.msra.mxu0 0.0
    %1850 = vmatprep.subr.mxu0 0.0
    %1851 = vmatpush1.msra.mxu0 0.0
    %1852 = vmatprep.subr.mxu0 0.0
    %1853 = vmatpush1.msra.mxu0 0.0
    %1854 = vmatprep.subr.mxu0 0.0
    %1855 = vmatpush1.msra.mxu0 0.0
    %1856 = vmatprep.subr.mxu0 0.0
    %1857 = vmatpush1.msra.mxu0 0.0
    %1858 = vmatprep.subr.mxu0 0.0
    %1859 = vmatpush1.msra.mxu0 0.0
    %1860 = vmatprep.subr.mxu0 0.0
    %1861 = vmatpush1.msra.mxu0 0.0
    %1862 = vmatprep.subr.mxu0 0.0
    %1863 = vmatpush1.msra.mxu0 0.0
    %1864 = vmatprep.subr.mxu0 0.0
    %1865 = vmatpush1.msra.mxu0 0.0
    %1866 = vmatprep.subr.mxu0 0.0
    %1867 = vmatpush1.msra.mxu0 0.0
    %1868 = vmatprep.subr.mxu0 0.0
    %1869 = vmatpush1.msra.mxu0 0.0
    %1870 = vmatprep.subr.mxu0 0.0
    %1871 = vmatpush1.msra.mxu0 0.0
    %1872 = vmatprep.mubr.f32.mxu0 0.0
    %1873 = vmatmul.mubr.f32.gmra.mrb[0].mxu0 %v1418
    %v1874 = vpop.f32.mrb[0].mxu0
    %v1875 = vadd.f32 %v772, %v1874
    %v1876 = vpop.f32.mrb[0].mxu0
    %1877 = vdwg.mxu0
    %v1878 = vadd.f32 %v1663, %v1804
    %v1879 = vxor.u32 %v1878, 2147483648
    %v1880 = vmul.f32 %v1879, 1.442695
    %v1881 = vpow.pop %v1880
    %v1882 = vadd.f32 %v1881, 1.0
    %v1883 = vrcp.pop %v1882
    %v1884 = vmul.f32 1.0, %v1883
    %v1885 = vadd.f32 %v1665, %v1806
    %v1886 = vxor.u32 %v1885, 2147483648
    %v1887 = vmul.f32 %v1886, 1.442695
    %v1888 = vpow.pop %v1887
    %v1889 = vadd.f32 %v1888, 1.0
    %v1890 = vrcp.pop %v1889
    %v1891 = vmul.f32 1.0, %v1890
    %v1892 = vmul.f32 %v1884, %v1875
    %v1893 = vadd.f32 %v1734, %v1892
    %v1894 = vtanh.pop %v1893
    %v1895 = vsub.f32 1.0, %v1891
    %v1896 = vmul.f32 %v1895, %v1894
    %v1897 = vmul.f32 %v1891, %v1418
    %v1898 = vadd.f32 %v1896, %v1897
    %v1899 = vadd.f32 %v1419, %v1898
    %1900 = vmatprep.subr.mxu0 %v282
    %1901 = vmatpush1.msra.mxu0 %v281
    %1902 = vmatprep.subr.mxu0 %v285
    %1903 = vmatpush1.msra.mxu0 %v284
    %1904 = vmatprep.subr.mxu0 %v288
    %1905 = vmatpush1.msra.mxu0 %v287
    %1906 = vmatprep.subr.mxu0 %v291
    %1907 = vmatpush1.msra.mxu0 %v290
    %1908 = vmatprep.subr.mxu0 %v294
    %1909 = vmatpush1.msra.mxu0 %v293
    %1910 = vmatprep.subr.mxu0 %v297
    %1911 = vmatpush1.msra.mxu0 %v296
    %1912 = vmatprep.subr.mxu0 %v300
    %1913 = vmatpush1.msra.mxu0 %v299
    %1914 = vmatprep.subr.mxu0 %v303
    %1915 = vmatpush1.msra.mxu0 %v302
    %1916 = vmatprep.subr.mxu0 %v306
    %1917 = vmatpush1.msra.mxu0 %v305
    %1918 = vmatprep.subr.mxu0 %v309
    %1919 = vmatpush1.msra.mxu0 %v308
    %1920 = vmatprep.subr.mxu0 %v312
    %1921 = vmatpush1.msra.mxu0 %v311
    %1922 = vmatprep.subr.mxu0 %v315
    %1923 = vmatpush1.msra.mxu0 %v314
    %1924 = vmatprep.subr.mxu0 %v318
    %1925 = vmatpush1.msra.mxu0 %v317
    %1926 = vmatprep.subr.mxu0 %v321
    %1927 = vmatpush1.msra.mxu0 %v320
    %1928 = vmatprep.subr.mxu0 %v324
    %1929 = vmatpush1.msra.mxu0 %v323
    %1930 = vmatprep.subr.mxu0 %v327
    %1931 = vmatpush1.msra.mxu0 %v326
    %1932 = vmatprep.subr.mxu0 0.0
    %1933 = vmatpush1.msra.mxu0 0.0
    %1934 = vmatprep.subr.mxu0 0.0
    %1935 = vmatpush1.msra.mxu0 0.0
    %1936 = vmatprep.subr.mxu0 0.0
    %1937 = vmatpush1.msra.mxu0 0.0
    %1938 = vmatprep.subr.mxu0 0.0
    %1939 = vmatpush1.msra.mxu0 0.0
    %1940 = vmatprep.subr.mxu0 0.0
    %1941 = vmatpush1.msra.mxu0 0.0
    %1942 = vmatprep.subr.mxu0 0.0
    %1943 = vmatpush1.msra.mxu0 0.0
    %1944 = vmatprep.subr.mxu0 0.0
    %1945 = vmatpush1.msra.mxu0 0.0
    %1946 = vmatprep.subr.mxu0 0.0
    %1947 = vmatpush1.msra.mxu0 0.0
    %1948 = vmatprep.subr.mxu0 0.0
    %1949 = vmatpush1.msra.mxu0 0.0
    %1950 = vmatprep.subr.mxu0 0.0
    %1951 = vmatpush1.msra.mxu0 0.0
    %1952 = vmatprep.subr.mxu0 0.0
    %1953 = vmatpush1.msra.mxu0 0.0
    %1954 = vmatprep.subr.mxu0 0.0
    %1955 = vmatpush1.msra.mxu0 0.0
    %1956 = vmatprep.subr.mxu0 0.0
    %1957 = vmatpush1.msra.mxu0 0.0
    %1958 = vmatprep.subr.mxu0 0.0
    %1959 = vmatpush1.msra.mxu0 0.0
    %1960 = vmatprep.subr.mxu0 0.0
    %1961 = vmatpush1.msra.mxu0 0.0
    %1962 = vmatprep.subr.mxu0 0.0
    %1963 = vmatpush1.msra.mxu0 0.0
    %1964 = vmatprep.mubr.f32.mxu0 0.0
    %1965 = vmatmul.mubr.f32.gmra.mrb[0].mxu0 %v1594
    %v1966 = vpop.f32.mrb[0].mxu0
    %v1967 = vadd.f32 %v333, %v1966
    %v1968 = vpop.f32.mrb[0].mxu0
    %v1969 = vadd.f32 %v337, %v1968
    %1970 = vdwg.mxu0
    %1971 = vmatprep.subr.mxu0 0.0
    %1972 = vmatpush1.msra.mxu0 %v283
    %1973 = vmatprep.subr.mxu0 0.0
    %1974 = vmatpush1.msra.mxu0 %v286
    %1975 = vmatprep.subr.mxu0 0.0
    %1976 = vmatpush1.msra.mxu0 %v289
    %1977 = vmatprep.subr.mxu0 0.0
    %1978 = vmatpush1.msra.mxu0 %v292
    %1979 = vmatprep.subr.mxu0 0.0
    %1980 = vmatpush1.msra.mxu0 %v295
    %1981 = vmatprep.subr.mxu0 0.0
    %1982 = vmatpush1.msra.mxu0 %v298
    %1983 = vmatprep.subr.mxu0 0.0
    %1984 = vmatpush1.msra.mxu0 %v301
    %1985 = vmatprep.subr.mxu0 0.0
    %1986 = vmatpush1.msra.mxu0 %v304
    %1987 = vmatprep.subr.mxu0 0.0
    %1988 = vmatpush1.msra.mxu0 %v307
    %1989 = vmatprep.subr.mxu0 0.0
    %1990 = vmatpush1.msra.mxu0 %v310
    %1991 = vmatprep.subr.mxu0 0.0
    %1992 = vmatpush1.msra.mxu0 %v313
    %1993 = vmatprep.subr.mxu0 0.0
    %1994 = vmatpush1.msra.mxu0 %v316
    %1995 = vmatprep.subr.mxu0 0.0
    %1996 = vmatpush1.msra.mxu0 %v319
    %1997 = vmatprep.subr.mxu0 0.0
    %1998 = vmatpush1.msra.mxu0 %v322
    %1999 = vmatprep.subr.mxu0 0.0
    %2000 = vmatpush1.msra.mxu0 %v325
    %2001 = vmatprep.subr.mxu0 0.0
    %2002 = vmatpush1.msra.mxu0 %v328
    %2003 = vmatprep.subr.mxu0 0.0
    %2004 = vmatpush1.msra.mxu0 0.0
    %2005 = vmatprep.subr.mxu0 0.0
    %2006 = vmatpush1.msra.mxu0 0.0
    %2007 = vmatprep.subr.mxu0 0.0
    %2008 = vmatpush1.msra.mxu0 0.0
    %2009 = vmatprep.subr.mxu0 0.0
    %2010 = vmatpush1.msra.mxu0 0.0
    %2011 = vmatprep.subr.mxu0 0.0
    %2012 = vmatpush1.msra.mxu0 0.0
    %2013 = vmatprep.subr.mxu0 0.0
    %2014 = vmatpush1.msra.mxu0 0.0
    %2015 = vmatprep.subr.mxu0 0.0
    %2016 = vmatpush1.msra.mxu0 0.0
    %2017 = vmatprep.subr.mxu0 0.0
    %2018 = vmatpush1.msra.mxu0 0.0
    %2019 = vmatprep.subr.mxu0 0.0
    %2020 = vmatpush1.msra.mxu0 0.0
    %2021 = vmatprep.subr.mxu0 0.0
    %2022 = vmatpush1.msra.mxu0 0.0
    %2023 = vmatprep.subr.mxu0 0.0
    %2024 = vmatpush1.msra.mxu0 0.0
    %2025 = vmatprep.subr.mxu0 0.0
    %2026 = vmatpush1.msra.mxu0 0.0
    %2027 = vmatprep.subr.mxu0 0.0
    %2028 = vmatpush1.msra.mxu0 0.0
    %2029 = vmatprep.subr.mxu0 0.0
    %2030 = vmatpush1.msra.mxu0 0.0
    %2031 = vmatprep.subr.mxu0 0.0
    %2032 = vmatpush1.msra.mxu0 0.0
    %2033 = vmatprep.subr.mxu0 0.0
    %2034 = vmatpush1.msra.mxu0 0.0
    %2035 = vmatprep.mubr.f32.mxu0 0.0
    %2036 = vmatmul.mubr.f32.gmra.mrb[0].mxu0 %v1594
    %v2037 = vpop.f32.mrb[0].mxu0
    %v2038 = vadd.f32 %v341, %v2037
    %v2039 = vpop.f32.mrb[0].mxu0
    %2040 = vdwg.mxu0
    %v2042 = vrot.slane %v1967, 2
    %v2044 = vadd.f32 %v193, %v2042
    %v2045 = vxor.u32 %v2044, 2147483648
    %v2046 = vmul.f32 %v2045, 1.442695
    %v2047 = vpow.pop %v2046
    %v2048 = vadd.f32 %v2047, 1.0
    %v2049 = vrcp.pop %v2048
    %v2050 = vmul.f32 1.0, %v2049
    %v2052 = vrot.slane %v1969, 2
    %v2054 = vadd.f32 %v195, %v2052
    %v2055 = vxor.u32 %v2054, 2147483648
    %v2056 = vmul.f32 %v2055, 1.442695
    %v2057 = vpow.pop %v2056
    %v2058 = vadd.f32 %v2057, 1.0
    %v2059 = vrcp.pop %v2058
    %v2060 = vmul.f32 1.0, %v2059
    %v2062 = vrot.slane %v2038, 2
    %v2064 = vmul.f32 %v2050, %v2062
    %v2065 = vadd.f32 %v270, %v2064
    %v2066 = vtanh.pop %v2065
    %v2067 = vsub.f32 1.0, %v2060
    %v2068 = vmul.f32 %v2067, %v2066
    %v2069 = vrot.slane %v1592, 6
    %v2071 = vmul.f32 %v2060, %v2069
    %v2072 = vadd.f32 %v2068, %v2071
    %v2074 = vrot.slane %v2072, 6
    %2076 = vmatprep.subr.mxu0 %v508
    %2077 = vmatpush1.msra.mxu0 %v507
    %2078 = vmatprep.subr.mxu0 %v511
    %2079 = vmatpush1.msra.mxu0 %v510
    %2080 = vmatprep.subr.mxu0 %v514
    %2081 = vmatpush1.msra.mxu0 %v513
    %2082 = vmatprep.subr.mxu0 %v517
    %2083 = vmatpush1.msra.mxu0 %v516
    %2084 = vmatprep.subr.mxu0 %v520
    %2085 = vmatpush1.msra.mxu0 %v519
    %2086 = vmatprep.subr.mxu0 %v523
    %2087 = vmatpush1.msra.mxu0 %v522
    %2088 = vmatprep.subr.mxu0 %v526
    %2089 = vmatpush1.msra.mxu0 %v525
    %2090 = vmatprep.subr.mxu0 %v529
    %2091 = vmatpush1.msra.mxu0 %v528
    %2092 = vmatprep.subr.mxu0 %v532
    %2093 = vmatpush1.msra.mxu0 %v531
    %2094 = vmatprep.subr.mxu0 %v535
    %2095 = vmatpush1.msra.mxu0 %v534
    %2096 = vmatprep.subr.mxu0 %v538
    %2097 = vmatpush1.msra.mxu0 %v537
    %2098 = vmatprep.subr.mxu0 %v541
    %2099 = vmatpush1.msra.mxu0 %v540
    %2100 = vmatprep.subr.mxu0 %v544
    %2101 = vmatpush1.msra.mxu0 %v543
    %2102 = vmatprep.subr.mxu0 %v547
    %2103 = vmatpush1.msra.mxu0 %v546
    %2104 = vmatprep.subr.mxu0 %v550
    %2105 = vmatpush1.msra.mxu0 %v549
    %2106 = vmatprep.subr.mxu0 %v553
    %2107 = vmatpush1.msra.mxu0 %v552
    %2108 = vmatprep.subr.mxu0 0.0
    %2109 = vmatpush1.msra.mxu0 0.0
    %2110 = vmatprep.subr.mxu0 0.0
    %2111 = vmatpush1.msra.mxu0 0.0
    %2112 = vmatprep.subr.mxu0 0.0
    %2113 = vmatpush1.msra.mxu0 0.0
    %2114 = vmatprep.subr.mxu0 0.0
    %2115 = vmatpush1.msra.mxu0 0.0
    %2116 = vmatprep.subr.mxu0 0.0
    %2117 = vmatpush1.msra.mxu0 0.0
    %2118 = vmatprep.subr.mxu0 0.0
    %2119 = vmatpush1.msra.mxu0 0.0
    %2120 = vmatprep.subr.mxu0 0.0
    %2121 = vmatpush1.msra.mxu0 0.0
    %2122 = vmatprep.subr.mxu0 0.0
    %2123 = vmatpush1.msra.mxu0 0.0
    %2124 = vmatprep.subr.mxu0 0.0
    %2125 = vmatpush1.msra.mxu0 0.0
    %2126 = vmatprep.subr.mxu0 0.0
    %2127 = vmatpush1.msra.mxu0 0.0
    %2128 = vmatprep.subr.mxu0 0.0
    %2129 = vmatpush1.msra.mxu0 0.0
    %2130 = vmatprep.subr.mxu0 0.0
    %2131 = vmatpush1.msra.mxu0 0.0
    %2132 = vmatprep.subr.mxu0 0.0
    %2133 = vmatpush1.msra.mxu0 0.0
    %2134 = vmatprep.subr.mxu0 0.0
    %2135 = vmatpush1.msra.mxu0 0.0
    %2136 = vmatprep.subr.mxu0 0.0
    %2137 = vmatpush1.msra.mxu0 0.0
    %2138 = vmatprep.subr.mxu0 0.0
    %2139 = vmatpush1.msra.mxu0 0.0
    %2140 = vmatprep.mubr.f32.mxu0 0.0
    %2141 = vmatmul.mubr.f32.gmra.mrb[0].mxu0 %v2074
    %v2142 = vpop.f32.mrb[0].mxu0
    %v2143 = vadd.f32 %v559, %v2142
    %v2144 = vpop.f32.mrb[0].mxu0
    %v2145 = vadd.f32 %v563, %v2144
    %2146 = vdwg.mxu0
    %2147 = vmatprep.subr.mxu0 0.0
    %2148 = vmatpush1.msra.mxu0 %v509
    %2149 = vmatprep.subr.mxu0 0.0
    %2150 = vmatpush1.msra.mxu0 %v512
    %2151 = vmatprep.subr.mxu0 0.0
    %2152 = vmatpush1.msra.mxu0 %v515
    %2153 = vmatprep.subr.mxu0 0.0
    %2154 = vmatpush1.msra.mxu0 %v518
    %2155 = vmatprep.subr.mxu0 0.0
    %2156 = vmatpush1.msra.mxu0 %v521
    %2157 = vmatprep.subr.mxu0 0.0
    %2158 = vmatpush1.msra.mxu0 %v524
    %2159 = vmatprep.subr.mxu0 0.0
    %2160 = vmatpush1.msra.mxu0 %v527
    %2161 = vmatprep.subr.mxu0 0.0
    %2162 = vmatpush1.msra.mxu0 %v530
    %2163 = vmatprep.subr.mxu0 0.0
    %2164 = vmatpush1.msra.mxu0 %v533
    %2165 = vmatprep.subr.mxu0 0.0
    %2166 = vmatpush1.msra.mxu0 %v536
    %2167 = vmatprep.subr.mxu0 0.0
    %2168 = vmatpush1.msra.mxu0 %v539
    %2169 = vmatprep.subr.mxu0 0.0
    %2170 = vmatpush1.msra.mxu0 %v542
    %2171 = vmatprep.subr.mxu0 0.0
    %2172 = vmatpush1.msra.mxu0 %v545
    %2173 = vmatprep.subr.mxu0 0.0
    %2174 = vmatpush1.msra.mxu0 %v548
    %2175 = vmatprep.subr.mxu0 0.0
    %2176 = vmatpush1.msra.mxu0 %v551
    %2177 = vmatprep.subr.mxu0 0.0
    %2178 = vmatpush1.msra.mxu0 %v554
    %2179 = vmatprep.subr.mxu0 0.0
    %2180 = vmatpush1.msra.mxu0 0.0
    %2181 = vmatprep.subr.mxu0 0.0
    %2182 = vmatpush1.msra.mxu0 0.0
    %2183 = vmatprep.subr.mxu0 0.0
    %2184 = vmatpush1.msra.mxu0 0.0
    %2185 = vmatprep.subr.mxu0 0.0
    %2186 = vmatpush1.msra.mxu0 0.0
    %2187 = vmatprep.subr.mxu0 0.0
    %2188 = vmatpush1.msra.mxu0 0.0
    %2189 = vmatprep.subr.mxu0 0.0
    %2190 = vmatpush1.msra.mxu0 0.0
    %2191 = vmatprep.subr.mxu0 0.0
    %2192 = vmatpush1.msra.mxu0 0.0
    %2193 = vmatprep.subr.mxu0 0.0
    %2194 = vmatpush1.msra.mxu0 0.0
    %2195 = vmatprep.subr.mxu0 0.0
    %2196 = vmatpush1.msra.mxu0 0.0
    %2197 = vmatprep.subr.mxu0 0.0
    %2198 = vmatpush1.msra.mxu0 0.0
    %2199 = vmatprep.subr.mxu0 0.0
    %2200 = vmatpush1.msra.mxu0 0.0
    %2201 = vmatprep.subr.mxu0 0.0
    %2202 = vmatpush1.msra.mxu0 0.0
    %2203 = vmatprep.subr.mxu0 0.0
    %2204 = vmatpush1.msra.mxu0 0.0
    %2205 = vmatprep.subr.mxu0 0.0
    %2206 = vmatpush1.msra.mxu0 0.0
    %2207 = vmatprep.subr.mxu0 0.0
    %2208 = vmatpush1.msra.mxu0 0.0
    %2209 = vmatprep.subr.mxu0 0.0
    %2210 = vmatpush1.msra.mxu0 0.0
    %2211 = vmatprep.mubr.f32.mxu0 0.0
    %2212 = vmatmul.mubr.f32.gmra.mrb[0].mxu0 %v2074
    %v2213 = vpop.f32.mrb[0].mxu0
    %v2214 = vadd.f32 %v567, %v2213
    %v2215 = vpop.f32.mrb[0].mxu0
    %2216 = vdwg.mxu0
    %2217 = vmatprep.subr.mxu0 %v713
    %2218 = vmatpush1.msra.mxu0 %v712
    %2219 = vmatprep.subr.mxu0 %v716
    %2220 = vmatpush1.msra.mxu0 %v715
    %2221 = vmatprep.subr.mxu0 %v719
    %2222 = vmatpush1.msra.mxu0 %v718
    %2223 = vmatprep.subr.mxu0 %v722
    %2224 = vmatpush1.msra.mxu0 %v721
    %2225 = vmatprep.subr.mxu0 %v725
    %2226 = vmatpush1.msra.mxu0 %v724
    %2227 = vmatprep.subr.mxu0 %v728
    %2228 = vmatpush1.msra.mxu0 %v727
    %2229 = vmatprep.subr.mxu0 %v731
    %2230 = vmatpush1.msra.mxu0 %v730
    %2231 = vmatprep.subr.mxu0 %v734
    %2232 = vmatpush1.msra.mxu0 %v733
    %2233 = vmatprep.subr.mxu0 %v737
    %2234 = vmatpush1.msra.mxu0 %v736
    %2235 = vmatprep.subr.mxu0 %v740
    %2236 = vmatpush1.msra.mxu0 %v739
    %2237 = vmatprep.subr.mxu0 %v743
    %2238 = vmatpush1.msra.mxu0 %v742
    %2239 = vmatprep.subr.mxu0 %v746
    %2240 = vmatpush1.msra.mxu0 %v745
    %2241 = vmatprep.subr.mxu0 %v749
    %2242 = vmatpush1.msra.mxu0 %v748
    %2243 = vmatprep.subr.mxu0 %v752
    %2244 = vmatpush1.msra.mxu0 %v751
    %2245 = vmatprep.subr.mxu0 %v755
    %2246 = vmatpush1.msra.mxu0 %v754
    %2247 = vmatprep.subr.mxu0 %v758
    %2248 = vmatpush1.msra.mxu0 %v757
    %2249 = vmatprep.subr.mxu0 0.0
    %2250 = vmatpush1.msra.mxu0 0.0
    %2251 = vmatprep.subr.mxu0 0.0
    %2252 = vmatpush1.msra.mxu0 0.0
    %2253 = vmatprep.subr.mxu0 0.0
    %2254 = vmatpush1.msra.mxu0 0.0
    %2255 = vmatprep.subr.mxu0 0.0
    %2256 = vmatpush1.msra.mxu0 0.0
    %2257 = vmatprep.subr.mxu0 0.0
    %2258 = vmatpush1.msra.mxu0 0.0
    %2259 = vmatprep.subr.mxu0 0.0
    %2260 = vmatpush1.msra.mxu0 0.0
    %2261 = vmatprep.subr.mxu0 0.0
    %2262 = vmatpush1.msra.mxu0 0.0
    %2263 = vmatprep.subr.mxu0 0.0
    %2264 = vmatpush1.msra.mxu0 0.0
    %2265 = vmatprep.subr.mxu0 0.0
    %2266 = vmatpush1.msra.mxu0 0.0
    %2267 = vmatprep.subr.mxu0 0.0
    %2268 = vmatpush1.msra.mxu0 0.0
    %2269 = vmatprep.subr.mxu0 0.0
    %2270 = vmatpush1.msra.mxu0 0.0
    %2271 = vmatprep.subr.mxu0 0.0
    %2272 = vmatpush1.msra.mxu0 0.0
    %2273 = vmatprep.subr.mxu0 0.0
    %2274 = vmatpush1.msra.mxu0 0.0
    %2275 = vmatprep.subr.mxu0 0.0
    %2276 = vmatpush1.msra.mxu0 0.0
    %2277 = vmatprep.subr.mxu0 0.0
    %2278 = vmatpush1.msra.mxu0 0.0
    %2279 = vmatprep.subr.mxu0 0.0
    %2280 = vmatpush1.msra.mxu0 0.0
    %2281 = vmatprep.mubr.f32.mxu0 0.0
    %2282 = vmatmul.mubr.f32.gmra.mrb[0].mxu0 %v1898
    %v2283 = vpop.f32.mrb[0].mxu0
    %v2284 = vadd.f32 %v764, %v2283
    %v2285 = vpop.f32.mrb[0].mxu0
    %v2286 = vadd.f32 %v768, %v2285
    %2287 = vdwg.mxu0
    %2288 = vmatprep.subr.mxu0 0.0
    %2289 = vmatpush1.msra.mxu0 %v714
    %2290 = vmatprep.subr.mxu0 0.0
    %2291 = vmatpush1.msra.mxu0 %v717
    %2292 = vmatprep.subr.mxu0 0.0
    %2293 = vmatpush1.msra.mxu0 %v720
    %2294 = vmatprep.subr.mxu0 0.0
    %2295 = vmatpush1.msra.mxu0 %v723
    %2296 = vmatprep.subr.mxu0 0.0
    %2297 = vmatpush1.msra.mxu0 %v726
    %2298 = vmatprep.subr.mxu0 0.0
    %2299 = vmatpush1.msra.mxu0 %v729
    %2300 = vmatprep.subr.mxu0 0.0
    %2301 = vmatpush1.msra.mxu0 %v732
    %2302 = vmatprep.subr.mxu0 0.0
    %2303 = vmatpush1.msra.mxu0 %v735
    %2304 = vmatprep.subr.mxu0 0.0
    %2305 = vmatpush1.msra.mxu0 %v738
    %2306 = vmatprep.subr.mxu0 0.0
    %2307 = vmatpush1.msra.mxu0 %v741
    %2308 = vmatprep.subr.mxu0 0.0
    %2309 = vmatpush1.msra.mxu0 %v744
    %2310 = vmatprep.subr.mxu0 0.0
    %2311 = vmatpush1.msra.mxu0 %v747
    %2312 = vmatprep.subr.mxu0 0.0
    %2313 = vmatpush1.msra.mxu0 %v750
    %2314 = vmatprep.subr.mxu0 0.0
    %2315 = vmatpush1.msra.mxu0 %v753
    %2316 = vmatprep.subr.mxu0 0.0
    %2317 = vmatpush1.msra.mxu0 %v756
    %2318 = vmatprep.subr.mxu0 0.0
    %2319 = vmatpush1.msra.mxu0 %v759
    %2320 = vmatprep.subr.mxu0 0.0
    %2321 = vmatpush1.msra.mxu0 0.0
    %2322 = vmatprep.subr.mxu0 0.0
    %2323 = vmatpush1.msra.mxu0 0.0
    %2324 = vmatprep.subr.mxu0 0.0
    %2325 = vmatpush1.msra.mxu0 0.0
    %2326 = vmatprep.subr.mxu0 0.0
    %2327 = vmatpush1.msra.mxu0 0.0
    %2328 = vmatprep.subr.mxu0 0.0
    %2329 = vmatpush1.msra.mxu0 0.0
    %2330 = vmatprep.subr.mxu0 0.0
    %2331 = vmatpush1.msra.mxu0 0.0
    %2332 = vmatprep.subr.mxu0 0.0
    %2333 = vmatpush1.msra.mxu0 0.0
    %2334 = vmatprep.subr.mxu0 0.0
    %2335 = vmatpush1.msra.mxu0 0.0
    %2336 = vmatprep.subr.mxu0 0.0
    %2337 = vmatpush1.msra.mxu0 0.0
    %2338 = vmatprep.subr.mxu0 0.0
    %2339 = vmatpush1.msra.mxu0 0.0
    %2340 = vmatprep.subr.mxu0 0.0
    %2341 = vmatpush1.msra.mxu0 0.0
    %2342 = vmatprep.subr.mxu0 0.0
    %2343 = vmatpush1.msra.mxu0 0.0
    %2344 = vmatprep.subr.mxu0 0.0
    %2345 = vmatpush1.msra.mxu0 0.0
    %2346 = vmatprep.subr.mxu0 0.0
    %2347 = vmatpush1.msra.mxu0 0.0
    %2348 = vmatprep.subr.mxu0 0.0
    %2349 = vmatpush1.msra.mxu0 0.0
    %2350 = vmatprep.subr.mxu0 0.0
    %2351 = vmatpush1.msra.mxu0 0.0
    %2352 = vmatprep.mubr.f32.mxu0 0.0
    %2353 = vmatmul.mubr.f32.gmra.mrb[0].mxu0 %v1898
    %v2354 = vpop.f32.mrb[0].mxu0
    %v2355 = vadd.f32 %v772, %v2354
    %v2356 = vpop.f32.mrb[0].mxu0
    %2357 = vdwg.mxu0
    %v2358 = vadd.f32 %v2143, %v2284
    %v2359 = vxor.u32 %v2358, 2147483648
    %v2360 = vmul.f32 %v2359, 1.442695
    %v2361 = vpow.pop %v2360
    %v2362 = vadd.f32 %v2361, 1.0
    %v2363 = vrcp.pop %v2362
    %v2364 = vmul.f32 1.0, %v2363
    %v2365 = vadd.f32 %v2145, %v2286
    %v2366 = vxor.u32 %v2365, 2147483648
    %v2367 = vmul.f32 %v2366, 1.442695
    %v2368 = vpow.pop %v2367
    %v2369 = vadd.f32 %v2368, 1.0
    %v2370 = vrcp.pop %v2369
    %v2371 = vmul.f32 1.0, %v2370
    %v2372 = vmul.f32 %v2364, %v2355
    %v2373 = vadd.f32 %v2214, %v2372
    %v2374 = vtanh.pop %v2373
    %v2375 = vsub.f32 1.0, %v2371
    %v2376 = vmul.f32 %v2375, %v2374
    %v2377 = vmul.f32 %v2371, %v1898
    %v2378 = vadd.f32 %v2376, %v2377
    %v2379 = vadd.f32 %v1899, %v2378
    %2380 = vmatprep.subr.mxu0 %v282
    %2381 = vmatpush1.msra.mxu0 %v281
    %2382 = vmatprep.subr.mxu0 %v285
    %2383 = vmatpush1.msra.mxu0 %v284
    %2384 = vmatprep.subr.mxu0 %v288
    %2385 = vmatpush1.msra.mxu0 %v287
    %2386 = vmatprep.subr.mxu0 %v291
    %2387 = vmatpush1.msra.mxu0 %v290
    %2388 = vmatprep.subr.mxu0 %v294
    %2389 = vmatpush1.msra.mxu0 %v293
    %2390 = vmatprep.subr.mxu0 %v297
    %2391 = vmatpush1.msra.mxu0 %v296
    %2392 = vmatprep.subr.mxu0 %v300
    %2393 = vmatpush1.msra.mxu0 %v299
    %2394 = vmatprep.subr.mxu0 %v303
    %2395 = vmatpush1.msra.mxu0 %v302
    %2396 = vmatprep.subr.mxu0 %v306
    %2397 = vmatpush1.msra.mxu0 %v305
    %2398 = vmatprep.subr.mxu0 %v309
    %2399 = vmatpush1.msra.mxu0 %v308
    %2400 = vmatprep.subr.mxu0 %v312
    %2401 = vmatpush1.msra.mxu0 %v311
    %2402 = vmatprep.subr.mxu0 %v315
    %2403 = vmatpush1.msra.mxu0 %v314
    %2404 = vmatprep.subr.mxu0 %v318
    %2405 = vmatpush1.msra.mxu0 %v317
    %2406 = vmatprep.subr.mxu0 %v321
    %2407 = vmatpush1.msra.mxu0 %v320
    %2408 = vmatprep.subr.mxu0 %v324
    %2409 = vmatpush1.msra.mxu0 %v323
    %2410 = vmatprep.subr.mxu0 %v327
    %2411 = vmatpush1.msra.mxu0 %v326
    %2412 = vmatprep.subr.mxu0 0.0
    %2413 = vmatpush1.msra.mxu0 0.0
    %2414 = vmatprep.subr.mxu0 0.0
    %2415 = vmatpush1.msra.mxu0 0.0
    %2416 = vmatprep.subr.mxu0 0.0
    %2417 = vmatpush1.msra.mxu0 0.0
    %2418 = vmatprep.subr.mxu0 0.0
    %2419 = vmatpush1.msra.mxu0 0.0
    %2420 = vmatprep.subr.mxu0 0.0
    %2421 = vmatpush1.msra.mxu0 0.0
    %2422 = vmatprep.subr.mxu0 0.0
    %2423 = vmatpush1.msra.mxu0 0.0
    %2424 = vmatprep.subr.mxu0 0.0
    %2425 = vmatpush1.msra.mxu0 0.0
    %2426 = vmatprep.subr.mxu0 0.0
    %2427 = vmatpush1.msra.mxu0 0.0
    %2428 = vmatprep.subr.mxu0 0.0
    %2429 = vmatpush1.msra.mxu0 0.0
    %2430 = vmatprep.subr.mxu0 0.0
    %2431 = vmatpush1.msra.mxu0 0.0
    %2432 = vmatprep.subr.mxu0 0.0
    %2433 = vmatpush1.msra.mxu0 0.0
    %2434 = vmatprep.subr.mxu0 0.0
    %2435 = vmatpush1.msra.mxu0 0.0
    %2436 = vmatprep.subr.mxu0 0.0
    %2437 = vmatpush1.msra.mxu0 0.0
    %2438 = vmatprep.subr.mxu0 0.0
    %2439 = vmatpush1.msra.mxu0 0.0
    %2440 = vmatprep.subr.mxu0 0.0
    %2441 = vmatpush1.msra.mxu0 0.0
    %2442 = vmatprep.subr.mxu0 0.0
    %2443 = vmatpush1.msra.mxu0 0.0
    %2444 = vmatprep.mubr.f32.mxu0 0.0
    %2445 = vmatmul.mubr.f32.gmra.mrb[0].mxu0 %v2074
    %v2446 = vpop.f32.mrb[0].mxu0
    %v2447 = vadd.f32 %v333, %v2446
    %v2448 = vpop.f32.mrb[0].mxu0
    %v2449 = vadd.f32 %v337, %v2448
    %2450 = vdwg.mxu0
    %2451 = vmatprep.subr.mxu0 0.0
    %2452 = vmatpush1.msra.mxu0 %v283
    %2453 = vmatprep.subr.mxu0 0.0
    %2454 = vmatpush1.msra.mxu0 %v286
    %2455 = vmatprep.subr.mxu0 0.0
    %2456 = vmatpush1.msra.mxu0 %v289
    %2457 = vmatprep.subr.mxu0 0.0
    %2458 = vmatpush1.msra.mxu0 %v292
    %2459 = vmatprep.subr.mxu0 0.0
    %2460 = vmatpush1.msra.mxu0 %v295
    %2461 = vmatprep.subr.mxu0 0.0
    %2462 = vmatpush1.msra.mxu0 %v298
    %2463 = vmatprep.subr.mxu0 0.0
    %2464 = vmatpush1.msra.mxu0 %v301
    %2465 = vmatprep.subr.mxu0 0.0
    %2466 = vmatpush1.msra.mxu0 %v304
    %2467 = vmatprep.subr.mxu0 0.0
    %2468 = vmatpush1.msra.mxu0 %v307
    %2469 = vmatprep.subr.mxu0 0.0
    %2470 = vmatpush1.msra.mxu0 %v310
    %2471 = vmatprep.subr.mxu0 0.0
    %2472 = vmatpush1.msra.mxu0 %v313
    %2473 = vmatprep.subr.mxu0 0.0
    %2474 = vmatpush1.msra.mxu0 %v316
    %2475 = vmatprep.subr.mxu0 0.0
    %2476 = vmatpush1.msra.mxu0 %v319
    %2477 = vmatprep.subr.mxu0 0.0
    %2478 = vmatpush1.msra.mxu0 %v322
    %2479 = vmatprep.subr.mxu0 0.0
    %2480 = vmatpush1.msra.mxu0 %v325
    %2481 = vmatprep.subr.mxu0 0.0
    %2482 = vmatpush1.msra.mxu0 %v328
    %2483 = vmatprep.subr.mxu0 0.0
    %2484 = vmatpush1.msra.mxu0 0.0
    %2485 = vmatprep.subr.mxu0 0.0
    %2486 = vmatpush1.msra.mxu0 0.0
    %2487 = vmatprep.subr.mxu0 0.0
    %2488 = vmatpush1.msra.mxu0 0.0
    %2489 = vmatprep.subr.mxu0 0.0
    %2490 = vmatpush1.msra.mxu0 0.0
    %2491 = vmatprep.subr.mxu0 0.0
    %2492 = vmatpush1.msra.mxu0 0.0
    %2493 = vmatprep.subr.mxu0 0.0
    %2494 = vmatpush1.msra.mxu0 0.0
    %2495 = vmatprep.subr.mxu0 0.0
    %2496 = vmatpush1.msra.mxu0 0.0
    %2497 = vmatprep.subr.mxu0 0.0
    %2498 = vmatpush1.msra.mxu0 0.0
    %2499 = vmatprep.subr.mxu0 0.0
    %2500 = vmatpush1.msra.mxu0 0.0
    %2501 = vmatprep.subr.mxu0 0.0
    %2502 = vmatpush1.msra.mxu0 0.0
    %2503 = vmatprep.subr.mxu0 0.0
    %2504 = vmatpush1.msra.mxu0 0.0
    %2505 = vmatprep.subr.mxu0 0.0
    %2506 = vmatpush1.msra.mxu0 0.0
    %2507 = vmatprep.subr.mxu0 0.0
    %2508 = vmatpush1.msra.mxu0 0.0
    %2509 = vmatprep.subr.mxu0 0.0
    %2510 = vmatpush1.msra.mxu0 0.0
    %2511 = vmatprep.subr.mxu0 0.0
    %2512 = vmatpush1.msra.mxu0 0.0
    %2513 = vmatprep.subr.mxu0 0.0
    %2514 = vmatpush1.msra.mxu0 0.0
    %2515 = vmatprep.mubr.f32.mxu0 0.0
    %2516 = vmatmul.mubr.f32.gmra.mrb[0].mxu0 %v2074
    %v2517 = vpop.f32.mrb[0].mxu0
    %v2518 = vadd.f32 %v341, %v2517
    %v2519 = vpop.f32.mrb[0].mxu0
    %2520 = vdwg.mxu0
    %v2521 = vadd.f32 %v199, %v2447
    %v2522 = vxor.u32 %v2521, 2147483648
    %v2523 = vmul.f32 %v2522, 1.442695
    %v2524 = vpow.pop %v2523
    %v2525 = vadd.f32 %v2524, 1.0
    %v2526 = vrcp.pop %v2525
    %v2527 = vmul.f32 1.0, %v2526
    %v2528 = vadd.f32 %v201, %v2449
    %v2529 = vxor.u32 %v2528, 2147483648
    %v2530 = vmul.f32 %v2529, 1.442695
    %v2531 = vpow.pop %v2530
    %v2532 = vadd.f32 %v2531, 1.0
    %v2533 = vrcp.pop %v2532
    %v2534 = vmul.f32 1.0, %v2533
    %v2535 = vmul.f32 %v2527, %v2518
    %v2536 = vadd.f32 %v275, %v2535
    %v2537 = vtanh.pop %v2536
    %v2538 = vsub.f32 1.0, %v2534
    %v2539 = vmul.f32 %v2538, %v2537
    %v2540 = vmul.f32 %v2534, %v2074
    %v2541 = vadd.f32 %v2539, %v2540
    %2542 = vmatprep.subr.mxu0 %v508
    %2543 = vmatpush1.msra.mxu0 %v507
    %2544 = vmatprep.subr.mxu0 %v511
    %2545 = vmatpush1.msra.mxu0 %v510
    %2546 = vmatprep.subr.mxu0 %v514
    %2547 = vmatpush1.msra.mxu0 %v513
    %2548 = vmatprep.subr.mxu0 %v517
    %2549 = vmatpush1.msra.mxu0 %v516
    %2550 = vmatprep.subr.mxu0 %v520
    %2551 = vmatpush1.msra.mxu0 %v519
    %2552 = vmatprep.subr.mxu0 %v523
    %2553 = vmatpush1.msra.mxu0 %v522
    %2554 = vmatprep.subr.mxu0 %v526
    %2555 = vmatpush1.msra.mxu0 %v525
    %2556 = vmatprep.subr.mxu0 %v529
    %2557 = vmatpush1.msra.mxu0 %v528
    %2558 = vmatprep.subr.mxu0 %v532
    %2559 = vmatpush1.msra.mxu0 %v531
    %2560 = vmatprep.subr.mxu0 %v535
    %2561 = vmatpush1.msra.mxu0 %v534
    %2562 = vmatprep.subr.mxu0 %v538
    %2563 = vmatpush1.msra.mxu0 %v537
    %2564 = vmatprep.subr.mxu0 %v541
    %2565 = vmatpush1.msra.mxu0 %v540
    %2566 = vmatprep.subr.mxu0 %v544
    %2567 = vmatpush1.msra.mxu0 %v543
    %2568 = vmatprep.subr.mxu0 %v547
    %2569 = vmatpush1.msra.mxu0 %v546
    %2570 = vmatprep.subr.mxu0 %v550
    %2571 = vmatpush1.msra.mxu0 %v549
    %2572 = vmatprep.subr.mxu0 %v553
    %2573 = vmatpush1.msra.mxu0 %v552
    %2574 = vmatprep.subr.mxu0 0.0
    %2575 = vmatpush1.msra.mxu0 0.0
    %2576 = vmatprep.subr.mxu0 0.0
    %2577 = vmatpush1.msra.mxu0 0.0
    %2578 = vmatprep.subr.mxu0 0.0
    %2579 = vmatpush1.msra.mxu0 0.0
    %2580 = vmatprep.subr.mxu0 0.0
    %2581 = vmatpush1.msra.mxu0 0.0
    %2582 = vmatprep.subr.mxu0 0.0
    %2583 = vmatpush1.msra.mxu0 0.0
    %2584 = vmatprep.subr.mxu0 0.0
    %2585 = vmatpush1.msra.mxu0 0.0
    %2586 = vmatprep.subr.mxu0 0.0
    %2587 = vmatpush1.msra.mxu0 0.0
    %2588 = vmatprep.subr.mxu0 0.0
    %2589 = vmatpush1.msra.mxu0 0.0
    %2590 = vmatprep.subr.mxu0 0.0
    %2591 = vmatpush1.msra.mxu0 0.0
    %2592 = vmatprep.subr.mxu0 0.0
    %2593 = vmatpush1.msra.mxu0 0.0
    %2594 = vmatprep.subr.mxu0 0.0
    %2595 = vmatpush1.msra.mxu0 0.0
    %2596 = vmatprep.subr.mxu0 0.0
    %2597 = vmatpush1.msra.mxu0 0.0
    %2598 = vmatprep.subr.mxu0 0.0
    %2599 = vmatpush1.msra.mxu0 0.0
    %2600 = vmatprep.subr.mxu0 0.0
    %2601 = vmatpush1.msra.mxu0 0.0
    %2602 = vmatprep.subr.mxu0 0.0
    %2603 = vmatpush1.msra.mxu0 0.0
    %2604 = vmatprep.subr.mxu0 0.0
    %2605 = vmatpush1.msra.mxu0 0.0
    %2606 = vmatprep.mubr.f32.mxu0 0.0
    %2607 = vmatmul.mubr.f32.gmra.mrb[0].mxu0 %v2541
    %v2608 = vpop.f32.mrb[0].mxu0
    %v2609 = vadd.f32 %v559, %v2608
    %v2610 = vpop.f32.mrb[0].mxu0
    %v2611 = vadd.f32 %v563, %v2610
    %2612 = vdwg.mxu0
    %2613 = vmatprep.subr.mxu0 0.0
    %2614 = vmatpush1.msra.mxu0 %v509
    %2615 = vmatprep.subr.mxu0 0.0
    %2616 = vmatpush1.msra.mxu0 %v512
    %2617 = vmatprep.subr.mxu0 0.0
    %2618 = vmatpush1.msra.mxu0 %v515
    %2619 = vmatprep.subr.mxu0 0.0
    %2620 = vmatpush1.msra.mxu0 %v518
    %2621 = vmatprep.subr.mxu0 0.0
    %2622 = vmatpush1.msra.mxu0 %v521
    %2623 = vmatprep.subr.mxu0 0.0
    %2624 = vmatpush1.msra.mxu0 %v524
    %2625 = vmatprep.subr.mxu0 0.0
    %2626 = vmatpush1.msra.mxu0 %v527
    %2627 = vmatprep.subr.mxu0 0.0
    %2628 = vmatpush1.msra.mxu0 %v530
    %2629 = vmatprep.subr.mxu0 0.0
    %2630 = vmatpush1.msra.mxu0 %v533
    %2631 = vmatprep.subr.mxu0 0.0
    %2632 = vmatpush1.msra.mxu0 %v536
    %2633 = vmatprep.subr.mxu0 0.0
    %2634 = vmatpush1.msra.mxu0 %v539
    %2635 = vmatprep.subr.mxu0 0.0
    %2636 = vmatpush1.msra.mxu0 %v542
    %2637 = vmatprep.subr.mxu0 0.0
    %2638 = vmatpush1.msra.mxu0 %v545
    %2639 = vmatprep.subr.mxu0 0.0
    %2640 = vmatpush1.msra.mxu0 %v548
    %2641 = vmatprep.subr.mxu0 0.0
    %2642 = vmatpush1.msra.mxu0 %v551
    %2643 = vmatprep.subr.mxu0 0.0
    %2644 = vmatpush1.msra.mxu0 %v554
    %2645 = vmatprep.subr.mxu0 0.0
    %2646 = vmatpush1.msra.mxu0 0.0
    %2647 = vmatprep.subr.mxu0 0.0
    %2648 = vmatpush1.msra.mxu0 0.0
    %2649 = vmatprep.subr.mxu0 0.0
    %2650 = vmatpush1.msra.mxu0 0.0
    %2651 = vmatprep.subr.mxu0 0.0
    %2652 = vmatpush1.msra.mxu0 0.0
    %2653 = vmatprep.subr.mxu0 0.0
    %2654 = vmatpush1.msra.mxu0 0.0
    %2655 = vmatprep.subr.mxu0 0.0
    %2656 = vmatpush1.msra.mxu0 0.0
    %2657 = vmatprep.subr.mxu0 0.0
    %2658 = vmatpush1.msra.mxu0 0.0
    %2659 = vmatprep.subr.mxu0 0.0
    %2660 = vmatpush1.msra.mxu0 0.0
    %2661 = vmatprep.subr.mxu0 0.0
    %2662 = vmatpush1.msra.mxu0 0.0
    %2663 = vmatprep.subr.mxu0 0.0
    %2664 = vmatpush1.msra.mxu0 0.0
    %2665 = vmatprep.subr.mxu0 0.0
    %2666 = vmatpush1.msra.mxu0 0.0
    %2667 = vmatprep.subr.mxu0 0.0
    %2668 = vmatpush1.msra.mxu0 0.0
    %2669 = vmatprep.subr.mxu0 0.0
    %2670 = vmatpush1.msra.mxu0 0.0
    %2671 = vmatprep.subr.mxu0 0.0
    %2672 = vmatpush1.msra.mxu0 0.0
    %2673 = vmatprep.subr.mxu0 0.0
    %2674 = vmatpush1.msra.mxu0 0.0
    %2675 = vmatprep.subr.mxu0 0.0
    %2676 = vmatpush1.msra.mxu0 0.0
    %2677 = vmatprep.mubr.f32.mxu0 0.0
    %2678 = vmatmul.mubr.f32.gmra.mrb[0].mxu0 %v2541
    %v2679 = vpop.f32.mrb[0].mxu0
    %v2680 = vadd.f32 %v567, %v2679
    %v2681 = vpop.f32.mrb[0].mxu0
    %2682 = vdwg.mxu0
    %2683 = vmatprep.subr.mxu0 %v713
    %2684 = vmatpush1.msra.mxu0 %v712
    %2685 = vmatprep.subr.mxu0 %v716
    %2686 = vmatpush1.msra.mxu0 %v715
    %2687 = vmatprep.subr.mxu0 %v719
    %2688 = vmatpush1.msra.mxu0 %v718
    %2689 = vmatprep.subr.mxu0 %v722
    %2690 = vmatpush1.msra.mxu0 %v721
    %2691 = vmatprep.subr.mxu0 %v725
    %2692 = vmatpush1.msra.mxu0 %v724
    %2693 = vmatprep.subr.mxu0 %v728
    %2694 = vmatpush1.msra.mxu0 %v727
    %2695 = vmatprep.subr.mxu0 %v731
    %2696 = vmatpush1.msra.mxu0 %v730
    %2697 = vmatprep.subr.mxu0 %v734
    %2698 = vmatpush1.msra.mxu0 %v733
    %2699 = vmatprep.subr.mxu0 %v737
    %2700 = vmatpush1.msra.mxu0 %v736
    %2701 = vmatprep.subr.mxu0 %v740
    %2702 = vmatpush1.msra.mxu0 %v739
    %2703 = vmatprep.subr.mxu0 %v743
    %2704 = vmatpush1.msra.mxu0 %v742
    %2705 = vmatprep.subr.mxu0 %v746
    %2706 = vmatpush1.msra.mxu0 %v745
    %2707 = vmatprep.subr.mxu0 %v749
    %2708 = vmatpush1.msra.mxu0 %v748
    %2709 = vmatprep.subr.mxu0 %v752
    %2710 = vmatpush1.msra.mxu0 %v751
    %2711 = vmatprep.subr.mxu0 %v755
    %2712 = vmatpush1.msra.mxu0 %v754
    %2713 = vmatprep.subr.mxu0 %v758
    %2714 = vmatpush1.msra.mxu0 %v757
    %2715 = vmatprep.subr.mxu0 0.0
    %2716 = vmatpush1.msra.mxu0 0.0
    %2717 = vmatprep.subr.mxu0 0.0
    %2718 = vmatpush1.msra.mxu0 0.0
    %2719 = vmatprep.subr.mxu0 0.0
    %2720 = vmatpush1.msra.mxu0 0.0
    %2721 = vmatprep.subr.mxu0 0.0
    %2722 = vmatpush1.msra.mxu0 0.0
    %2723 = vmatprep.subr.mxu0 0.0
    %2724 = vmatpush1.msra.mxu0 0.0
    %2725 = vmatprep.subr.mxu0 0.0
    %2726 = vmatpush1.msra.mxu0 0.0
    %2727 = vmatprep.subr.mxu0 0.0
    %2728 = vmatpush1.msra.mxu0 0.0
    %2729 = vmatprep.subr.mxu0 0.0
    %2730 = vmatpush1.msra.mxu0 0.0
    %2731 = vmatprep.subr.mxu0 0.0
    %2732 = vmatpush1.msra.mxu0 0.0
    %2733 = vmatprep.subr.mxu0 0.0
    %2734 = vmatpush1.msra.mxu0 0.0
    %2735 = vmatprep.subr.mxu0 0.0
    %2736 = vmatpush1.msra.mxu0 0.0
    %2737 = vmatprep.subr.mxu0 0.0
    %2738 = vmatpush1.msra.mxu0 0.0
    %2739 = vmatprep.subr.mxu0 0.0
    %2740 = vmatpush1.msra.mxu0 0.0
    %2741 = vmatprep.subr.mxu0 0.0
    %2742 = vmatpush1.msra.mxu0 0.0
    %2743 = vmatprep.subr.mxu0 0.0
    %2744 = vmatpush1.msra.mxu0 0.0
    %2745 = vmatprep.subr.mxu0 0.0
    %2746 = vmatpush1.msra.mxu0 0.0
    %2747 = vmatprep.mubr.f32.mxu0 0.0
    %2748 = vmatmul.mubr.f32.gmra.mrb[0].mxu0 %v2378
    %v2749 = vpop.f32.mrb[0].mxu0
    %v2750 = vadd.f32 %v764, %v2749
    %v2751 = vpop.f32.mrb[0].mxu0
    %v2752 = vadd.f32 %v768, %v2751
    %2753 = vdwg.mxu0
    %2754 = vmatprep.subr.mxu0 0.0
    %2755 = vmatpush1.msra.mxu0 %v714
    %2756 = vmatprep.subr.mxu0 0.0
    %2757 = vmatpush1.msra.mxu0 %v717
    %2758 = vmatprep.subr.mxu0 0.0
    %2759 = vmatpush1.msra.mxu0 %v720
    %2760 = vmatprep.subr.mxu0 0.0
    %2761 = vmatpush1.msra.mxu0 %v723
    %2762 = vmatprep.subr.mxu0 0.0
    %2763 = vmatpush1.msra.mxu0 %v726
    %2764 = vmatprep.subr.mxu0 0.0
    %2765 = vmatpush1.msra.mxu0 %v729
    %2766 = vmatprep.subr.mxu0 0.0
    %2767 = vmatpush1.msra.mxu0 %v732
    %2768 = vmatprep.subr.mxu0 0.0
    %2769 = vmatpush1.msra.mxu0 %v735
    %2770 = vmatprep.subr.mxu0 0.0
    %2771 = vmatpush1.msra.mxu0 %v738
    %2772 = vmatprep.subr.mxu0 0.0
    %2773 = vmatpush1.msra.mxu0 %v741
    %2774 = vmatprep.subr.mxu0 0.0
    %2775 = vmatpush1.msra.mxu0 %v744
    %2776 = vmatprep.subr.mxu0 0.0
    %2777 = vmatpush1.msra.mxu0 %v747
    %2778 = vmatprep.subr.mxu0 0.0
    %2779 = vmatpush1.msra.mxu0 %v750
    %2780 = vmatprep.subr.mxu0 0.0
    %2781 = vmatpush1.msra.mxu0 %v753
    %2782 = vmatprep.subr.mxu0 0.0
    %2783 = vmatpush1.msra.mxu0 %v756
    %2784 = vmatprep.subr.mxu0 0.0
    %2785 = vmatpush1.msra.mxu0 %v759
    %2786 = vmatprep.subr.mxu0 0.0
    %2787 = vmatpush1.msra.mxu0 0.0
    %2788 = vmatprep.subr.mxu0 0.0
    %2789 = vmatpush1.msra.mxu0 0.0
    %2790 = vmatprep.subr.mxu0 0.0
    %2791 = vmatpush1.msra.mxu0 0.0
    %2792 = vmatprep.subr.mxu0 0.0
    %2793 = vmatpush1.msra.mxu0 0.0
    %2794 = vmatprep.subr.mxu0 0.0
    %2795 = vmatpush1.msra.mxu0 0.0
    %2796 = vmatprep.subr.mxu0 0.0
    %2797 = vmatpush1.msra.mxu0 0.0
    %2798 = vmatprep.subr.mxu0 0.0
    %2799 = vmatpush1.msra.mxu0 0.0
    %2800 = vmatprep.subr.mxu0 0.0
    %2801 = vmatpush1.msra.mxu0 0.0
    %2802 = vmatprep.subr.mxu0 0.0
    %2803 = vmatpush1.msra.mxu0 0.0
    %2804 = vmatprep.subr.mxu0 0.0
    %2805 = vmatpush1.msra.mxu0 0.0
    %2806 = vmatprep.subr.mxu0 0.0
    %2807 = vmatpush1.msra.mxu0 0.0
    %2808 = vmatprep.subr.mxu0 0.0
    %2809 = vmatpush1.msra.mxu0 0.0
    %2810 = vmatprep.subr.mxu0 0.0
    %2811 = vmatpush1.msra.mxu0 0.0
    %2812 = vmatprep.subr.mxu0 0.0
    %2813 = vmatpush1.msra.mxu0 0.0
    %2814 = vmatprep.subr.mxu0 0.0
    %2815 = vmatpush1.msra.mxu0 0.0
    %2816 = vmatprep.subr.mxu0 0.0
    %2817 = vmatpush1.msra.mxu0 0.0
    %2818 = vmatprep.mubr.f32.mxu0 0.0
    %2819 = vmatmul.mubr.f32.gmra.mrb[0].mxu0 %v2378
    %v2820 = vpop.f32.mrb[0].mxu0
    %v2821 = vadd.f32 %v772, %v2820
    %v2822 = vpop.f32.mrb[0].mxu0
    %2823 = vdwg.mxu0
    %v2824 = vadd.f32 %v2609, %v2750
    %v2825 = vxor.u32 %v2824, 2147483648
    %v2826 = vmul.f32 %v2825, 1.442695
    %v2827 = vpow.pop %v2826
    %v2828 = vadd.f32 %v2827, 1.0
    %v2829 = vrcp.pop %v2828
    %v2830 = vmul.f32 1.0, %v2829
    %v2831 = vadd.f32 %v2611, %v2752
    %v2832 = vxor.u32 %v2831, 2147483648
    %v2833 = vmul.f32 %v2832, 1.442695
    %v2834 = vpow.pop %v2833
    %v2835 = vadd.f32 %v2834, 1.0
    %v2836 = vrcp.pop %v2835
    %v2837 = vmul.f32 1.0, %v2836
    %v2838 = vmul.f32 %v2830, %v2821
    %v2839 = vadd.f32 %v2680, %v2838
    %v2840 = vtanh.pop %v2839
    %v2841 = vsub.f32 1.0, %v2837
    %v2842 = vmul.f32 %v2841, %v2840
    %v2843 = vmul.f32 %v2837, %v2378
    %v2844 = vadd.f32 %v2842, %v2843
    %v2845 = vadd.f32 %v2379, %v2844
    %2846 = vmatprep.subr.mxu0 %v282
    %2847 = vmatpush1.msra.mxu0 %v281
    %2848 = vmatprep.subr.mxu0 %v285
    %2849 = vmatpush1.msra.mxu0 %v284
    %2850 = vmatprep.subr.mxu0 %v288
    %2851 = vmatpush1.msra.mxu0 %v287
    %2852 = vmatprep.subr.mxu0 %v291
    %2853 = vmatpush1.msra.mxu0 %v290
    %2854 = vmatprep.subr.mxu0 %v294
    %2855 = vmatpush1.msra.mxu0 %v293
    %2856 = vmatprep.subr.mxu0 %v297
    %2857 = vmatpush1.msra.mxu0 %v296
    %2858 = vmatprep.subr.mxu0 %v300
    %2859 = vmatpush1.msra.mxu0 %v299
    %2860 = vmatprep.subr.mxu0 %v303
    %2861 = vmatpush1.msra.mxu0 %v302
    %2862 = vmatprep.subr.mxu0 %v306
    %2863 = vmatpush1.msra.mxu0 %v305
    %2864 = vmatprep.subr.mxu0 %v309
    %2865 = vmatpush1.msra.mxu0 %v308
    %2866 = vmatprep.subr.mxu0 %v312
    %2867 = vmatpush1.msra.mxu0 %v311
    %2868 = vmatprep.subr.mxu0 %v315
    %2869 = vmatpush1.msra.mxu0 %v314
    %2870 = vmatprep.subr.mxu0 %v318
    %2871 = vmatpush1.msra.mxu0 %v317
    %2872 = vmatprep.subr.mxu0 %v321
    %2873 = vmatpush1.msra.mxu0 %v320
    %2874 = vmatprep.subr.mxu0 %v324
    %2875 = vmatpush1.msra.mxu0 %v323
    %2876 = vmatprep.subr.mxu0 %v327
    %2877 = vmatpush1.msra.mxu0 %v326
    %2878 = vmatprep.subr.mxu0 0.0
    %2879 = vmatpush1.msra.mxu0 0.0
    %2880 = vmatprep.subr.mxu0 0.0
    %2881 = vmatpush1.msra.mxu0 0.0
    %2882 = vmatprep.subr.mxu0 0.0
    %2883 = vmatpush1.msra.mxu0 0.0
    %2884 = vmatprep.subr.mxu0 0.0
    %2885 = vmatpush1.msra.mxu0 0.0
    %2886 = vmatprep.subr.mxu0 0.0
    %2887 = vmatpush1.msra.mxu0 0.0
    %2888 = vmatprep.subr.mxu0 0.0
    %2889 = vmatpush1.msra.mxu0 0.0
    %2890 = vmatprep.subr.mxu0 0.0
    %2891 = vmatpush1.msra.mxu0 0.0
    %2892 = vmatprep.subr.mxu0 0.0
    %2893 = vmatpush1.msra.mxu0 0.0
    %2894 = vmatprep.subr.mxu0 0.0
    %2895 = vmatpush1.msra.mxu0 0.0
    %2896 = vmatprep.subr.mxu0 0.0
    %2897 = vmatpush1.msra.mxu0 0.0
    %2898 = vmatprep.subr.mxu0 0.0
    %2899 = vmatpush1.msra.mxu0 0.0
    %2900 = vmatprep.subr.mxu0 0.0
    %2901 = vmatpush1.msra.mxu0 0.0
    %2902 = vmatprep.subr.mxu0 0.0
    %2903 = vmatpush1.msra.mxu0 0.0
    %2904 = vmatprep.subr.mxu0 0.0
    %2905 = vmatpush1.msra.mxu0 0.0
    %2906 = vmatprep.subr.mxu0 0.0
    %2907 = vmatpush1.msra.mxu0 0.0
    %2908 = vmatprep.subr.mxu0 0.0
    %2909 = vmatpush1.msra.mxu0 0.0
    %2910 = vmatprep.mubr.f32.mxu0 0.0
    %2911 = vmatmul.mubr.f32.gmra.mrb[0].mxu0 %v2541
    %v2912 = vpop.f32.mrb[0].mxu0
    %v2913 = vadd.f32 %v333, %v2912
    %v2914 = vpop.f32.mrb[0].mxu0
    %v2915 = vadd.f32 %v337, %v2914
    %2916 = vdwg.mxu0
    %2917 = vmatprep.subr.mxu0 0.0
    %2918 = vmatpush1.msra.mxu0 %v283
    %2919 = vmatprep.subr.mxu0 0.0
    %2920 = vmatpush1.msra.mxu0 %v286
    %2921 = vmatprep.subr.mxu0 0.0
    %2922 = vmatpush1.msra.mxu0 %v289
    %2923 = vmatprep.subr.mxu0 0.0
    %2924 = vmatpush1.msra.mxu0 %v292
    %2925 = vmatprep.subr.mxu0 0.0
    %2926 = vmatpush1.msra.mxu0 %v295
    %2927 = vmatprep.subr.mxu0 0.0
    %2928 = vmatpush1.msra.mxu0 %v298
    %2929 = vmatprep.subr.mxu0 0.0
    %2930 = vmatpush1.msra.mxu0 %v301
    %2931 = vmatprep.subr.mxu0 0.0
    %2932 = vmatpush1.msra.mxu0 %v304
    %2933 = vmatprep.subr.mxu0 0.0
    %2934 = vmatpush1.msra.mxu0 %v307
    %2935 = vmatprep.subr.mxu0 0.0
    %2936 = vmatpush1.msra.mxu0 %v310
    %2937 = vmatprep.subr.mxu0 0.0
    %2938 = vmatpush1.msra.mxu0 %v313
    %2939 = vmatprep.subr.mxu0 0.0
    %2940 = vmatpush1.msra.mxu0 %v316
    %2941 = vmatprep.subr.mxu0 0.0
    %2942 = vmatpush1.msra.mxu0 %v319
    %2943 = vmatprep.subr.mxu0 0.0
    %2944 = vmatpush1.msra.mxu0 %v322
    %2945 = vmatprep.subr.mxu0 0.0
    %2946 = vmatpush1.msra.mxu0 %v325
    %2947 = vmatprep.subr.mxu0 0.0
    %2948 = vmatpush1.msra.mxu0 %v328
    %2949 = vmatprep.subr.mxu0 0.0
    %2950 = vmatpush1.msra.mxu0 0.0
    %2951 = vmatprep.subr.mxu0 0.0
    %2952 = vmatpush1.msra.mxu0 0.0
    %2953 = vmatprep.subr.mxu0 0.0
    %2954 = vmatpush1.msra.mxu0 0.0
    %2955 = vmatprep.subr.mxu0 0.0
    %2956 = vmatpush1.msra.mxu0 0.0
    %2957 = vmatprep.subr.mxu0 0.0
    %2958 = vmatpush1.msra.mxu0 0.0
    %2959 = vmatprep.subr.mxu0 0.0
    %2960 = vmatpush1.msra.mxu0 0.0
    %2961 = vmatprep.subr.mxu0 0.0
    %2962 = vmatpush1.msra.mxu0 0.0
    %2963 = vmatprep.subr.mxu0 0.0
    %2964 = vmatpush1.msra.mxu0 0.0
    %2965 = vmatprep.subr.mxu0 0.0
    %2966 = vmatpush1.msra.mxu0 0.0
    %2967 = vmatprep.subr.mxu0 0.0
    %2968 = vmatpush1.msra.mxu0 0.0
    %2969 = vmatprep.subr.mxu0 0.0
    %2970 = vmatpush1.msra.mxu0 0.0
    %2971 = vmatprep.subr.mxu0 0.0
    %2972 = vmatpush1.msra.mxu0 0.0
    %2973 = vmatprep.subr.mxu0 0.0
    %2974 = vmatpush1.msra.mxu0 0.0
    %2975 = vmatprep.subr.mxu0 0.0
    %2976 = vmatpush1.msra.mxu0 0.0
    %2977 = vmatprep.subr.mxu0 0.0
    %2978 = vmatpush1.msra.mxu0 0.0
    %2979 = vmatprep.subr.mxu0 0.0
    %2980 = vmatpush1.msra.mxu0 0.0
    %2981 = vmatprep.mubr.f32.mxu0 0.0
    %2982 = vmatmul.mubr.f32.gmra.mrb[0].mxu0 %v2541
    %v2983 = vpop.f32.mrb[0].mxu0
    %v2984 = vadd.f32 %v341, %v2983
    %v2985 = vpop.f32.mrb[0].mxu0
    %2986 = vdwg.mxu0
    %v2988 = vrot.slane %v2913, 6
    %v2990 = vadd.f32 %v199, %v2988
    %v2991 = vxor.u32 %v2990, 2147483648
    %v2992 = vmul.f32 %v2991, 1.442695
    %v2993 = vpow.pop %v2992
    %v2994 = vadd.f32 %v2993, 1.0
    %v2995 = vrcp.pop %v2994
    %v2996 = vmul.f32 1.0, %v2995
    %v2998 = vrot.slane %v2915, 6
    %v3000 = vadd.f32 %v201, %v2998
    %v3001 = vxor.u32 %v3000, 2147483648
    %v3002 = vmul.f32 %v3001, 1.442695
    %v3003 = vpow.pop %v3002
    %v3004 = vadd.f32 %v3003, 1.0
    %v3005 = vrcp.pop %v3004
    %v3006 = vmul.f32 1.0, %v3005
    %v3008 = vrot.slane %v2984, 6
    %v3010 = vmul.f32 %v2996, %v3008
    %v3011 = vadd.f32 %v275, %v3010
    %v3012 = vtanh.pop %v3011
    %v3013 = vsub.f32 1.0, %v3006
    %v3014 = vmul.f32 %v3013, %v3012
    %v3016 = vrot.slane %v2541, 6
    %v3018 = vmul.f32 %v3006, %v3016
    %v3019 = vadd.f32 %v3014, %v3018
    %v3021 = vrot.slane %v3019, 2
    %3023 = vmatprep.subr.mxu0 %v508
    %3024 = vmatpush1.msra.mxu0 %v507
    %3025 = vmatprep.subr.mxu0 %v511
    %3026 = vmatpush1.msra.mxu0 %v510
    %3027 = vmatprep.subr.mxu0 %v514
    %3028 = vmatpush1.msra.mxu0 %v513
    %3029 = vmatprep.subr.mxu0 %v517
    %3030 = vmatpush1.msra.mxu0 %v516
    %3031 = vmatprep.subr.mxu0 %v520
    %3032 = vmatpush1.msra.mxu0 %v519
    %3033 = vmatprep.subr.mxu0 %v523
    %3034 = vmatpush1.msra.mxu0 %v522
    %3035 = vmatprep.subr.mxu0 %v526
    %3036 = vmatpush1.msra.mxu0 %v525
    %3037 = vmatprep.subr.mxu0 %v529
    %3038 = vmatpush1.msra.mxu0 %v528
    %3039 = vmatprep.subr.mxu0 %v532
    %3040 = vmatpush1.msra.mxu0 %v531
    %3041 = vmatprep.subr.mxu0 %v535
    %3042 = vmatpush1.msra.mxu0 %v534
    %3043 = vmatprep.subr.mxu0 %v538
    %3044 = vmatpush1.msra.mxu0 %v537
    %3045 = vmatprep.subr.mxu0 %v541
    %3046 = vmatpush1.msra.mxu0 %v540
    %3047 = vmatprep.subr.mxu0 %v544
    %3048 = vmatpush1.msra.mxu0 %v543
    %3049 = vmatprep.subr.mxu0 %v547
    %3050 = vmatpush1.msra.mxu0 %v546
    %3051 = vmatprep.subr.mxu0 %v550
    %3052 = vmatpush1.msra.mxu0 %v549
    %3053 = vmatprep.subr.mxu0 %v553
    %3054 = vmatpush1.msra.mxu0 %v552
    %3055 = vmatprep.subr.mxu0 0.0
    %3056 = vmatpush1.msra.mxu0 0.0
    %3057 = vmatprep.subr.mxu0 0.0
    %3058 = vmatpush1.msra.mxu0 0.0
    %3059 = vmatprep.subr.mxu0 0.0
    %3060 = vmatpush1.msra.mxu0 0.0
    %3061 = vmatprep.subr.mxu0 0.0
    %3062 = vmatpush1.msra.mxu0 0.0
    %3063 = vmatprep.subr.mxu0 0.0
    %3064 = vmatpush1.msra.mxu0 0.0
    %3065 = vmatprep.subr.mxu0 0.0
    %3066 = vmatpush1.msra.mxu0 0.0
    %3067 = vmatprep.subr.mxu0 0.0
    %3068 = vmatpush1.msra.mxu0 0.0
    %3069 = vmatprep.subr.mxu0 0.0
    %3070 = vmatpush1.msra.mxu0 0.0
    %3071 = vmatprep.subr.mxu0 0.0
    %3072 = vmatpush1.msra.mxu0 0.0
    %3073 = vmatprep.subr.mxu0 0.0
    %3074 = vmatpush1.msra.mxu0 0.0
    %3075 = vmatprep.subr.mxu0 0.0
    %3076 = vmatpush1.msra.mxu0 0.0
    %3077 = vmatprep.subr.mxu0 0.0
    %3078 = vmatpush1.msra.mxu0 0.0
    %3079 = vmatprep.subr.mxu0 0.0
    %3080 = vmatpush1.msra.mxu0 0.0
    %3081 = vmatprep.subr.mxu0 0.0
    %3082 = vmatpush1.msra.mxu0 0.0
    %3083 = vmatprep.subr.mxu0 0.0
    %3084 = vmatpush1.msra.mxu0 0.0
    %3085 = vmatprep.subr.mxu0 0.0
    %3086 = vmatpush1.msra.mxu0 0.0
    %3087 = vmatprep.mubr.f32.mxu0 0.0
    %3088 = vmatmul.mubr.f32.gmra.mrb[0].mxu0 %v3021
    %v3089 = vpop.f32.mrb[0].mxu0
    %v3090 = vadd.f32 %v559, %v3089
    %v3091 = vpop.f32.mrb[0].mxu0
    %v3092 = vadd.f32 %v563, %v3091
    %3093 = vdwg.mxu0
    %3094 = vmatprep.subr.mxu0 0.0
    %3095 = vmatpush1.msra.mxu0 %v509
    %3096 = vmatprep.subr.mxu0 0.0
    %3097 = vmatpush1.msra.mxu0 %v512
    %3098 = vmatprep.subr.mxu0 0.0
    %3099 = vmatpush1.msra.mxu0 %v515
    %3100 = vmatprep.subr.mxu0 0.0
    %3101 = vmatpush1.msra.mxu0 %v518
    %3102 = vmatprep.subr.mxu0 0.0
    %3103 = vmatpush1.msra.mxu0 %v521
    %3104 = vmatprep.subr.mxu0 0.0
    %3105 = vmatpush1.msra.mxu0 %v524
    %3106 = vmatprep.subr.mxu0 0.0
    %3107 = vmatpush1.msra.mxu0 %v527
    %3108 = vmatprep.subr.mxu0 0.0
    %3109 = vmatpush1.msra.mxu0 %v530
    %3110 = vmatprep.subr.mxu0 0.0
    %3111 = vmatpush1.msra.mxu0 %v533
    %3112 = vmatprep.subr.mxu0 0.0
    %3113 = vmatpush1.msra.mxu0 %v536
    %3114 = vmatprep.subr.mxu0 0.0
    %3115 = vmatpush1.msra.mxu0 %v539
    %3116 = vmatprep.subr.mxu0 0.0
    %3117 = vmatpush1.msra.mxu0 %v542
    %3118 = vmatprep.subr.mxu0 0.0
    %3119 = vmatpush1.msra.mxu0 %v545
    %3120 = vmatprep.subr.mxu0 0.0
    %3121 = vmatpush1.msra.mxu0 %v548
    %3122 = vmatprep.subr.mxu0 0.0
    %3123 = vmatpush1.msra.mxu0 %v551
    %3124 = vmatprep.subr.mxu0 0.0
    %3125 = vmatpush1.msra.mxu0 %v554
    %3126 = vmatprep.subr.mxu0 0.0
    %3127 = vmatpush1.msra.mxu0 0.0
    %3128 = vmatprep.subr.mxu0 0.0
    %3129 = vmatpush1.msra.mxu0 0.0
    %3130 = vmatprep.subr.mxu0 0.0
    %3131 = vmatpush1.msra.mxu0 0.0
    %3132 = vmatprep.subr.mxu0 0.0
    %3133 = vmatpush1.msra.mxu0 0.0
    %3134 = vmatprep.subr.mxu0 0.0
    %3135 = vmatpush1.msra.mxu0 0.0
    %3136 = vmatprep.subr.mxu0 0.0
    %3137 = vmatpush1.msra.mxu0 0.0
    %3138 = vmatprep.subr.mxu0 0.0
    %3139 = vmatpush1.msra.mxu0 0.0
    %3140 = vmatprep.subr.mxu0 0.0
    %3141 = vmatpush1.msra.mxu0 0.0
    %3142 = vmatprep.subr.mxu0 0.0
    %3143 = vmatpush1.msra.mxu0 0.0
    %3144 = vmatprep.subr.mxu0 0.0
    %3145 = vmatpush1.msra.mxu0 0.0
    %3146 = vmatprep.subr.mxu0 0.0
    %3147 = vmatpush1.msra.mxu0 0.0
    %3148 = vmatprep.subr.mxu0 0.0
    %3149 = vmatpush1.msra.mxu0 0.0
    %3150 = vmatprep.subr.mxu0 0.0
    %3151 = vmatpush1.msra.mxu0 0.0
    %3152 = vmatprep.subr.mxu0 0.0
    %3153 = vmatpush1.msra.mxu0 0.0
    %3154 = vmatprep.subr.mxu0 0.0
    %3155 = vmatpush1.msra.mxu0 0.0
    %3156 = vmatprep.subr.mxu0 0.0
    %3157 = vmatpush1.msra.mxu0 0.0
    %3158 = vmatprep.mubr.f32.mxu0 0.0
    %3159 = vmatmul.mubr.f32.gmra.mrb[0].mxu0 %v3021
    %v3160 = vpop.f32.mrb[0].mxu0
    %v3161 = vadd.f32 %v567, %v3160
    %v3162 = vpop.f32.mrb[0].mxu0
    %3163 = vdwg.mxu0
    %3164 = vmatprep.subr.mxu0 %v713
    %3165 = vmatpush1.msra.mxu0 %v712
    %3166 = vmatprep.subr.mxu0 %v716
    %3167 = vmatpush1.msra.mxu0 %v715
    %3168 = vmatprep.subr.mxu0 %v719
    %3169 = vmatpush1.msra.mxu0 %v718
    %3170 = vmatprep.subr.mxu0 %v722
    %3171 = vmatpush1.msra.mxu0 %v721
    %3172 = vmatprep.subr.mxu0 %v725
    %3173 = vmatpush1.msra.mxu0 %v724
    %3174 = vmatprep.subr.mxu0 %v728
    %3175 = vmatpush1.msra.mxu0 %v727
    %3176 = vmatprep.subr.mxu0 %v731
    %3177 = vmatpush1.msra.mxu0 %v730
    %3178 = vmatprep.subr.mxu0 %v734
    %3179 = vmatpush1.msra.mxu0 %v733
    %3180 = vmatprep.subr.mxu0 %v737
    %3181 = vmatpush1.msra.mxu0 %v736
    %3182 = vmatprep.subr.mxu0 %v740
    %3183 = vmatpush1.msra.mxu0 %v739
    %3184 = vmatprep.subr.mxu0 %v743
    %3185 = vmatpush1.msra.mxu0 %v742
    %3186 = vmatprep.subr.mxu0 %v746
    %3187 = vmatpush1.msra.mxu0 %v745
    %3188 = vmatprep.subr.mxu0 %v749
    %3189 = vmatpush1.msra.mxu0 %v748
    %3190 = vmatprep.subr.mxu0 %v752
    %3191 = vmatpush1.msra.mxu0 %v751
    %3192 = vmatprep.subr.mxu0 %v755
    %3193 = vmatpush1.msra.mxu0 %v754
    %3194 = vmatprep.subr.mxu0 %v758
    %3195 = vmatpush1.msra.mxu0 %v757
    %3196 = vmatprep.subr.mxu0 0.0
    %3197 = vmatpush1.msra.mxu0 0.0
    %3198 = vmatprep.subr.mxu0 0.0
    %3199 = vmatpush1.msra.mxu0 0.0
    %3200 = vmatprep.subr.mxu0 0.0
    %3201 = vmatpush1.msra.mxu0 0.0
    %3202 = vmatprep.subr.mxu0 0.0
    %3203 = vmatpush1.msra.mxu0 0.0
    %3204 = vmatprep.subr.mxu0 0.0
    %3205 = vmatpush1.msra.mxu0 0.0
    %3206 = vmatprep.subr.mxu0 0.0
    %3207 = vmatpush1.msra.mxu0 0.0
    %3208 = vmatprep.subr.mxu0 0.0
    %3209 = vmatpush1.msra.mxu0 0.0
    %3210 = vmatprep.subr.mxu0 0.0
    %3211 = vmatpush1.msra.mxu0 0.0
    %3212 = vmatprep.subr.mxu0 0.0
    %3213 = vmatpush1.msra.mxu0 0.0
    %3214 = vmatprep.subr.mxu0 0.0
    %3215 = vmatpush1.msra.mxu0 0.0
    %3216 = vmatprep.subr.mxu0 0.0
    %3217 = vmatpush1.msra.mxu0 0.0
    %3218 = vmatprep.subr.mxu0 0.0
    %3219 = vmatpush1.msra.mxu0 0.0
    %3220 = vmatprep.subr.mxu0 0.0
    %3221 = vmatpush1.msra.mxu0 0.0
    %3222 = vmatprep.subr.mxu0 0.0
    %3223 = vmatpush1.msra.mxu0 0.0
    %3224 = vmatprep.subr.mxu0 0.0
    %3225 = vmatpush1.msra.mxu0 0.0
    %3226 = vmatprep.subr.mxu0 0.0
    %3227 = vmatpush1.msra.mxu0 0.0
    %3228 = vmatprep.mubr.f32.mxu0 0.0
    %3229 = vmatmul.mubr.f32.gmra.mrb[0].mxu0 %v2844
    %v3230 = vpop.f32.mrb[0].mxu0
    %v3231 = vadd.f32 %v764, %v3230
    %v3232 = vpop.f32.mrb[0].mxu0
    %v3233 = vadd.f32 %v768, %v3232
    %3234 = vdwg.mxu0
    %3235 = vmatprep.subr.mxu0 0.0
    %3236 = vmatpush1.msra.mxu0 %v714
    %3237 = vmatprep.subr.mxu0 0.0
    %3238 = vmatpush1.msra.mxu0 %v717
    %3239 = vmatprep.subr.mxu0 0.0
    %3240 = vmatpush1.msra.mxu0 %v720
    %3241 = vmatprep.subr.mxu0 0.0
    %3242 = vmatpush1.msra.mxu0 %v723
    %3243 = vmatprep.subr.mxu0 0.0
    %3244 = vmatpush1.msra.mxu0 %v726
    %3245 = vmatprep.subr.mxu0 0.0
    %3246 = vmatpush1.msra.mxu0 %v729
    %3247 = vmatprep.subr.mxu0 0.0
    %3248 = vmatpush1.msra.mxu0 %v732
    %3249 = vmatprep.subr.mxu0 0.0
    %3250 = vmatpush1.msra.mxu0 %v735
    %3251 = vmatprep.subr.mxu0 0.0
    %3252 = vmatpush1.msra.mxu0 %v738
    %3253 = vmatprep.subr.mxu0 0.0
    %3254 = vmatpush1.msra.mxu0 %v741
    %3255 = vmatprep.subr.mxu0 0.0
    %3256 = vmatpush1.msra.mxu0 %v744
    %3257 = vmatprep.subr.mxu0 0.0
    %3258 = vmatpush1.msra.mxu0 %v747
    %3259 = vmatprep.subr.mxu0 0.0
    %3260 = vmatpush1.msra.mxu0 %v750
    %3261 = vmatprep.subr.mxu0 0.0
    %3262 = vmatpush1.msra.mxu0 %v753
    %3263 = vmatprep.subr.mxu0 0.0
    %3264 = vmatpush1.msra.mxu0 %v756
    %3265 = vmatprep.subr.mxu0 0.0
    %3266 = vmatpush1.msra.mxu0 %v759
    %3267 = vmatprep.subr.mxu0 0.0
    %3268 = vmatpush1.msra.mxu0 0.0
    %3269 = vmatprep.subr.mxu0 0.0
    %3270 = vmatpush1.msra.mxu0 0.0
    %3271 = vmatprep.subr.mxu0 0.0
    %3272 = vmatpush1.msra.mxu0 0.0
    %3273 = vmatprep.subr.mxu0 0.0
    %3274 = vmatpush1.msra.mxu0 0.0
    %3275 = vmatprep.subr.mxu0 0.0
    %3276 = vmatpush1.msra.mxu0 0.0
    %3277 = vmatprep.subr.mxu0 0.0
    %3278 = vmatpush1.msra.mxu0 0.0
    %3279 = vmatprep.subr.mxu0 0.0
    %3280 = vmatpush1.msra.mxu0 0.0
    %3281 = vmatprep.subr.mxu0 0.0
    %3282 = vmatpush1.msra.mxu0 0.0
    %3283 = vmatprep.subr.mxu0 0.0
    %3284 = vmatpush1.msra.mxu0 0.0
    %3285 = vmatprep.subr.mxu0 0.0
    %3286 = vmatpush1.msra.mxu0 0.0
    %3287 = vmatprep.subr.mxu0 0.0
    %3288 = vmatpush1.msra.mxu0 0.0
    %3289 = vmatprep.subr.mxu0 0.0
    %3290 = vmatpush1.msra.mxu0 0.0
    %3291 = vmatprep.subr.mxu0 0.0
    %3292 = vmatpush1.msra.mxu0 0.0
    %3293 = vmatprep.subr.mxu0 0.0
    %3294 = vmatpush1.msra.mxu0 0.0
    %3295 = vmatprep.subr.mxu0 0.0
    %3296 = vmatpush1.msra.mxu0 0.0
    %3297 = vmatprep.subr.mxu0 0.0
    %3298 = vmatpush1.msra.mxu0 0.0
    %3299 = vmatprep.mubr.f32.mxu0 0.0
    %3300 = vmatmul.mubr.f32.gmra.mrb[0].mxu0 %v2844
    %v3301 = vpop.f32.mrb[0].mxu0
    %v3302 = vadd.f32 %v772, %v3301
    %v3303 = vpop.f32.mrb[0].mxu0
    %3304 = vdwg.mxu0
    %v3305 = vadd.f32 %v3090, %v3231
    %v3306 = vxor.u32 %v3305, 2147483648
    %v3307 = vmul.f32 %v3306, 1.442695
    %v3308 = vpow.pop %v3307
    %v3309 = vadd.f32 %v3308, 1.0
    %v3310 = vrcp.pop %v3309
    %v3311 = vmul.f32 1.0, %v3310
    %v3312 = vadd.f32 %v3092, %v3233
    %v3313 = vxor.u32 %v3312, 2147483648
    %v3314 = vmul.f32 %v3313, 1.442695
    %v3315 = vpow.pop %v3314
    %v3316 = vadd.f32 %v3315, 1.0
    %v3317 = vrcp.pop %v3316
    %v3318 = vmul.f32 1.0, %v3317
    %v3319 = vmul.f32 %v3311, %v3302
    %v3320 = vadd.f32 %v3161, %v3319
    %v3321 = vtanh.pop %v3320
    %v3322 = vsub.f32 1.0, %v3318
    %v3323 = vmul.f32 %v3322, %v3321
    %v3324 = vmul.f32 %v3318, %v2844
    %v3325 = vadd.f32 %v3323, %v3324
    %v3326 = vadd.f32 %v2845, %v3325
    %3327 = vmatprep.subr.mxu0 %v282
    %3328 = vmatpush1.msra.mxu0 %v281
    %3329 = vmatprep.subr.mxu0 %v285
    %3330 = vmatpush1.msra.mxu0 %v284
    %3331 = vmatprep.subr.mxu0 %v288
    %3332 = vmatpush1.msra.mxu0 %v287
    %3333 = vmatprep.subr.mxu0 %v291
    %3334 = vmatpush1.msra.mxu0 %v290
    %3335 = vmatprep.subr.mxu0 %v294
    %3336 = vmatpush1.msra.mxu0 %v293
    %3337 = vmatprep.subr.mxu0 %v297
    %3338 = vmatpush1.msra.mxu0 %v296
    %3339 = vmatprep.subr.mxu0 %v300
    %3340 = vmatpush1.msra.mxu0 %v299
    %3341 = vmatprep.subr.mxu0 %v303
    %3342 = vmatpush1.msra.mxu0 %v302
    %3343 = vmatprep.subr.mxu0 %v306
    %3344 = vmatpush1.msra.mxu0 %v305
    %3345 = vmatprep.subr.mxu0 %v309
    %3346 = vmatpush1.msra.mxu0 %v308
    %3347 = vmatprep.subr.mxu0 %v312
    %3348 = vmatpush1.msra.mxu0 %v311
    %3349 = vmatprep.subr.mxu0 %v315
    %3350 = vmatpush1.msra.mxu0 %v314
    %3351 = vmatprep.subr.mxu0 %v318
    %3352 = vmatpush1.msra.mxu0 %v317
    %3353 = vmatprep.subr.mxu0 %v321
    %3354 = vmatpush1.msra.mxu0 %v320
    %3355 = vmatprep.subr.mxu0 %v324
    %3356 = vmatpush1.msra.mxu0 %v323
    %3357 = vmatprep.subr.mxu0 %v327
    %3358 = vmatpush1.msra.mxu0 %v326
    %3359 = vmatprep.subr.mxu0 0.0
    %3360 = vmatpush1.msra.mxu0 0.0
    %3361 = vmatprep.subr.mxu0 0.0
    %3362 = vmatpush1.msra.mxu0 0.0
    %3363 = vmatprep.subr.mxu0 0.0
    %3364 = vmatpush1.msra.mxu0 0.0
    %3365 = vmatprep.subr.mxu0 0.0
    %3366 = vmatpush1.msra.mxu0 0.0
    %3367 = vmatprep.subr.mxu0 0.0
    %3368 = vmatpush1.msra.mxu0 0.0
    %3369 = vmatprep.subr.mxu0 0.0
    %3370 = vmatpush1.msra.mxu0 0.0
    %3371 = vmatprep.subr.mxu0 0.0
    %3372 = vmatpush1.msra.mxu0 0.0
    %3373 = vmatprep.subr.mxu0 0.0
    %3374 = vmatpush1.msra.mxu0 0.0
    %3375 = vmatprep.subr.mxu0 0.0
    %3376 = vmatpush1.msra.mxu0 0.0
    %3377 = vmatprep.subr.mxu0 0.0
    %3378 = vmatpush1.msra.mxu0 0.0
    %3379 = vmatprep.subr.mxu0 0.0
    %3380 = vmatpush1.msra.mxu0 0.0
    %3381 = vmatprep.subr.mxu0 0.0
    %3382 = vmatpush1.msra.mxu0 0.0
    %3383 = vmatprep.subr.mxu0 0.0
    %3384 = vmatpush1.msra.mxu0 0.0
    %3385 = vmatprep.subr.mxu0 0.0
    %3386 = vmatpush1.msra.mxu0 0.0
    %3387 = vmatprep.subr.mxu0 0.0
    %3388 = vmatpush1.msra.mxu0 0.0
    %3389 = vmatprep.subr.mxu0 0.0
    %3390 = vmatpush1.msra.mxu0 0.0
    %3391 = vmatprep.mubr.f32.mxu0 0.0
    %3392 = vmatmul.mubr.f32.gmra.mrb[0].mxu0 %v3021
    %v3393 = vpop.f32.mrb[0].mxu0
    %v3394 = vadd.f32 %v333, %v3393
    %v3395 = vpop.f32.mrb[0].mxu0
    %v3396 = vadd.f32 %v337, %v3395
    %3397 = vdwg.mxu0
    %3398 = vmatprep.subr.mxu0 0.0
    %3399 = vmatpush1.msra.mxu0 %v283
    %3400 = vmatprep.subr.mxu0 0.0
    %3401 = vmatpush1.msra.mxu0 %v286
    %3402 = vmatprep.subr.mxu0 0.0
    %3403 = vmatpush1.msra.mxu0 %v289
    %3404 = vmatprep.subr.mxu0 0.0
    %3405 = vmatpush1.msra.mxu0 %v292
    %3406 = vmatprep.subr.mxu0 0.0
    %3407 = vmatpush1.msra.mxu0 %v295
    %3408 = vmatprep.subr.mxu0 0.0
    %3409 = vmatpush1.msra.mxu0 %v298
    %3410 = vmatprep.subr.mxu0 0.0
    %3411 = vmatpush1.msra.mxu0 %v301
    %3412 = vmatprep.subr.mxu0 0.0
    %3413 = vmatpush1.msra.mxu0 %v304
    %3414 = vmatprep.subr.mxu0 0.0
    %3415 = vmatpush1.msra.mxu0 %v307
    %3416 = vmatprep.subr.mxu0 0.0
    %3417 = vmatpush1.msra.mxu0 %v310
    %3418 = vmatprep.subr.mxu0 0.0
    %3419 = vmatpush1.msra.mxu0 %v313
    %3420 = vmatprep.subr.mxu0 0.0
    %3421 = vmatpush1.msra.mxu0 %v316
    %3422 = vmatprep.subr.mxu0 0.0
    %3423 = vmatpush1.msra.mxu0 %v319
    %3424 = vmatprep.subr.mxu0 0.0
    %3425 = vmatpush1.msra.mxu0 %v322
    %3426 = vmatprep.subr.mxu0 0.0
    %3427 = vmatpush1.msra.mxu0 %v325
    %3428 = vmatprep.subr.mxu0 0.0
    %3429 = vmatpush1.msra.mxu0 %v328
    %3430 = vmatprep.subr.mxu0 0.0
    %3431 = vmatpush1.msra.mxu0 0.0
    %3432 = vmatprep.subr.mxu0 0.0
    %3433 = vmatpush1.msra.mxu0 0.0
    %3434 = vmatprep.subr.mxu0 0.0
    %3435 = vmatpush1.msra.mxu0 0.0
    %3436 = vmatprep.subr.mxu0 0.0
    %3437 = vmatpush1.msra.mxu0 0.0
    %3438 = vmatprep.subr.mxu0 0.0
    %3439 = vmatpush1.msra.mxu0 0.0
    %3440 = vmatprep.subr.mxu0 0.0
    %3441 = vmatpush1.msra.mxu0 0.0
    %3442 = vmatprep.subr.mxu0 0.0
    %3443 = vmatpush1.msra.mxu0 0.0
    %3444 = vmatprep.subr.mxu0 0.0
    %3445 = vmatpush1.msra.mxu0 0.0
    %3446 = vmatprep.subr.mxu0 0.0
    %3447 = vmatpush1.msra.mxu0 0.0
    %3448 = vmatprep.subr.mxu0 0.0
    %3449 = vmatpush1.msra.mxu0 0.0
    %3450 = vmatprep.subr.mxu0 0.0
    %3451 = vmatpush1.msra.mxu0 0.0
    %3452 = vmatprep.subr.mxu0 0.0
    %3453 = vmatpush1.msra.mxu0 0.0
    %3454 = vmatprep.subr.mxu0 0.0
    %3455 = vmatpush1.msra.mxu0 0.0
    %3456 = vmatprep.subr.mxu0 0.0
    %3457 = vmatpush1.msra.mxu0 0.0
    %3458 = vmatprep.subr.mxu0 0.0
    %3459 = vmatpush1.msra.mxu0 0.0
    %3460 = vmatprep.subr.mxu0 0.0
    %3461 = vmatpush1.msra.mxu0 0.0
    %3462 = vmatprep.mubr.f32.mxu0 0.0
    %3463 = vmatmul.mubr.f32.gmra.mrb[0].mxu0 %v3021
    %v3464 = vpop.f32.mrb[0].mxu0
    %v3465 = vadd.f32 %v341, %v3464
    %v3466 = vpop.f32.mrb[0].mxu0
    %3467 = vdwg.mxu0
    %v3469 = vrot.slane %v3394, 4
    %v3471 = vadd.f32 %v199, %v3469
    %v3472 = vxor.u32 %v3471, 2147483648
    %v3473 = vmul.f32 %v3472, 1.442695
    %v3474 = vpow.pop %v3473
    %v3475 = vadd.f32 %v3474, 1.0
    %v3476 = vrcp.pop %v3475
    %v3477 = vmul.f32 1.0, %v3476
    %v3479 = vrot.slane %v3396, 4
    %v3481 = vadd.f32 %v201, %v3479
    %v3482 = vxor.u32 %v3481, 2147483648
    %v3483 = vmul.f32 %v3482, 1.442695
    %v3484 = vpow.pop %v3483
    %v3485 = vadd.f32 %v3484, 1.0
    %v3486 = vrcp.pop %v3485
    %v3487 = vmul.f32 1.0, %v3486
    %v3489 = vrot.slane %v3465, 4
    %v3491 = vmul.f32 %v3477, %v3489
    %v3492 = vadd.f32 %v275, %v3491
    %v3493 = vtanh.pop %v3492
    %v3494 = vsub.f32 1.0, %v3487
    %v3495 = vmul.f32 %v3494, %v3493
    %v3496 = vrot.slane %v3019, 6
    %v3498 = vmul.f32 %v3487, %v3496
    %v3499 = vadd.f32 %v3495, %v3498
    %v3501 = vrot.slane %v3499, 4
    %3503 = vmatprep.subr.mxu0 %v508
    %3504 = vmatpush1.msra.mxu0 %v507
    %3505 = vmatprep.subr.mxu0 %v511
    %3506 = vmatpush1.msra.mxu0 %v510
    %3507 = vmatprep.subr.mxu0 %v514
    %3508 = vmatpush1.msra.mxu0 %v513
    %3509 = vmatprep.subr.mxu0 %v517
    %3510 = vmatpush1.msra.mxu0 %v516
    %3511 = vmatprep.subr.mxu0 %v520
    %3512 = vmatpush1.msra.mxu0 %v519
    %3513 = vmatprep.subr.mxu0 %v523
    %3514 = vmatpush1.msra.mxu0 %v522
    %3515 = vmatprep.subr.mxu0 %v526
    %3516 = vmatpush1.msra.mxu0 %v525
    %3517 = vmatprep.subr.mxu0 %v529
    %3518 = vmatpush1.msra.mxu0 %v528
    %3519 = vmatprep.subr.mxu0 %v532
    %3520 = vmatpush1.msra.mxu0 %v531
    %3521 = vmatprep.subr.mxu0 %v535
    %3522 = vmatpush1.msra.mxu0 %v534
    %3523 = vmatprep.subr.mxu0 %v538
    %3524 = vmatpush1.msra.mxu0 %v537
    %3525 = vmatprep.subr.mxu0 %v541
    %3526 = vmatpush1.msra.mxu0 %v540
    %3527 = vmatprep.subr.mxu0 %v544
    %3528 = vmatpush1.msra.mxu0 %v543
    %3529 = vmatprep.subr.mxu0 %v547
    %3530 = vmatpush1.msra.mxu0 %v546
    %3531 = vmatprep.subr.mxu0 %v550
    %3532 = vmatpush1.msra.mxu0 %v549
    %3533 = vmatprep.subr.mxu0 %v553
    %3534 = vmatpush1.msra.mxu0 %v552
    %3535 = vmatprep.subr.mxu0 0.0
    %3536 = vmatpush1.msra.mxu0 0.0
    %3537 = vmatprep.subr.mxu0 0.0
    %3538 = vmatpush1.msra.mxu0 0.0
    %3539 = vmatprep.subr.mxu0 0.0
    %3540 = vmatpush1.msra.mxu0 0.0
    %3541 = vmatprep.subr.mxu0 0.0
    %3542 = vmatpush1.msra.mxu0 0.0
    %3543 = vmatprep.subr.mxu0 0.0
    %3544 = vmatpush1.msra.mxu0 0.0
    %3545 = vmatprep.subr.mxu0 0.0
    %3546 = vmatpush1.msra.mxu0 0.0
    %3547 = vmatprep.subr.mxu0 0.0
    %3548 = vmatpush1.msra.mxu0 0.0
    %3549 = vmatprep.subr.mxu0 0.0
    %3550 = vmatpush1.msra.mxu0 0.0
    %3551 = vmatprep.subr.mxu0 0.0
    %3552 = vmatpush1.msra.mxu0 0.0
    %3553 = vmatprep.subr.mxu0 0.0
    %3554 = vmatpush1.msra.mxu0 0.0
    %3555 = vmatprep.subr.mxu0 0.0
    %3556 = vmatpush1.msra.mxu0 0.0
    %3557 = vmatprep.subr.mxu0 0.0
    %3558 = vmatpush1.msra.mxu0 0.0
    %3559 = vmatprep.subr.mxu0 0.0
    %3560 = vmatpush1.msra.mxu0 0.0
    %3561 = vmatprep.subr.mxu0 0.0
    %3562 = vmatpush1.msra.mxu0 0.0
    %3563 = vmatprep.subr.mxu0 0.0
    %3564 = vmatpush1.msra.mxu0 0.0
    %3565 = vmatprep.subr.mxu0 0.0
    %3566 = vmatpush1.msra.mxu0 0.0
    %3567 = vmatprep.mubr.f32.mxu0 0.0
    %3568 = vmatmul.mubr.f32.gmra.mrb[0].mxu0 %v3501
    %v3569 = vpop.f32.mrb[0].mxu0
    %v3570 = vadd.f32 %v559, %v3569
    %v3571 = vpop.f32.mrb[0].mxu0
    %v3572 = vadd.f32 %v563, %v3571
    %3573 = vdwg.mxu0
    %3574 = vmatprep.subr.mxu0 0.0
    %3575 = vmatpush1.msra.mxu0 %v509
    %3576 = vmatprep.subr.mxu0 0.0
    %3577 = vmatpush1.msra.mxu0 %v512
    %3578 = vmatprep.subr.mxu0 0.0
    %3579 = vmatpush1.msra.mxu0 %v515
    %3580 = vmatprep.subr.mxu0 0.0
    %3581 = vmatpush1.msra.mxu0 %v518
    %3582 = vmatprep.subr.mxu0 0.0
    %3583 = vmatpush1.msra.mxu0 %v521
    %3584 = vmatprep.subr.mxu0 0.0
    %3585 = vmatpush1.msra.mxu0 %v524
    %3586 = vmatprep.subr.mxu0 0.0
    %3587 = vmatpush1.msra.mxu0 %v527
    %3588 = vmatprep.subr.mxu0 0.0
    %3589 = vmatpush1.msra.mxu0 %v530
    %3590 = vmatprep.subr.mxu0 0.0
    %3591 = vmatpush1.msra.mxu0 %v533
    %3592 = vmatprep.subr.mxu0 0.0
    %3593 = vmatpush1.msra.mxu0 %v536
    %3594 = vmatprep.subr.mxu0 0.0
    %3595 = vmatpush1.msra.mxu0 %v539
    %3596 = vmatprep.subr.mxu0 0.0
    %3597 = vmatpush1.msra.mxu0 %v542
    %3598 = vmatprep.subr.mxu0 0.0
    %3599 = vmatpush1.msra.mxu0 %v545
    %3600 = vmatprep.subr.mxu0 0.0
    %3601 = vmatpush1.msra.mxu0 %v548
    %3602 = vmatprep.subr.mxu0 0.0
    %3603 = vmatpush1.msra.mxu0 %v551
    %3604 = vmatprep.subr.mxu0 0.0
    %3605 = vmatpush1.msra.mxu0 %v554
    %3606 = vmatprep.subr.mxu0 0.0
    %3607 = vmatpush1.msra.mxu0 0.0
    %3608 = vmatprep.subr.mxu0 0.0
    %3609 = vmatpush1.msra.mxu0 0.0
    %3610 = vmatprep.subr.mxu0 0.0
    %3611 = vmatpush1.msra.mxu0 0.0
    %3612 = vmatprep.subr.mxu0 0.0
    %3613 = vmatpush1.msra.mxu0 0.0
    %3614 = vmatprep.subr.mxu0 0.0
    %3615 = vmatpush1.msra.mxu0 0.0
    %3616 = vmatprep.subr.mxu0 0.0
    %3617 = vmatpush1.msra.mxu0 0.0
    %3618 = vmatprep.subr.mxu0 0.0
    %3619 = vmatpush1.msra.mxu0 0.0
    %3620 = vmatprep.subr.mxu0 0.0
    %3621 = vmatpush1.msra.mxu0 0.0
    %3622 = vmatprep.subr.mxu0 0.0
    %3623 = vmatpush1.msra.mxu0 0.0
    %3624 = vmatprep.subr.mxu0 0.0
    %3625 = vmatpush1.msra.mxu0 0.0
    %3626 = vmatprep.subr.mxu0 0.0
    %3627 = vmatpush1.msra.mxu0 0.0
    %3628 = vmatprep.subr.mxu0 0.0
    %3629 = vmatpush1.msra.mxu0 0.0
    %3630 = vmatprep.subr.mxu0 0.0
    %3631 = vmatpush1.msra.mxu0 0.0
    %3632 = vmatprep.subr.mxu0 0.0
    %3633 = vmatpush1.msra.mxu0 0.0
    %3634 = vmatprep.subr.mxu0 0.0
    %3635 = vmatpush1.msra.mxu0 0.0
    %3636 = vmatprep.subr.mxu0 0.0
    %3637 = vmatpush1.msra.mxu0 0.0
    %3638 = vmatprep.mubr.f32.mxu0 0.0
    %3639 = vmatmul.mubr.f32.gmra.mrb[0].mxu0 %v3501
    %v3640 = vpop.f32.mrb[0].mxu0
    %v3641 = vadd.f32 %v567, %v3640
    %v3642 = vpop.f32.mrb[0].mxu0
    %3643 = vdwg.mxu0
    %3644 = vmatprep.subr.mxu0 %v713
    %3645 = vmatpush1.msra.mxu0 %v712
    %3646 = vmatprep.subr.mxu0 %v716
    %3647 = vmatpush1.msra.mxu0 %v715
    %3648 = vmatprep.subr.mxu0 %v719
    %3649 = vmatpush1.msra.mxu0 %v718
    %3650 = vmatprep.subr.mxu0 %v722
    %3651 = vmatpush1.msra.mxu0 %v721
    %3652 = vmatprep.subr.mxu0 %v725
    %3653 = vmatpush1.msra.mxu0 %v724
    %3654 = vmatprep.subr.mxu0 %v728
    %3655 = vmatpush1.msra.mxu0 %v727
    %3656 = vmatprep.subr.mxu0 %v731
    %3657 = vmatpush1.msra.mxu0 %v730
    %3658 = vmatprep.subr.mxu0 %v734
    %3659 = vmatpush1.msra.mxu0 %v733
    %3660 = vmatprep.subr.mxu0 %v737
    %3661 = vmatpush1.msra.mxu0 %v736
    %3662 = vmatprep.subr.mxu0 %v740
    %3663 = vmatpush1.msra.mxu0 %v739
    %3664 = vmatprep.subr.mxu0 %v743
    %3665 = vmatpush1.msra.mxu0 %v742
    %3666 = vmatprep.subr.mxu0 %v746
    %3667 = vmatpush1.msra.mxu0 %v745
    %3668 = vmatprep.subr.mxu0 %v749
    %3669 = vmatpush1.msra.mxu0 %v748
    %3670 = vmatprep.subr.mxu0 %v752
    %3671 = vmatpush1.msra.mxu0 %v751
    %3672 = vmatprep.subr.mxu0 %v755
    %3673 = vmatpush1.msra.mxu0 %v754
    %3674 = vmatprep.subr.mxu0 %v758
    %3675 = vmatpush1.msra.mxu0 %v757
    %3676 = vmatprep.subr.mxu0 0.0
    %3677 = vmatpush1.msra.mxu0 0.0
    %3678 = vmatprep.subr.mxu0 0.0
    %3679 = vmatpush1.msra.mxu0 0.0
    %3680 = vmatprep.subr.mxu0 0.0
    %3681 = vmatpush1.msra.mxu0 0.0
    %3682 = vmatprep.subr.mxu0 0.0
    %3683 = vmatpush1.msra.mxu0 0.0
    %3684 = vmatprep.subr.mxu0 0.0
    %3685 = vmatpush1.msra.mxu0 0.0
    %3686 = vmatprep.subr.mxu0 0.0
    %3687 = vmatpush1.msra.mxu0 0.0
    %3688 = vmatprep.subr.mxu0 0.0
    %3689 = vmatpush1.msra.mxu0 0.0
    %3690 = vmatprep.subr.mxu0 0.0
    %3691 = vmatpush1.msra.mxu0 0.0
    %3692 = vmatprep.subr.mxu0 0.0
    %3693 = vmatpush1.msra.mxu0 0.0
    %3694 = vmatprep.subr.mxu0 0.0
    %3695 = vmatpush1.msra.mxu0 0.0
    %3696 = vmatprep.subr.mxu0 0.0
    %3697 = vmatpush1.msra.mxu0 0.0
    %3698 = vmatprep.subr.mxu0 0.0
    %3699 = vmatpush1.msra.mxu0 0.0
    %3700 = vmatprep.subr.mxu0 0.0
    %3701 = vmatpush1.msra.mxu0 0.0
    %3702 = vmatprep.subr.mxu0 0.0
    %3703 = vmatpush1.msra.mxu0 0.0
    %3704 = vmatprep.subr.mxu0 0.0
    %3705 = vmatpush1.msra.mxu0 0.0
    %3706 = vmatprep.subr.mxu0 0.0
    %3707 = vmatpush1.msra.mxu0 0.0
    %3708 = vmatprep.mubr.f32.mxu0 0.0
    %3709 = vmatmul.mubr.f32.gmra.mrb[0].mxu0 %v3325
    %v3710 = vpop.f32.mrb[0].mxu0
    %v3711 = vadd.f32 %v764, %v3710
    %v3712 = vpop.f32.mrb[0].mxu0
    %v3713 = vadd.f32 %v768, %v3712
    %3714 = vdwg.mxu0
    %3715 = vmatprep.subr.mxu0 0.0
    %3716 = vmatpush1.msra.mxu0 %v714
    %3717 = vmatprep.subr.mxu0 0.0
    %3718 = vmatpush1.msra.mxu0 %v717
    %3719 = vmatprep.subr.mxu0 0.0
    %3720 = vmatpush1.msra.mxu0 %v720
    %3721 = vmatprep.subr.mxu0 0.0
    %3722 = vmatpush1.msra.mxu0 %v723
    %3723 = vmatprep.subr.mxu0 0.0
    %3724 = vmatpush1.msra.mxu0 %v726
    %3725 = vmatprep.subr.mxu0 0.0
    %3726 = vmatpush1.msra.mxu0 %v729
    %3727 = vmatprep.subr.mxu0 0.0
    %3728 = vmatpush1.msra.mxu0 %v732
    %3729 = vmatprep.subr.mxu0 0.0
    %3730 = vmatpush1.msra.mxu0 %v735
    %3731 = vmatprep.subr.mxu0 0.0
    %3732 = vmatpush1.msra.mxu0 %v738
    %3733 = vmatprep.subr.mxu0 0.0
    %3734 = vmatpush1.msra.mxu0 %v741
    %3735 = vmatprep.subr.mxu0 0.0
    %3736 = vmatpush1.msra.mxu0 %v744
    %3737 = vmatprep.subr.mxu0 0.0
    %3738 = vmatpush1.msra.mxu0 %v747
    %3739 = vmatprep.subr.mxu0 0.0
    %3740 = vmatpush1.msra.mxu0 %v750
    %3741 = vmatprep.subr.mxu0 0.0
    %3742 = vmatpush1.msra.mxu0 %v753
    %3743 = vmatprep.subr.mxu0 0.0
    %3744 = vmatpush1.msra.mxu0 %v756
    %3745 = vmatprep.subr.mxu0 0.0
    %3746 = vmatpush1.msra.mxu0 %v759
    %3747 = vmatprep.subr.mxu0 0.0
    %3748 = vmatpush1.msra.mxu0 0.0
    %3749 = vmatprep.subr.mxu0 0.0
    %3750 = vmatpush1.msra.mxu0 0.0
    %3751 = vmatprep.subr.mxu0 0.0
    %3752 = vmatpush1.msra.mxu0 0.0
    %3753 = vmatprep.subr.mxu0 0.0
    %3754 = vmatpush1.msra.mxu0 0.0
    %3755 = vmatprep.subr.mxu0 0.0
    %3756 = vmatpush1.msra.mxu0 0.0
    %3757 = vmatprep.subr.mxu0 0.0
    %3758 = vmatpush1.msra.mxu0 0.0
    %3759 = vmatprep.subr.mxu0 0.0
    %3760 = vmatpush1.msra.mxu0 0.0
    %3761 = vmatprep.subr.mxu0 0.0
    %3762 = vmatpush1.msra.mxu0 0.0
    %3763 = vmatprep.subr.mxu0 0.0
    %3764 = vmatpush1.msra.mxu0 0.0
    %3765 = vmatprep.subr.mxu0 0.0
    %3766 = vmatpush1.msra.mxu0 0.0
    %3767 = vmatprep.subr.mxu0 0.0
    %3768 = vmatpush1.msra.mxu0 0.0
    %3769 = vmatprep.subr.mxu0 0.0
    %3770 = vmatpush1.msra.mxu0 0.0
    %3771 = vmatprep.subr.mxu0 0.0
    %3772 = vmatpush1.msra.mxu0 0.0
    %3773 = vmatprep.subr.mxu0 0.0
    %3774 = vmatpush1.msra.mxu0 0.0
    %3775 = vmatprep.subr.mxu0 0.0
    %3776 = vmatpush1.msra.mxu0 0.0
    %3777 = vmatprep.subr.mxu0 0.0
    %3778 = vmatpush1.msra.mxu0 0.0
    %3779 = vmatprep.mubr.f32.mxu0 0.0
    %3780 = vmatmul.mubr.f32.gmra.mrb[0].mxu0 %v3325
    %v3781 = vpop.f32.mrb[0].mxu0
    %v3782 = vadd.f32 %v772, %v3781
    %v3783 = vpop.f32.mrb[0].mxu0
    %3784 = vdwg.mxu0
    %v3785 = vadd.f32 %v3570, %v3711
    %v3786 = vxor.u32 %v3785, 2147483648
    %v3787 = vmul.f32 %v3786, 1.442695
    %v3788 = vpow.pop %v3787
    %v3789 = vadd.f32 %v3788, 1.0
    %v3790 = vrcp.pop %v3789
    %v3791 = vmul.f32 1.0, %v3790
    %v3792 = vadd.f32 %v3572, %v3713
    %v3793 = vxor.u32 %v3792, 2147483648
    %v3794 = vmul.f32 %v3793, 1.442695
    %v3795 = vpow.pop %v3794
    %v3796 = vadd.f32 %v3795, 1.0
    %v3797 = vrcp.pop %v3796
    %v3798 = vmul.f32 1.0, %v3797
    %v3799 = vmul.f32 %v3791, %v3782
    %v3800 = vadd.f32 %v3641, %v3799
    %v3801 = vtanh.pop %v3800
    %v3802 = vsub.f32 1.0, %v3798
    %v3803 = vmul.f32 %v3802, %v3801
    %v3804 = vmul.f32 %v3798, %v3325
    %v3805 = vadd.f32 %v3803, %v3804
    %v3806 = vadd.f32 %v3326, %v3805
    %3807 = vmatprep.subr.mxu0 %v282
    %3808 = vmatpush1.msra.mxu0 %v281
    %3809 = vmatprep.subr.mxu0 %v285
    %3810 = vmatpush1.msra.mxu0 %v284
    %3811 = vmatprep.subr.mxu0 %v288
    %3812 = vmatpush1.msra.mxu0 %v287
    %3813 = vmatprep.subr.mxu0 %v291
    %3814 = vmatpush1.msra.mxu0 %v290
    %3815 = vmatprep.subr.mxu0 %v294
    %3816 = vmatpush1.msra.mxu0 %v293
    %3817 = vmatprep.subr.mxu0 %v297
    %3818 = vmatpush1.msra.mxu0 %v296
    %3819 = vmatprep.subr.mxu0 %v300
    %3820 = vmatpush1.msra.mxu0 %v299
    %3821 = vmatprep.subr.mxu0 %v303
    %3822 = vmatpush1.msra.mxu0 %v302
    %3823 = vmatprep.subr.mxu0 %v306
    %3824 = vmatpush1.msra.mxu0 %v305
    %3825 = vmatprep.subr.mxu0 %v309
    %3826 = vmatpush1.msra.mxu0 %v308
    %3827 = vmatprep.subr.mxu0 %v312
    %3828 = vmatpush1.msra.mxu0 %v311
    %3829 = vmatprep.subr.mxu0 %v315
    %3830 = vmatpush1.msra.mxu0 %v314
    %3831 = vmatprep.subr.mxu0 %v318
    %3832 = vmatpush1.msra.mxu0 %v317
    %3833 = vmatprep.subr.mxu0 %v321
    %3834 = vmatpush1.msra.mxu0 %v320
    %3835 = vmatprep.subr.mxu0 %v324
    %3836 = vmatpush1.msra.mxu0 %v323
    %3837 = vmatprep.subr.mxu0 %v327
    %3838 = vmatpush1.msra.mxu0 %v326
    %3839 = vmatprep.subr.mxu0 0.0
    %3840 = vmatpush1.msra.mxu0 0.0
    %3841 = vmatprep.subr.mxu0 0.0
    %3842 = vmatpush1.msra.mxu0 0.0
    %3843 = vmatprep.subr.mxu0 0.0
    %3844 = vmatpush1.msra.mxu0 0.0
    %3845 = vmatprep.subr.mxu0 0.0
    %3846 = vmatpush1.msra.mxu0 0.0
    %3847 = vmatprep.subr.mxu0 0.0
    %3848 = vmatpush1.msra.mxu0 0.0
    %3849 = vmatprep.subr.mxu0 0.0
    %3850 = vmatpush1.msra.mxu0 0.0
    %3851 = vmatprep.subr.mxu0 0.0
    %3852 = vmatpush1.msra.mxu0 0.0
    %3853 = vmatprep.subr.mxu0 0.0
    %3854 = vmatpush1.msra.mxu0 0.0
    %3855 = vmatprep.subr.mxu0 0.0
    %3856 = vmatpush1.msra.mxu0 0.0
    %3857 = vmatprep.subr.mxu0 0.0
    %3858 = vmatpush1.msra.mxu0 0.0
    %3859 = vmatprep.subr.mxu0 0.0
    %3860 = vmatpush1.msra.mxu0 0.0
    %3861 = vmatprep.subr.mxu0 0.0
    %3862 = vmatpush1.msra.mxu0 0.0
    %3863 = vmatprep.subr.mxu0 0.0
    %3864 = vmatpush1.msra.mxu0 0.0
    %3865 = vmatprep.subr.mxu0 0.0
    %3866 = vmatpush1.msra.mxu0 0.0
    %3867 = vmatprep.subr.mxu0 0.0
    %3868 = vmatpush1.msra.mxu0 0.0
    %3869 = vmatprep.subr.mxu0 0.0
    %3870 = vmatpush1.msra.mxu0 0.0
    %3871 = vmatprep.mubr.f32.mxu0 0.0
    %3872 = vmatmul.mubr.f32.gmra.mrb[0].mxu0 %v3501
    %v3873 = vpop.f32.mrb[0].mxu0
    %v3874 = vadd.f32 %v333, %v3873
    %v3875 = vpop.f32.mrb[0].mxu0
    %v3876 = vadd.f32 %v337, %v3875
    %3877 = vdwg.mxu0
    %3878 = vmatprep.subr.mxu0 0.0
    %3879 = vmatpush1.msra.mxu0 %v283
    %3880 = vmatprep.subr.mxu0 0.0
    %3881 = vmatpush1.msra.mxu0 %v286
    %3882 = vmatprep.subr.mxu0 0.0
    %3883 = vmatpush1.msra.mxu0 %v289
    %3884 = vmatprep.subr.mxu0 0.0
    %3885 = vmatpush1.msra.mxu0 %v292
    %3886 = vmatprep.subr.mxu0 0.0
    %3887 = vmatpush1.msra.mxu0 %v295
    %3888 = vmatprep.subr.mxu0 0.0
    %3889 = vmatpush1.msra.mxu0 %v298
    %3890 = vmatprep.subr.mxu0 0.0
    %3891 = vmatpush1.msra.mxu0 %v301
    %3892 = vmatprep.subr.mxu0 0.0
    %3893 = vmatpush1.msra.mxu0 %v304
    %3894 = vmatprep.subr.mxu0 0.0
    %3895 = vmatpush1.msra.mxu0 %v307
    %3896 = vmatprep.subr.mxu0 0.0
    %3897 = vmatpush1.msra.mxu0 %v310
    %3898 = vmatprep.subr.mxu0 0.0
    %3899 = vmatpush1.msra.mxu0 %v313
    %3900 = vmatprep.subr.mxu0 0.0
    %3901 = vmatpush1.msra.mxu0 %v316
    %3902 = vmatprep.subr.mxu0 0.0
    %3903 = vmatpush1.msra.mxu0 %v319
    %3904 = vmatprep.subr.mxu0 0.0
    %3905 = vmatpush1.msra.mxu0 %v322
    %3906 = vmatprep.subr.mxu0 0.0
    %3907 = vmatpush1.msra.mxu0 %v325
    %3908 = vmatprep.subr.mxu0 0.0
    %3909 = vmatpush1.msra.mxu0 %v328
    %3910 = vmatprep.subr.mxu0 0.0
    %3911 = vmatpush1.msra.mxu0 0.0
    %3912 = vmatprep.subr.mxu0 0.0
    %3913 = vmatpush1.msra.mxu0 0.0
    %3914 = vmatprep.subr.mxu0 0.0
    %3915 = vmatpush1.msra.mxu0 0.0
    %3916 = vmatprep.subr.mxu0 0.0
    %3917 = vmatpush1.msra.mxu0 0.0
    %3918 = vmatprep.subr.mxu0 0.0
    %3919 = vmatpush1.msra.mxu0 0.0
    %3920 = vmatprep.subr.mxu0 0.0
    %3921 = vmatpush1.msra.mxu0 0.0
    %3922 = vmatprep.subr.mxu0 0.0
    %3923 = vmatpush1.msra.mxu0 0.0
    %3924 = vmatprep.subr.mxu0 0.0
    %3925 = vmatpush1.msra.mxu0 0.0
    %3926 = vmatprep.subr.mxu0 0.0
    %3927 = vmatpush1.msra.mxu0 0.0
    %3928 = vmatprep.subr.mxu0 0.0
    %3929 = vmatpush1.msra.mxu0 0.0
    %3930 = vmatprep.subr.mxu0 0.0
    %3931 = vmatpush1.msra.mxu0 0.0
    %3932 = vmatprep.subr.mxu0 0.0
    %3933 = vmatpush1.msra.mxu0 0.0
    %3934 = vmatprep.subr.mxu0 0.0
    %3935 = vmatpush1.msra.mxu0 0.0
    %3936 = vmatprep.subr.mxu0 0.0
    %3937 = vmatpush1.msra.mxu0 0.0
    %3938 = vmatprep.subr.mxu0 0.0
    %3939 = vmatpush1.msra.mxu0 0.0
    %3940 = vmatprep.subr.mxu0 0.0
    %3941 = vmatpush1.msra.mxu0 0.0
    %3942 = vmatprep.mubr.f32.mxu0 0.0
    %3943 = vmatmul.mubr.f32.gmra.mrb[0].mxu0 %v3501
    %v3944 = vpop.f32.mrb[0].mxu0
    %v3945 = vadd.f32 %v341, %v3944
    %v3946 = vpop.f32.mrb[0].mxu0
    %3947 = vdwg.mxu0
    %v3949 = vrot.slane %v3874, 2
    %v3951 = vadd.f32 %v199, %v3949
    %v3952 = vxor.u32 %v3951, 2147483648
    %v3953 = vmul.f32 %v3952, 1.442695
    %v3954 = vpow.pop %v3953
    %v3955 = vadd.f32 %v3954, 1.0
    %v3956 = vrcp.pop %v3955
    %v3957 = vmul.f32 1.0, %v3956
    %v3959 = vrot.slane %v3876, 2
    %v3961 = vadd.f32 %v201, %v3959
    %v3962 = vxor.u32 %v3961, 2147483648
    %v3963 = vmul.f32 %v3962, 1.442695
    %v3964 = vpow.pop %v3963
    %v3965 = vadd.f32 %v3964, 1.0
    %v3966 = vrcp.pop %v3965
    %v3967 = vmul.f32 1.0, %v3966
    %v3969 = vrot.slane %v3945, 2
    %v3971 = vmul.f32 %v3957, %v3969
    %v3972 = vadd.f32 %v275, %v3971
    %v3973 = vtanh.pop %v3972
    %v3974 = vsub.f32 1.0, %v3967
    %v3975 = vmul.f32 %v3974, %v3973
    %v3976 = vrot.slane %v3499, 6
    %v3978 = vmul.f32 %v3967, %v3976
    %v3979 = vadd.f32 %v3975, %v3978
    %v3981 = vrot.slane %v3979, 6
    %3983 = vmatprep.subr.mxu0 %v508
    %3984 = vmatpush1.msra.mxu0 %v507
    %3985 = vmatprep.subr.mxu0 %v511
    %3986 = vmatpush1.msra.mxu0 %v510
    %3987 = vmatprep.subr.mxu0 %v514
    %3988 = vmatpush1.msra.mxu0 %v513
    %3989 = vmatprep.subr.mxu0 %v517
    %3990 = vmatpush1.msra.mxu0 %v516
    %3991 = vmatprep.subr.mxu0 %v520
    %3992 = vmatpush1.msra.mxu0 %v519
    %3993 = vmatprep.subr.mxu0 %v523
    %3994 = vmatpush1.msra.mxu0 %v522
    %3995 = vmatprep.subr.mxu0 %v526
    %3996 = vmatpush1.msra.mxu0 %v525
    %3997 = vmatprep.subr.mxu0 %v529
    %3998 = vmatpush1.msra.mxu0 %v528
    %3999 = vmatprep.subr.mxu0 %v532
    %4000 = vmatpush1.msra.mxu0 %v531
    %4001 = vmatprep.subr.mxu0 %v535
    %4002 = vmatpush1.msra.mxu0 %v534
    %4003 = vmatprep.subr.mxu0 %v538
    %4004 = vmatpush1.msra.mxu0 %v537
    %4005 = vmatprep.subr.mxu0 %v541
    %4006 = vmatpush1.msra.mxu0 %v540
    %4007 = vmatprep.subr.mxu0 %v544
    %4008 = vmatpush1.msra.mxu0 %v543
    %4009 = vmatprep.subr.mxu0 %v547
    %4010 = vmatpush1.msra.mxu0 %v546
    %4011 = vmatprep.subr.mxu0 %v550
    %4012 = vmatpush1.msra.mxu0 %v549
    %4013 = vmatprep.subr.mxu0 %v553
    %4014 = vmatpush1.msra.mxu0 %v552
    %4015 = vmatprep.subr.mxu0 0.0
    %4016 = vmatpush1.msra.mxu0 0.0
    %4017 = vmatprep.subr.mxu0 0.0
    %4018 = vmatpush1.msra.mxu0 0.0
    %4019 = vmatprep.subr.mxu0 0.0
    %4020 = vmatpush1.msra.mxu0 0.0
    %4021 = vmatprep.subr.mxu0 0.0
    %4022 = vmatpush1.msra.mxu0 0.0
    %4023 = vmatprep.subr.mxu0 0.0
    %4024 = vmatpush1.msra.mxu0 0.0
    %4025 = vmatprep.subr.mxu0 0.0
    %4026 = vmatpush1.msra.mxu0 0.0
    %4027 = vmatprep.subr.mxu0 0.0
    %4028 = vmatpush1.msra.mxu0 0.0
    %4029 = vmatprep.subr.mxu0 0.0
    %4030 = vmatpush1.msra.mxu0 0.0
    %4031 = vmatprep.subr.mxu0 0.0
    %4032 = vmatpush1.msra.mxu0 0.0
    %4033 = vmatprep.subr.mxu0 0.0
    %4034 = vmatpush1.msra.mxu0 0.0
    %4035 = vmatprep.subr.mxu0 0.0
    %4036 = vmatpush1.msra.mxu0 0.0
    %4037 = vmatprep.subr.mxu0 0.0
    %4038 = vmatpush1.msra.mxu0 0.0
    %4039 = vmatprep.subr.mxu0 0.0
    %4040 = vmatpush1.msra.mxu0 0.0
    %4041 = vmatprep.subr.mxu0 0.0
    %4042 = vmatpush1.msra.mxu0 0.0
    %4043 = vmatprep.subr.mxu0 0.0
    %4044 = vmatpush1.msra.mxu0 0.0
    %4045 = vmatprep.subr.mxu0 0.0
    %4046 = vmatpush1.msra.mxu0 0.0
    %4047 = vmatprep.mubr.f32.mxu0 0.0
    %4048 = vmatmul.mubr.f32.gmra.mrb[0].mxu0 %v3981
    %v4049 = vpop.f32.mrb[0].mxu0
    %v4050 = vadd.f32 %v559, %v4049
    %v4051 = vpop.f32.mrb[0].mxu0
    %v4052 = vadd.f32 %v563, %v4051
    %4053 = vdwg.mxu0
    %4054 = vmatprep.subr.mxu0 0.0
    %4055 = vmatpush1.msra.mxu0 %v509
    %4056 = vmatprep.subr.mxu0 0.0
    %4057 = vmatpush1.msra.mxu0 %v512
    %4058 = vmatprep.subr.mxu0 0.0
    %4059 = vmatpush1.msra.mxu0 %v515
    %4060 = vmatprep.subr.mxu0 0.0
    %4061 = vmatpush1.msra.mxu0 %v518
    %4062 = vmatprep.subr.mxu0 0.0
    %4063 = vmatpush1.msra.mxu0 %v521
    %4064 = vmatprep.subr.mxu0 0.0
    %4065 = vmatpush1.msra.mxu0 %v524
    %4066 = vmatprep.subr.mxu0 0.0
    %4067 = vmatpush1.msra.mxu0 %v527
    %4068 = vmatprep.subr.mxu0 0.0
    %4069 = vmatpush1.msra.mxu0 %v530
    %4070 = vmatprep.subr.mxu0 0.0
    %4071 = vmatpush1.msra.mxu0 %v533
    %4072 = vmatprep.subr.mxu0 0.0
    %4073 = vmatpush1.msra.mxu0 %v536
    %4074 = vmatprep.subr.mxu0 0.0
    %4075 = vmatpush1.msra.mxu0 %v539
    %4076 = vmatprep.subr.mxu0 0.0
    %4077 = vmatpush1.msra.mxu0 %v542
    %4078 = vmatprep.subr.mxu0 0.0
    %4079 = vmatpush1.msra.mxu0 %v545
    %4080 = vmatprep.subr.mxu0 0.0
    %4081 = vmatpush1.msra.mxu0 %v548
    %4082 = vmatprep.subr.mxu0 0.0
    %4083 = vmatpush1.msra.mxu0 %v551
    %4084 = vmatprep.subr.mxu0 0.0
    %4085 = vmatpush1.msra.mxu0 %v554
    %4086 = vmatprep.subr.mxu0 0.0
    %4087 = vmatpush1.msra.mxu0 0.0
    %4088 = vmatprep.subr.mxu0 0.0
    %4089 = vmatpush1.msra.mxu0 0.0
    %4090 = vmatprep.subr.mxu0 0.0
    %4091 = vmatpush1.msra.mxu0 0.0
    %4092 = vmatprep.subr.mxu0 0.0
    %4093 = vmatpush1.msra.mxu0 0.0
    %4094 = vmatprep.subr.mxu0 0.0
    %4095 = vmatpush1.msra.mxu0 0.0
    %4096 = vmatprep.subr.mxu0 0.0
    %4097 = vmatpush1.msra.mxu0 0.0
    %4098 = vmatprep.subr.mxu0 0.0
    %4099 = vmatpush1.msra.mxu0 0.0
    %4100 = vmatprep.subr.mxu0 0.0
    %4101 = vmatpush1.msra.mxu0 0.0
    %4102 = vmatprep.subr.mxu0 0.0
    %4103 = vmatpush1.msra.mxu0 0.0
    %4104 = vmatprep.subr.mxu0 0.0
    %4105 = vmatpush1.msra.mxu0 0.0
    %4106 = vmatprep.subr.mxu0 0.0
    %4107 = vmatpush1.msra.mxu0 0.0
    %4108 = vmatprep.subr.mxu0 0.0
    %4109 = vmatpush1.msra.mxu0 0.0
    %4110 = vmatprep.subr.mxu0 0.0
    %4111 = vmatpush1.msra.mxu0 0.0
    %4112 = vmatprep.subr.mxu0 0.0
    %4113 = vmatpush1.msra.mxu0 0.0
    %4114 = vmatprep.subr.mxu0 0.0
    %4115 = vmatpush1.msra.mxu0 0.0
    %4116 = vmatprep.subr.mxu0 0.0
    %4117 = vmatpush1.msra.mxu0 0.0
    %4118 = vmatprep.mubr.f32.mxu0 0.0
    %4119 = vmatmul.mubr.f32.gmra.mrb[0].mxu0 %v3981
    %v4120 = vpop.f32.mrb[0].mxu0
    %v4121 = vadd.f32 %v567, %v4120
    %v4122 = vpop.f32.mrb[0].mxu0
    %4123 = vdwg.mxu0
    %4124 = vmatprep.subr.mxu0 %v713
    %4125 = vmatpush1.msra.mxu0 %v712
    %4126 = vmatprep.subr.mxu0 %v716
    %4127 = vmatpush1.msra.mxu0 %v715
    %4128 = vmatprep.subr.mxu0 %v719
    %4129 = vmatpush1.msra.mxu0 %v718
    %4130 = vmatprep.subr.mxu0 %v722
    %4131 = vmatpush1.msra.mxu0 %v721
    %4132 = vmatprep.subr.mxu0 %v725
    %4133 = vmatpush1.msra.mxu0 %v724
    %4134 = vmatprep.subr.mxu0 %v728
    %4135 = vmatpush1.msra.mxu0 %v727
    %4136 = vmatprep.subr.mxu0 %v731
    %4137 = vmatpush1.msra.mxu0 %v730
    %4138 = vmatprep.subr.mxu0 %v734
    %4139 = vmatpush1.msra.mxu0 %v733
    %4140 = vmatprep.subr.mxu0 %v737
    %4141 = vmatpush1.msra.mxu0 %v736
    %4142 = vmatprep.subr.mxu0 %v740
    %4143 = vmatpush1.msra.mxu0 %v739
    %4144 = vmatprep.subr.mxu0 %v743
    %4145 = vmatpush1.msra.mxu0 %v742
    %4146 = vmatprep.subr.mxu0 %v746
    %4147 = vmatpush1.msra.mxu0 %v745
    %4148 = vmatprep.subr.mxu0 %v749
    %4149 = vmatpush1.msra.mxu0 %v748
    %4150 = vmatprep.subr.mxu0 %v752
    %4151 = vmatpush1.msra.mxu0 %v751
    %4152 = vmatprep.subr.mxu0 %v755
    %4153 = vmatpush1.msra.mxu0 %v754
    %4154 = vmatprep.subr.mxu0 %v758
    %4155 = vmatpush1.msra.mxu0 %v757
    %4156 = vmatprep.subr.mxu0 0.0
    %4157 = vmatpush1.msra.mxu0 0.0
    %4158 = vmatprep.subr.mxu0 0.0
    %4159 = vmatpush1.msra.mxu0 0.0
    %4160 = vmatprep.subr.mxu0 0.0
    %4161 = vmatpush1.msra.mxu0 0.0
    %4162 = vmatprep.subr.mxu0 0.0
    %4163 = vmatpush1.msra.mxu0 0.0
    %4164 = vmatprep.subr.mxu0 0.0
    %4165 = vmatpush1.msra.mxu0 0.0
    %4166 = vmatprep.subr.mxu0 0.0
    %4167 = vmatpush1.msra.mxu0 0.0
    %4168 = vmatprep.subr.mxu0 0.0
    %4169 = vmatpush1.msra.mxu0 0.0
    %4170 = vmatprep.subr.mxu0 0.0
    %4171 = vmatpush1.msra.mxu0 0.0
    %4172 = vmatprep.subr.mxu0 0.0
    %4173 = vmatpush1.msra.mxu0 0.0
    %4174 = vmatprep.subr.mxu0 0.0
    %4175 = vmatpush1.msra.mxu0 0.0
    %4176 = vmatprep.subr.mxu0 0.0
    %4177 = vmatpush1.msra.mxu0 0.0
    %4178 = vmatprep.subr.mxu0 0.0
    %4179 = vmatpush1.msra.mxu0 0.0
    %4180 = vmatprep.subr.mxu0 0.0
    %4181 = vmatpush1.msra.mxu0 0.0
    %4182 = vmatprep.subr.mxu0 0.0
    %4183 = vmatpush1.msra.mxu0 0.0
    %4184 = vmatprep.subr.mxu0 0.0
    %4185 = vmatpush1.msra.mxu0 0.0
    %4186 = vmatprep.subr.mxu0 0.0
    %4187 = vmatpush1.msra.mxu0 0.0
    %4188 = vmatprep.mubr.f32.mxu0 0.0
    %4189 = vmatmul.mubr.f32.gmra.mrb[0].mxu0 %v3805
    %v4190 = vpop.f32.mrb[0].mxu0
    %v4191 = vadd.f32 %v764, %v4190
    %v4192 = vpop.f32.mrb[0].mxu0
    %v4193 = vadd.f32 %v768, %v4192
    %4194 = vdwg.mxu0
    %4195 = vmatprep.subr.mxu0 0.0
    %4196 = vmatpush1.msra.mxu0 %v714
    %4197 = vmatprep.subr.mxu0 0.0
    %4198 = vmatpush1.msra.mxu0 %v717
    %4199 = vmatprep.subr.mxu0 0.0
    %4200 = vmatpush1.msra.mxu0 %v720
    %4201 = vmatprep.subr.mxu0 0.0
    %4202 = vmatpush1.msra.mxu0 %v723
    %4203 = vmatprep.subr.mxu0 0.0
    %4204 = vmatpush1.msra.mxu0 %v726
    %4205 = vmatprep.subr.mxu0 0.0
    %4206 = vmatpush1.msra.mxu0 %v729
    %4207 = vmatprep.subr.mxu0 0.0
    %4208 = vmatpush1.msra.mxu0 %v732
    %4209 = vmatprep.subr.mxu0 0.0
    %4210 = vmatpush1.msra.mxu0 %v735
    %4211 = vmatprep.subr.mxu0 0.0
    %4212 = vmatpush1.msra.mxu0 %v738
    %4213 = vmatprep.subr.mxu0 0.0
    %4214 = vmatpush1.msra.mxu0 %v741
    %4215 = vmatprep.subr.mxu0 0.0
    %4216 = vmatpush1.msra.mxu0 %v744
    %4217 = vmatprep.subr.mxu0 0.0
    %4218 = vmatpush1.msra.mxu0 %v747
    %4219 = vmatprep.subr.mxu0 0.0
    %4220 = vmatpush1.msra.mxu0 %v750
    %4221 = vmatprep.subr.mxu0 0.0
    %4222 = vmatpush1.msra.mxu0 %v753
    %4223 = vmatprep.subr.mxu0 0.0
    %4224 = vmatpush1.msra.mxu0 %v756
    %4225 = vmatprep.subr.mxu0 0.0
    %4226 = vmatpush1.msra.mxu0 %v759
    %4227 = vmatprep.subr.mxu0 0.0
    %4228 = vmatpush1.msra.mxu0 0.0
    %4229 = vmatprep.subr.mxu0 0.0
    %4230 = vmatpush1.msra.mxu0 0.0
    %4231 = vmatprep.subr.mxu0 0.0
    %4232 = vmatpush1.msra.mxu0 0.0
    %4233 = vmatprep.subr.mxu0 0.0
    %4234 = vmatpush1.msra.mxu0 0.0
    %4235 = vmatprep.subr.mxu0 0.0
    %4236 = vmatpush1.msra.mxu0 0.0
    %4237 = vmatprep.subr.mxu0 0.0
    %4238 = vmatpush1.msra.mxu0 0.0
    %4239 = vmatprep.subr.mxu0 0.0
    %4240 = vmatpush1.msra.mxu0 0.0
    %4241 = vmatprep.subr.mxu0 0.0
    %4242 = vmatpush1.msra.mxu0 0.0
    %4243 = vmatprep.subr.mxu0 0.0
    %4244 = vmatpush1.msra.mxu0 0.0
    %4245 = vmatprep.subr.mxu0 0.0
    %4246 = vmatpush1.msra.mxu0 0.0
    %4247 = vmatprep.subr.mxu0 0.0
    %4248 = vmatpush1.msra.mxu0 0.0
    %4249 = vmatprep.subr.mxu0 0.0
    %4250 = vmatpush1.msra.mxu0 0.0
    %4251 = vmatprep.subr.mxu0 0.0
    %4252 = vmatpush1.msra.mxu0 0.0
    %4253 = vmatprep.subr.mxu0 0.0
    %4254 = vmatpush1.msra.mxu0 0.0
    %4255 = vmatprep.subr.mxu0 0.0
    %4256 = vmatpush1.msra.mxu0 0.0
    %4257 = vmatprep.subr.mxu0 0.0
    %4258 = vmatpush1.msra.mxu0 0.0
    %4259 = vmatprep.mubr.f32.mxu0 0.0
    %4260 = vmatmul.mubr.f32.gmra.mrb[0].mxu0 %v3805
    %v4261 = vpop.f32.mrb[0].mxu0
    %v4262 = vadd.f32 %v772, %v4261
    %v4263 = vpop.f32.mrb[0].mxu0
    %4264 = vdwg.mxu0
    %v4265 = vadd.f32 %v4050, %v4191
    %v4266 = vxor.u32 %v4265, 2147483648
    %v4267 = vmul.f32 %v4266, 1.442695
    %v4268 = vpow.pop %v4267
    %v4269 = vadd.f32 %v4268, 1.0
    %v4270 = vrcp.pop %v4269
    %v4271 = vmul.f32 1.0, %v4270
    %v4272 = vadd.f32 %v4052, %v4193
    %v4273 = vxor.u32 %v4272, 2147483648
    %v4274 = vmul.f32 %v4273, 1.442695
    %v4275 = vpow.pop %v4274
    %v4276 = vadd.f32 %v4275, 1.0
    %v4277 = vrcp.pop %v4276
    %v4278 = vmul.f32 1.0, %v4277
    %v4279 = vmul.f32 %v4271, %v4262
    %v4280 = vadd.f32 %v4121, %v4279
    %v4281 = vtanh.pop %v4280
    %v4282 = vsub.f32 1.0, %v4278
    %v4283 = vmul.f32 %v4282, %v4281
    %v4284 = vmul.f32 %v4278, %v3805
    %v4285 = vadd.f32 %v4283, %v4284
    %v4286 = vadd.f32 %v3806, %v4285
    %v4287 = vmul.f32 %v4286, 0.125
    %4288 = vst [vmem:[#allocation10] sm:$0x3] %v4287
    // Predicated region
    $region54: #{gru_forward.1} parent=1 // pred_check
      _
    $region55: #{gru_forward.1} parent=1 // pred_check_branch
      %4290 = sbr.rel (0) target = $region57
    $region56: #{gru_forward.1} parent=1 // pred_region
      %s4292 = ssub.s32 32, 32
      %4293 = vsyncadd [#allocation4], %s4292
      %s4295 = sshll.u32 [#allocation10], 4
      %s4296 = int_to_ptr.vmem [resolvable:$true] %s4295
      %4298 = dma.vmem_to_hbm [thread:$0]  %s4296, 32, %s9, [#allocation4]
    $region57: #{gru_forward.1} parent=1 // pred_fallthru
      _
    // Predicated region
    $region58: #{gru_forward.1} parent=1 // pred_check
      _
    $region59: #{gru_forward.1} parent=1 // pred_check_branch
      %4300 = sbr.rel (0) target = $region61
    $region60: #{gru_forward.1} parent=1 // pred_region
      %4301 = dma.done [#allocation4], 32
    $region61: #{gru_forward.1} parent=1 // pred_fallthru
      _
    %4302 = vsyncpa [#allocation3], 1
    %4303 = vsyncpa [#allocation6], 1
    %4304 = vsyncpa [#allocation9], 1
    %4305 = vsyncpa [#allocation4], 1

</llo_original>
